<compile_context>
chip_gen: v5e
topology: v5e:2x2
jax: 0.10.0
libtpu: 0.0.40
codegen_flags: <defaults>
</compile_context>

<pallas_src>
import functools

import jax
import jax.numpy as jnp
from jax import lax
from jax.experimental import pallas as pl
from jax.experimental.pallas import tpu as pltpu

# Exact one-hot selection of f32 embedding rows on the MXU.  (Mosaic supports
# only DEFAULT / HIGHEST f32 dot precision; DEFAULT would round the gathered
# embedding values to bf16, so HIGHEST is used to keep the lookup exact.)
_GATHER_PRECISION = lax.Precision.HIGHEST


def ncf_kernel(ids_ref,                   # (2, tb) int32 — [user; item] ids, batch on lanes
               ut_t_ref, it_t_ref,        # (H, NU), (H, NI) f32 — tables^T (VMEM-resident)
               w1u_t_ref, w1i_t_ref,      # (64, H), (64, H) — fc1 weight^T split at the concat
               b1_ref,                    # (64, 1)
               w2_t_ref, b2_ref,          # (32, 64), (32, 1)
               w3_ref,                    # (32, 1)  — output-layer weight as a column
               b3_ref,                    # (1, 1)   — SMEM scalar
               out_ref,                   # (1, tb)  — lane-dense output row
               *, mlp_precision):
    tb = ids_ref.shape[1]
    nu = ut_t_ref.shape[1]
    ni = it_t_ref.shape[1]

    uid = ids_ref[0:1, :]                                            # (1, tb)
    iid = ids_ref[1:2, :]                                            # (1, tb)

    # ---- fused embedding lookup (exact one-hot selection on the MXU) -------
    u_oh = jnp.where(
        lax.broadcasted_iota(jnp.int32, (nu, tb), 0) == uid, 1.0, 0.0
    ).astype(jnp.float32)                                            # (NU, tb)
    i_oh = jnp.where(
        lax.broadcasted_iota(jnp.int32, (ni, tb), 0) == iid, 1.0, 0.0
    ).astype(jnp.float32)                                            # (NI, tb)
    ue_t = jnp.dot(ut_t_ref[...], u_oh,
                   precision=_GATHER_PRECISION,
                   preferred_element_type=jnp.float32)               # (H, tb)
    ie_t = jnp.dot(it_t_ref[...], i_oh,
                   precision=_GATHER_PRECISION,
                   preferred_element_type=jnp.float32)               # (H, tb)

    # dropout == identity in eval mode.

    # ---- fc1 over concat([ue, ie]) as two K=H matmuls (batch on lanes) -----
    h1 = (jnp.dot(w1u_t_ref[...], ue_t,
                  precision=mlp_precision, preferred_element_type=jnp.float32)
          + jnp.dot(w1i_t_ref[...], ie_t,
                    precision=mlp_precision, preferred_element_type=jnp.float32)
          + b1_ref[...])
    h1 = jnp.maximum(h1, 0.0)                                        # (64, tb)

    # ---- fc2 ----------------------------------------------------------------
    h2 = jnp.dot(w2_t_ref[...], h1,
                 precision=mlp_precision, preferred_element_type=jnp.float32)
    h2 = jnp.maximum(h2 + b2_ref[...], 0.0)                          # (32, tb)

    # ---- output layer: VPU multiply + sublane reduction (lane-dense row) ----
    out = jnp.sum(h2 * w3_ref[...], axis=0, keepdims=True) + b3_ref[0, 0]  # (1, tb)
    out_ref[...] = out.astype(out_ref.dtype)


def _pick_batch_tile(B):
    """Largest lane-aligned divisor of B that is <= 2048 and leaves >= 2 grid
    steps (so v7x's two TensorCores both get work on the 'parallel' axis).
    Falls back to the full batch when B can't be tiled on 128 lanes."""
    if B % 128 != 0 or B <= 128:
        return B
    best = None
    cand = 128
    while cand <= min(2048, B // 2):
        if B % cand == 0:
            best = cand
        cand += 128
    return best if best is not None else B


def prepare_ncf_params(params):
    """One-time conversion of PyTorch-layout params to kernel layout.

    Do this ONCE and keep the result; the forward path then does no relayout.
    """
    H = params["user_embedding"].shape[1]
    w1 = params["fc1_w"]                                  # (2H, 64)
    return {
        "user_table_t": jnp.asarray(params["user_embedding"]).T,   # (H, NU)
        "item_table_t": jnp.asarray(params["item_embedding"]).T,   # (H, NI)
        "fc1_wu_t": jnp.asarray(w1[:H, :]).T,                      # (64, H)
        "fc1_wi_t": jnp.asarray(w1[H:, :]).T,                      # (64, H)
        "fc1_b_col": jnp.asarray(params["fc1_b"]).reshape(-1, 1),  # (64, 1)
        "fc2_w_t": jnp.asarray(params["fc2_w"]).T,                 # (32, 64)
        "fc2_b_col": jnp.asarray(params["fc2_b"]).reshape(-1, 1),  # (32, 1)
        "out_w_col": jnp.asarray(params["out_w"]).reshape(-1, 1),  # (32, 1)
        "out_b_smem": jnp.asarray(params["out_b"]).reshape(1, 1),  # (1, 1)
    }


def ncf_forward(user, item, kparams, *, batch_tile=None, mlp_precision=None):
    """NCF forward.  user, item: int (B,).  kparams: prepare_ncf_params(...).
    Returns (B, 1) float32.  mlp_precision=None -> MXU default (bf16 pass) for
    fc1/fc2; pass lax.Precision.HIGHEST for exact f32 MLP numerics."""
    ut_t = kparams["user_table_t"]
    it_t = kparams["item_table_t"]
    w1u_t, w1i_t = kparams["fc1_wu_t"], kparams["fc1_wi_t"]
    b1c = kparams["fc1_b_col"]
    w2_t, b2c = kparams["fc2_w_t"], kparams["fc2_b_col"]
    w3c, b3s = kparams["out_w_col"], kparams["out_b_smem"]

    H, NU = ut_t.shape
    NI = it_t.shape[1]
    B = user.shape[0]

    tb = _pick_batch_tile(B) if batch_tile is None else batch_tile
    assert B % tb == 0, "batch must be divisible by batch_tile"
    assert tb == B or tb % 128 == 0, \
        "batch tile must be lane-aligned (x128) or the full batch"

    # Residency cutoff for the VMEM one-hot gather (one-hots + default
    # double-buffered tables + the (H/64/32, tb) intermediates).
    approx_vmem = ((NU + NI) * tb * 4            # one-hot intermediates
                   + 2 * (NU + NI) * H * 4       # resident tables (x2 buffers)
                   + (2 * H + 64 + 32) * tb * 4  # MLP intermediates
                   + 4 * tb * 8)                 # double-buffered id/out tiles
    assert approx_vmem < 24 * 1024 * 1024, (
        "embedding tables too large for the VMEM-resident one-hot gather; "
        "TODO(synk): switch to the DMA row-gather path (tables in pl.ANY + "
        "scalar-prefetched ids) or pre-gather with XLA take outside the kernel")

    # Pack both id vectors into one lane-dense operand -> one DMA per step.
    ids = jnp.stack([user.astype(jnp.int32), item.astype(jnp.int32)], axis=0)  # (2, B)

    const = lambda i: (0, 0)
    grid = (B // tb,)
    kernel = functools.partial(ncf_kernel, mlp_precision=mlp_precision)

    out = pl.pallas_call(
        kernel,
        out_shape=jax.ShapeDtypeStruct((1, B), jnp.float32),
        grid_spec=pltpu.PrefetchScalarGridSpec(
            num_scalar_prefetch=0,
            grid=grid,
            in_specs=[
                pl.BlockSpec((2, tb), lambda i: (0, i)),             # packed ids (lane-dense)
                pl.BlockSpec(ut_t.shape, const),                     # user table^T (resident)
                pl.BlockSpec(it_t.shape, const),                     # item table^T (resident)
                pl.BlockSpec(w1u_t.shape, const),                    # W1[:H]^T
                pl.BlockSpec(w1i_t.shape, const),                    # W1[H:]^T
                pl.BlockSpec(b1c.shape, const),                      # b1
                pl.BlockSpec(w2_t.shape, const),                     # W2^T
                pl.BlockSpec(b2c.shape, const),                      # b2
                pl.BlockSpec(w3c.shape, const),                      # W3 column
                pl.BlockSpec(memory_space=pltpu.MemorySpace.SMEM),   # b3 scalar
            ],
            out_specs=pl.BlockSpec((1, tb), lambda i: (0, i)),
        ),
        compiler_params=pltpu.CompilerParams(
            dimension_semantics=("parallel",)),
    )(ids, ut_t, it_t, w1u_t, w1i_t, b1c, w2_t, b2c, w3c, b3s)
    return out.reshape(B, 1)


def init_params(key, num_users, num_items, hidden_dim):
    """PyTorch-layout parameters (as in the nn.Module)."""
    ks = jax.random.split(key, 8)
    scale = 0.1
    return {
        "user_embedding": scale * jax.random.normal(ks[0], (num_users, hidden_dim), jnp.float32),
        "item_embedding": scale * jax.random.normal(ks[1], (num_items, hidden_dim), jnp.float32),
        "fc1_w": scale * jax.random.normal(ks[2], (hidden_dim * 2, 64), jnp.float32),
        "fc1_b": scale * jax.random.normal(ks[3], (64,), jnp.float32),
        "fc2_w": scale * jax.random.normal(ks[4], (64, 32), jnp.float32),
        "fc2_b": scale * jax.random.normal(ks[5], (32,), jnp.float32),
        "out_w": scale * jax.random.normal(ks[6], (32, 1), jnp.float32),
        "out_b": scale * jax.random.normal(ks[7], (1,), jnp.float32),
    }


def ncf_reference(user, item, params, precision=None):
    """Pure-JAX reference mirroring the PyTorch module (eval mode)."""
    ue = jnp.take(params["user_embedding"], user, axis=0)
    ie = jnp.take(params["item_embedding"], item, axis=0)
    x = jnp.concatenate([ue, ie], axis=-1)
    x = jnp.maximum(jnp.dot(x, params["fc1_w"], precision=precision) + params["fc1_b"], 0.0)
    x = jnp.maximum(jnp.dot(x, params["fc2_w"], precision=precision) + params["fc2_b"], 0.0)
    return jnp.dot(x, params["out_w"], precision=precision) + params["out_b"]


if __name__ == "__main__":
    num_users, num_items, hidden_dim = 100, 200, 32
    batch = 512      # auto tile -> tb=256, 2 "parallel" grid steps

    key = jax.random.PRNGKey(0)
    kp, ku, ki = jax.random.split(key, 3)
    params = init_params(kp, num_users, num_items, hidden_dim)
    kparams = prepare_ncf_params(params)        # one-time kernel-layout params
    user = jax.random.randint(ku, (batch,), 0, num_users, dtype=jnp.int32)
    item = jax.random.randint(ki, (batch,), 0, num_items, dtype=jnp.int32)

    fwd = jax.jit(ncf_forward, static_argnames=("batch_tile", "mlp_precision"))

    # Exact reference (f32 matmul emulation) for both checks below.
    ref_exact = ncf_reference(user, item, params, precision=lax.Precision.HIGHEST)

    # 1) Structural exactness check: exact-precision MLP vs exact reference.
    out_exact = jax.block_until_ready(
        fwd(user, item, kparams, mlp_precision=lax.Precision.HIGHEST))
    assert out_exact.shape == (batch, 1)
    assert jnp.allclose(out_exact, ref_exact, atol=1e-4, rtol=1e-4)

    # 2) Production config: fc1/fc2 at the MXU default (bf16 pass); tolerance
    #    sized for a single bf16 pass through the two small fc layers.
    out = jax.block_until_ready(fwd(user, item, kparams))
    assert out.shape == (batch, 1)
    assert float(jnp.max(jnp.abs(out - ref_exact))) < 2e-3

    print("KERNEL_OK")
</pallas_src>

<mosaic_0001>
module attributes {stable_mosaic.version = 11 : i64} {
  func.func @ncf_kernel(%arg0: i32, %arg1: memref<2x256xi32, #tpu.memory_space<vmem>>, %arg2: memref<32x100xf32, #tpu.memory_space<vmem>>, %arg3: memref<32x200xf32, #tpu.memory_space<vmem>>, %arg4: memref<64x32xf32, #tpu.memory_space<vmem>>, %arg5: memref<64x32xf32, #tpu.memory_space<vmem>>, %arg6: memref<64x1xf32, #tpu.memory_space<vmem>>, %arg7: memref<32x64xf32, #tpu.memory_space<vmem>>, %arg8: memref<32x1xf32, #tpu.memory_space<vmem>>, %arg9: memref<32x1xf32, #tpu.memory_space<vmem>>, %arg10: memref<1x1xf32, #tpu.memory_space<smem>>, %arg11: memref<1x256xf32, #tpu.memory_space<vmem>>) attributes {dimension_semantics = [#tpu.dimension_semantics<parallel>], iteration_bounds = array<i64: 2>, scalar_prefetch = 0 : i64, scratch_operands = 0 : i64, tpu.core_type = #tpu.core_type<tc>, window_params = [{transform_indices = @transform_0, window_bounds = array<i64: 2, 256>}, {pipeline_mode = #tpu.pipeline_mode<synchronous>, transform_indices = @transform_1, window_bounds = array<i64: 32, 100>}, {pipeline_mode = #tpu.pipeline_mode<synchronous>, transform_indices = @transform_2, window_bounds = array<i64: 32, 200>}, {pipeline_mode = #tpu.pipeline_mode<synchronous>, transform_indices = @transform_3, window_bounds = array<i64: 64, 32>}, {pipeline_mode = #tpu.pipeline_mode<synchronous>, transform_indices = @transform_4, window_bounds = array<i64: 64, 32>}, {pipeline_mode = #tpu.pipeline_mode<synchronous>, transform_indices = @transform_5, window_bounds = array<i64: 64, 1>}, {pipeline_mode = #tpu.pipeline_mode<synchronous>, transform_indices = @transform_6, window_bounds = array<i64: 32, 64>}, {pipeline_mode = #tpu.pipeline_mode<synchronous>, transform_indices = @transform_7, window_bounds = array<i64: 32, 1>}, {pipeline_mode = #tpu.pipeline_mode<synchronous>, transform_indices = @transform_8, window_bounds = array<i64: 32, 1>}, {transform_indices = @transform_9, window_bounds = array<i64: 1, 1>}, {transform_indices = @transform_10, window_bounds = array<i64: 1, 256>}]} {
    %c0 = arith.constant 0 : index
    %c0_0 = arith.constant 0 : index
    %0 = vector.load %arg1[%c0, %c0_0] : memref<2x256xi32, #tpu.memory_space<vmem>>, vector<1x256xi32>
    %c1 = arith.constant 1 : index
    %c0_1 = arith.constant 0 : index
    %1 = vector.load %arg1[%c1, %c0_1] : memref<2x256xi32, #tpu.memory_space<vmem>>, vector<1x256xi32>
    %2 = tpu.iota {dimensions = array<i32: 0>} : vector<100x256xi32>
    %3 = vector.broadcast %0 : vector<1x256xi32> to vector<100x256xi32>
    %4 = arith.cmpi eq, %2, %3 : vector<100x256xi32>
    %cst = arith.constant 1.000000e+00 : f32
    %cst_2 = arith.constant 0.000000e+00 : f32
    %5 = vector.broadcast %cst : f32 to vector<100x256xf32>
    %6 = vector.broadcast %cst_2 : f32 to vector<100x256xf32>
    %7 = arith.select %4, %5, %6 : vector<100x256xi1>, vector<100x256xf32>
    %8 = tpu.iota {dimensions = array<i32: 0>} : vector<200x256xi32>
    %9 = vector.broadcast %1 : vector<1x256xi32> to vector<200x256xi32>
    %10 = arith.cmpi eq, %8, %9 : vector<200x256xi32>
    %cst_3 = arith.constant 1.000000e+00 : f32
    %cst_4 = arith.constant 0.000000e+00 : f32
    %11 = vector.broadcast %cst_3 : f32 to vector<200x256xf32>
    %12 = vector.broadcast %cst_4 : f32 to vector<200x256xf32>
    %13 = arith.select %10, %11, %12 : vector<200x256xi1>, vector<200x256xf32>
    %c0_5 = arith.constant 0 : index
    %c0_6 = arith.constant 0 : index
    %14 = vector.load %arg2[%c0_5, %c0_6] : memref<32x100xf32, #tpu.memory_space<vmem>>, vector<32x100xf32>
    %cst_7 = arith.constant dense<0.000000e+00> : vector<32x256xf32>
    %15 = tpu.matmul %14, %7, %cst_7 {dimension_numbers = #tpu.dot_dimension_numbers<[1], [0], [0], [1], [0, 0, 1, 1], [], []>, precision = #tpu.contract_precision<fp32>} : vector<32x100xf32>, vector<100x256xf32>, vector<32x256xf32> -> vector<32x256xf32>
    %c0_8 = arith.constant 0 : index
    %c0_9 = arith.constant 0 : index
    %16 = vector.load %arg3[%c0_8, %c0_9] : memref<32x200xf32, #tpu.memory_space<vmem>>, vector<32x200xf32>
    %cst_10 = arith.constant dense<0.000000e+00> : vector<32x256xf32>
    %17 = tpu.matmul %16, %13, %cst_10 {dimension_numbers = #tpu.dot_dimension_numbers<[1], [0], [0], [1], [0, 0, 1, 1], [], []>, precision = #tpu.contract_precision<fp32>} : vector<32x200xf32>, vector<200x256xf32>, vector<32x256xf32> -> vector<32x256xf32>
    %c0_11 = arith.constant 0 : index
    %c0_12 = arith.constant 0 : index
    %18 = vector.load %arg4[%c0_11, %c0_12] : memref<64x32xf32, #tpu.memory_space<vmem>>, vector<64x32xf32>
    %cst_13 = arith.constant dense<0.000000e+00> : vector<64x256xf32>
    %19 = tpu.matmul %18, %15, %cst_13 {dimension_numbers = #tpu.dot_dimension_numbers<[1], [0], [0], [1], [0, 0, 1, 1], [], []>, precision = #tpu.contract_precision<fp32>} : vector<64x32xf32>, vector<32x256xf32>, vector<64x256xf32> -> vector<64x256xf32>
    %c0_14 = arith.constant 0 : index
    %c0_15 = arith.constant 0 : index
    %20 = vector.load %arg5[%c0_14, %c0_15] : memref<64x32xf32, #tpu.memory_space<vmem>>, vector<64x32xf32>
    %cst_16 = arith.constant dense<0.000000e+00> : vector<64x256xf32>
    %21 = tpu.matmul %20, %17, %cst_16 {dimension_numbers = #tpu.dot_dimension_numbers<[1], [0], [0], [1], [0, 0, 1, 1], [], []>, precision = #tpu.contract_precision<fp32>} : vector<64x32xf32>, vector<32x256xf32>, vector<64x256xf32> -> vector<64x256xf32>
    %22 = arith.addf %19, %21 : vector<64x256xf32>
    %c0_17 = arith.constant 0 : index
    %c0_18 = arith.constant 0 : index
    %23 = vector.load %arg6[%c0_17, %c0_18] : memref<64x1xf32, #tpu.memory_space<vmem>>, vector<64x1xf32>
    %24 = vector.broadcast %23 : vector<64x1xf32> to vector<64x256xf32>
    %25 = arith.addf %22, %24 : vector<64x256xf32>
    %cst_19 = arith.constant 0.000000e+00 : f32
    %26 = vector.broadcast %cst_19 : f32 to vector<64x256xf32>
    %27 = arith.maximumf %25, %26 : vector<64x256xf32>
    %c0_20 = arith.constant 0 : index
    %c0_21 = arith.constant 0 : index
    %28 = vector.load %arg7[%c0_20, %c0_21] : memref<32x64xf32, #tpu.memory_space<vmem>>, vector<32x64xf32>
    %cst_22 = arith.constant dense<0.000000e+00> : vector<32x256xf32>
    %29 = tpu.matmul %28, %27, %cst_22 {dimension_numbers = #tpu.dot_dimension_numbers<[1], [0], [0], [1], [0, 0, 1, 1], [], []>, precision = #tpu.contract_precision<fp32>} : vector<32x64xf32>, vector<64x256xf32>, vector<32x256xf32> -> vector<32x256xf32>
    %c0_23 = arith.constant 0 : index
    %c0_24 = arith.constant 0 : index
    %30 = vector.load %arg8[%c0_23, %c0_24] : memref<32x1xf32, #tpu.memory_space<vmem>>, vector<32x1xf32>
    %31 = vector.broadcast %30 : vector<32x1xf32> to vector<32x256xf32>
    %32 = arith.addf %29, %31 : vector<32x256xf32>
    %cst_25 = arith.constant 0.000000e+00 : f32
    %33 = vector.broadcast %cst_25 : f32 to vector<32x256xf32>
    %34 = arith.maximumf %32, %33 : vector<32x256xf32>
    %c0_26 = arith.constant 0 : index
    %c0_27 = arith.constant 0 : index
    %35 = vector.load %arg9[%c0_26, %c0_27] : memref<32x1xf32, #tpu.memory_space<vmem>>, vector<32x1xf32>
    %36 = vector.broadcast %35 : vector<32x1xf32> to vector<32x256xf32>
    %37 = arith.mulf %34, %36 : vector<32x256xf32>
    %cst_28 = arith.constant dense<0.000000e+00> : vector<256xf32>
    %38 = vector.multi_reduction <add>, %37, %cst_28 [0] : vector<32x256xf32> to vector<256xf32>
    %39 = vector.shape_cast %38 : vector<256xf32> to vector<1x256xf32>
    %c0_29 = arith.constant 0 : index
    %c0_30 = arith.constant 0 : index
    %40 = memref.load %arg10[%c0_29, %c0_30] : memref<1x1xf32, #tpu.memory_space<smem>>
    %41 = vector.broadcast %40 : f32 to vector<1x256xf32>
    %42 = arith.addf %39, %41 : vector<1x256xf32>
    %c0_31 = arith.constant 0 : index
    %c0_32 = arith.constant 0 : index
    %43 = vector.load %arg11[%c0_31, %c0_32] : memref<1x256xf32, #tpu.memory_space<vmem>>, vector<1x256xf32>
    tpu.vector_store %arg11[%c0_31, %c0_32], %42 {strides = array<i32>} : memref<1x256xf32, #tpu.memory_space<vmem>>, vector<1x256xf32>,
    return
  }
  func.func @transform_0(%arg0: i32) -> (i32, i32) {
    %c0_i32 = arith.constant 0 : i32
    %c0_i32_0 = arith.constant 0 : i32
    return %c0_i32, %arg0 : i32, i32
  }
  func.func @transform_1(%arg0: i32) -> (i32, i32) {
    %c0_i32 = arith.constant 0 : i32
    %c0_i32_0 = arith.constant 0 : i32
    %c0_i32_1 = arith.constant 0 : i32
    return %c0_i32, %c0_i32_0 : i32, i32
  }
  func.func @transform_2(%arg0: i32) -> (i32, i32) {
    %c0_i32 = arith.constant 0 : i32
    %c0_i32_0 = arith.constant 0 : i32
    %c0_i32_1 = arith.constant 0 : i32
    return %c0_i32, %c0_i32_0 : i32, i32
  }
  func.func @transform_3(%arg0: i32) -> (i32, i32) {
    %c0_i32 = arith.constant 0 : i32
    %c0_i32_0 = arith.constant 0 : i32
    %c0_i32_1 = arith.constant 0 : i32
    return %c0_i32, %c0_i32_0 : i32, i32
  }
  func.func @transform_4(%arg0: i32) -> (i32, i32) {
    %c0_i32 = arith.constant 0 : i32
    %c0_i32_0 = arith.constant 0 : i32
    %c0_i32_1 = arith.constant 0 : i32
    return %c0_i32, %c0_i32_0 : i32, i32
  }
  func.func @transform_5(%arg0: i32) -> (i32, i32) {
    %c0_i32 = arith.constant 0 : i32
    %c0_i32_0 = arith.constant 0 : i32
    %c0_i32_1 = arith.constant 0 : i32
    return %c0_i32, %c0_i32_0 : i32, i32
  }
  func.func @transform_6(%arg0: i32) -> (i32, i32) {
    %c0_i32 = arith.constant 0 : i32
    %c0_i32_0 = arith.constant 0 : i32
    %c0_i32_1 = arith.constant 0 : i32
    return %c0_i32, %c0_i32_0 : i32, i32
  }
  func.func @transform_7(%arg0: i32) -> (i32, i32) {
    %c0_i32 = arith.constant 0 : i32
    %c0_i32_0 = arith.constant 0 : i32
    %c0_i32_1 = arith.constant 0 : i32
    return %c0_i32, %c0_i32_0 : i32, i32
  }
  func.func @transform_8(%arg0: i32) -> (i32, i32) {
    %c0_i32 = arith.constant 0 : i32
    %c0_i32_0 = arith.constant 0 : i32
    %c0_i32_1 = arith.constant 0 : i32
    return %c0_i32, %c0_i32_0 : i32, i32
  }
  func.func @transform_9(%arg0: i32) -> (i32, i32) {
    %c0_i32 = arith.constant 0 : i32
    %c0_i32_0 = arith.constant 0 : i32
    %c0_i32_1 = arith.constant 0 : i32
    return %c0_i32, %c0_i32_0 : i32, i32
  }
  func.func @transform_10(%arg0: i32) -> (i32, i32) {
    %c0_i32 = arith.constant 0 : i32
    %c0_i32_0 = arith.constant 0 : i32
    return %c0_i32, %arg0 : i32, i32
  }
}

</mosaic_0001>

<llo_original>
// kernel: ncf_forward.1
$region0: #{ncf_forward.1}
  #allocation0 [shape = 'u32[]', space=smem, size = 0x4, offset = 0x4, fixed_abs, tag = 'smem constant byte address 0x4 - core index']
  #allocation1 [shape = 'u32[72,128]{1,0:T(1,128)}', space=vmem, size = 0x9000, scoped, tag = 'internal scratch']
  #allocation2 [shape = 'f32[1,1]{1,0:T(1,128)S(6)}', space=smem, size = 0x200, scoped, tag = 'scoped memory for ncf_forward.1']
  %s0 = inlined_call_operand.vmem [shape: s32[2,512], index: 0, kind: input, shape index: {}]
  %s1 = inlined_call_operand.vmem [shape: f32[32,100], index: 1, kind: input, shape index: {}]
  %s2 = inlined_call_operand.vmem [shape: f32[32,200], index: 2, kind: input, shape index: {}]
  %s3 = inlined_call_operand.vmem [shape: f32[64,32], index: 3, kind: input, shape index: {}]
  %s4 = inlined_call_operand.vmem [shape: f32[64,32], index: 4, kind: input, shape index: {}]
  %s5 = inlined_call_operand.vmem [shape: f32[64,1], index: 5, kind: input, shape index: {}]
  %s6 = inlined_call_operand.vmem [shape: f32[32,64], index: 6, kind: input, shape index: {}]
  %s7 = inlined_call_operand.vmem [shape: f32[32,1], index: 7, kind: input, shape index: {}]
  %s8 = inlined_call_operand.vmem [shape: f32[32,1], index: 8, kind: input, shape index: {}]
  %s9 = inlined_call_operand.<no memory space> [shape: f32[1,1], index: 9, kind: input, shape index: {}]
  %s10 = inlined_call_operand.hbm [shape: f32[1,512], index: 10, kind: output, shape index: {}]
  %s11 = sld [smem:[#allocation0]]
  $region73: #{ncf_forward.1} parent=0
    _
  %s13 = ssub.s32 1, %s11
  %s14 = scalar_select 0, %s13, %s11
  %15 = sst [smem:[#allocation2]] %s9
  $region1: #{ncf_forward.1} parent=0
    #allocation3 [shape = 'u8[2048]{0}', space=vmem, size = 0x800, scoped, tag = 'output window, operand 0']
    #allocation4 [shape = 's32[2]{0}', space=sflag, size = 0x8, scoped, tag = 'scoped memory for ncf_forward.1']
    %16 = vsyncpa [#allocation4], 0
    %s17 = scalar_lea.sflag [#allocation4], 1
    %18 = vsyncpa %s17, 0
    loop: start=0, step=1, limit=4
    $region2: #{ncf_forward.1} parent=1 // loop_pre_header
      _
    $region3: #{ncf_forward.1} parent=1 // loop_header
      %s20 = sphi 0, %s24
      %p21 = scmp.ge.s32.totalorder %s20, 4
      %s30 = sphi 0, %s32
      %s33 = sphi 0, %s30
      %s34 = sphi 0, %s33
      %s50 = sphi 0, %s34
      %s54 = sphi 0, %s54
      %s56 = sphi 0, %s54
      %s57 = sphi 0, %s56
      %s71 = sphi 0, %s57
      %s75 = sphi 0, %s75
      %s77 = sphi 0, %s75
      %s78 = sphi 0, %s77
      %s92 = sphi 0, %s78
      %s96 = sphi 0, %s96
      %s98 = sphi 0, %s96
      %s99 = sphi 0, %s98
      %s113 = sphi 0, %s99
      %s117 = sphi 0, %s117
      %s119 = sphi 0, %s117
      %s120 = sphi 0, %s119
      %s134 = sphi 0, %s120
      %s138 = sphi 0, %s138
      %s140 = sphi 0, %s138
      %s141 = sphi 0, %s140
      %s155 = sphi 0, %s141
      %s159 = sphi 0, %s159
      %s161 = sphi 0, %s159
      %s162 = sphi 0, %s161
      %s176 = sphi 0, %s162
      %s180 = sphi 0, %s180
      %s182 = sphi 0, %s180
      %s183 = sphi 0, %s182
      %s197 = sphi 0, %s183
      %s201 = sphi 0, %s201
      %s203 = sphi 0, %s201
      %s204 = sphi 0, %s203
      %s218 = sphi 0, %s204
      %s222 = sphi 0, %s222
      %s224 = sphi 0, %s222
      %s225 = sphi 0, %s224
      %s239 = sphi 0, %s225
      %s245 = sphi 0, %s247
      %s248 = sphi 0, %s245
      %s249 = sphi 0, %s248
      %s265 = sphi 0, %s249
    $region4: #{ncf_forward.1} parent=1 // loop_header_branch
      %23 = sbr.rel (%p21) target = $region8
    $region5: #{ncf_forward.1} parent=1 // loop_body
      %s25 = ssub.s32 %s20, 1
      %s26 = ssub.s32 %s20, 2
      %s27 = sadd.s32 %s20, 1
      %s28 = ssub.s32 %s20, %s27
      %p29 = scmp.eq.s32.totalorder %s28, 0
      %s31 = sadd.s32 %s30, 1
      %s32 = scalar_select %p29, %s30, %s31
      %p35 = pneg %p29
      %p36 = scmp.eq.s32.totalorder %s20, 1
      %p37 = por %p35, %p36
      %p38 = scmp.ne.s32.totalorder %s30, %s33
      %p39 = scmp.eq.s32.totalorder %s20, 0
      %p40 = por %p38, %p39
      %p41 = scmp.ne.s32.totalorder %s30, %s33
      %p42 = scmp.eq.s32.totalorder %s25, 1
      %p43 = por %p41, %p42
      %p44 = scmp.ne.s32.totalorder %s33, %s34
      %p45 = scmp.eq.s32.totalorder %s25, 0
      %p46 = por %p44, %p45
      %p47 = scmp.ne.s32.totalorder %s33, %s34
      %p48 = scmp.eq.s32.totalorder %s26, 1
      %p49 = por %p47, %p48
      %p51 = scmp.ne.s32.totalorder %s34, %s50
      %p52 = scmp.eq.s32.totalorder %s26, 0
      %p53 = por %p51, %p52
      %s55 = sadd.s32 %s54, 1
      %p58 = scmp.eq.s32.totalorder %s20, 1
      %p59 = scmp.ne.s32.totalorder %s54, %s56
      %p60 = scmp.eq.s32.totalorder %s20, 0
      %p61 = por %p59, %p60
      %p62 = scmp.ne.s32.totalorder %s54, %s56
      %p63 = scmp.eq.s32.totalorder %s25, 1
      %p64 = por %p62, %p63
      %p65 = scmp.ne.s32.totalorder %s56, %s57
      %p66 = scmp.eq.s32.totalorder %s25, 0
      %p67 = por %p65, %p66
      %p68 = scmp.ne.s32.totalorder %s56, %s57
      %p69 = scmp.eq.s32.totalorder %s26, 1
      %p70 = por %p68, %p69
      %p72 = scmp.ne.s32.totalorder %s57, %s71
      %p73 = scmp.eq.s32.totalorder %s26, 0
      %p74 = por %p72, %p73
      %s76 = sadd.s32 %s75, 1
      %p79 = scmp.eq.s32.totalorder %s20, 1
      %p80 = scmp.ne.s32.totalorder %s75, %s77
      %p81 = scmp.eq.s32.totalorder %s20, 0
      %p82 = por %p80, %p81
      %p83 = scmp.ne.s32.totalorder %s75, %s77
      %p84 = scmp.eq.s32.totalorder %s25, 1
      %p85 = por %p83, %p84
      %p86 = scmp.ne.s32.totalorder %s77, %s78
      %p87 = scmp.eq.s32.totalorder %s25, 0
      %p88 = por %p86, %p87
      %p89 = scmp.ne.s32.totalorder %s77, %s78
      %p90 = scmp.eq.s32.totalorder %s26, 1
      %p91 = por %p89, %p90
      %p93 = scmp.ne.s32.totalorder %s78, %s92
      %p94 = scmp.eq.s32.totalorder %s26, 0
      %p95 = por %p93, %p94
      %s97 = sadd.s32 %s96, 1
      %p100 = scmp.eq.s32.totalorder %s20, 1
      %p101 = scmp.ne.s32.totalorder %s96, %s98
      %p102 = scmp.eq.s32.totalorder %s20, 0
      %p103 = por %p101, %p102
      %p104 = scmp.ne.s32.totalorder %s96, %s98
      %p105 = scmp.eq.s32.totalorder %s25, 1
      %p106 = por %p104, %p105
      %p107 = scmp.ne.s32.totalorder %s98, %s99
      %p108 = scmp.eq.s32.totalorder %s25, 0
      %p109 = por %p107, %p108
      %p110 = scmp.ne.s32.totalorder %s98, %s99
      %p111 = scmp.eq.s32.totalorder %s26, 1
      %p112 = por %p110, %p111
      %p114 = scmp.ne.s32.totalorder %s99, %s113
      %p115 = scmp.eq.s32.totalorder %s26, 0
      %p116 = por %p114, %p115
      %s118 = sadd.s32 %s117, 1
      %p121 = scmp.eq.s32.totalorder %s20, 1
      %p122 = scmp.ne.s32.totalorder %s117, %s119
      %p123 = scmp.eq.s32.totalorder %s20, 0
      %p124 = por %p122, %p123
      %p125 = scmp.ne.s32.totalorder %s117, %s119
      %p126 = scmp.eq.s32.totalorder %s25, 1
      %p127 = por %p125, %p126
      %p128 = scmp.ne.s32.totalorder %s119, %s120
      %p129 = scmp.eq.s32.totalorder %s25, 0
      %p130 = por %p128, %p129
      %p131 = scmp.ne.s32.totalorder %s119, %s120
      %p132 = scmp.eq.s32.totalorder %s26, 1
      %p133 = por %p131, %p132
      %p135 = scmp.ne.s32.totalorder %s120, %s134
      %p136 = scmp.eq.s32.totalorder %s26, 0
      %p137 = por %p135, %p136
      %s139 = sadd.s32 %s138, 1
      %p142 = scmp.eq.s32.totalorder %s20, 1
      %p143 = scmp.ne.s32.totalorder %s138, %s140
      %p144 = scmp.eq.s32.totalorder %s20, 0
      %p145 = por %p143, %p144
      %p146 = scmp.ne.s32.totalorder %s138, %s140
      %p147 = scmp.eq.s32.totalorder %s25, 1
      %p148 = por %p146, %p147
      %p149 = scmp.ne.s32.totalorder %s140, %s141
      %p150 = scmp.eq.s32.totalorder %s25, 0
      %p151 = por %p149, %p150
      %p152 = scmp.ne.s32.totalorder %s140, %s141
      %p153 = scmp.eq.s32.totalorder %s26, 1
      %p154 = por %p152, %p153
      %p156 = scmp.ne.s32.totalorder %s141, %s155
      %p157 = scmp.eq.s32.totalorder %s26, 0
      %p158 = por %p156, %p157
      %s160 = sadd.s32 %s159, 1
      %p163 = scmp.eq.s32.totalorder %s20, 1
      %p164 = scmp.ne.s32.totalorder %s159, %s161
      %p165 = scmp.eq.s32.totalorder %s20, 0
      %p166 = por %p164, %p165
      %p167 = scmp.ne.s32.totalorder %s159, %s161
      %p168 = scmp.eq.s32.totalorder %s25, 1
      %p169 = por %p167, %p168
      %p170 = scmp.ne.s32.totalorder %s161, %s162
      %p171 = scmp.eq.s32.totalorder %s25, 0
      %p172 = por %p170, %p171
      %p173 = scmp.ne.s32.totalorder %s161, %s162
      %p174 = scmp.eq.s32.totalorder %s26, 1
      %p175 = por %p173, %p174
      %p177 = scmp.ne.s32.totalorder %s162, %s176
      %p178 = scmp.eq.s32.totalorder %s26, 0
      %p179 = por %p177, %p178
      %s181 = sadd.s32 %s180, 1
      %p184 = scmp.eq.s32.totalorder %s20, 1
      %p185 = scmp.ne.s32.totalorder %s180, %s182
      %p186 = scmp.eq.s32.totalorder %s20, 0
      %p187 = por %p185, %p186
      %p188 = scmp.ne.s32.totalorder %s180, %s182
      %p189 = scmp.eq.s32.totalorder %s25, 1
      %p190 = por %p188, %p189
      %p191 = scmp.ne.s32.totalorder %s182, %s183
      %p192 = scmp.eq.s32.totalorder %s25, 0
      %p193 = por %p191, %p192
      %p194 = scmp.ne.s32.totalorder %s182, %s183
      %p195 = scmp.eq.s32.totalorder %s26, 1
      %p196 = por %p194, %p195
      %p198 = scmp.ne.s32.totalorder %s183, %s197
      %p199 = scmp.eq.s32.totalorder %s26, 0
      %p200 = por %p198, %p199
      %s202 = sadd.s32 %s201, 1
      %p205 = scmp.eq.s32.totalorder %s20, 1
      %p206 = scmp.ne.s32.totalorder %s201, %s203
      %p207 = scmp.eq.s32.totalorder %s20, 0
      %p208 = por %p206, %p207
      %p209 = scmp.ne.s32.totalorder %s201, %s203
      %p210 = scmp.eq.s32.totalorder %s25, 1
      %p211 = por %p209, %p210
      %p212 = scmp.ne.s32.totalorder %s203, %s204
      %p213 = scmp.eq.s32.totalorder %s25, 0
      %p214 = por %p212, %p213
      %p215 = scmp.ne.s32.totalorder %s203, %s204
      %p216 = scmp.eq.s32.totalorder %s26, 1
      %p217 = por %p215, %p216
      %p219 = scmp.ne.s32.totalorder %s204, %s218
      %p220 = scmp.eq.s32.totalorder %s26, 0
      %p221 = por %p219, %p220
      %s223 = sadd.s32 %s222, 1
      %p226 = scmp.eq.s32.totalorder %s20, 1
      %p227 = scmp.ne.s32.totalorder %s222, %s224
      %p228 = scmp.eq.s32.totalorder %s20, 0
      %p229 = por %p227, %p228
      %p230 = scmp.ne.s32.totalorder %s222, %s224
      %p231 = scmp.eq.s32.totalorder %s25, 1
      %p232 = por %p230, %p231
      %p233 = scmp.ne.s32.totalorder %s224, %s225
      %p234 = scmp.eq.s32.totalorder %s25, 0
      %p235 = por %p233, %p234
      %p236 = scmp.ne.s32.totalorder %s224, %s225
      %p237 = scmp.eq.s32.totalorder %s26, 1
      %p238 = por %p236, %p237
      %p240 = scmp.ne.s32.totalorder %s225, %s239
      %p241 = scmp.eq.s32.totalorder %s26, 0
      %p242 = por %p240, %p241
      %s243 = ssub.s32 %s20, %s27
      %p244 = scmp.eq.s32.totalorder %s243, 0
      %s246 = sadd.s32 %s245, 1
      %s247 = scalar_select %p244, %s245, %s246
      %p250 = pneg %p244
      %p251 = scmp.eq.s32.totalorder %s20, 1
      %p252 = por %p250, %p251
      %p253 = scmp.ne.s32.totalorder %s245, %s248
      %p254 = scmp.eq.s32.totalorder %s20, 0
      %p255 = por %p253, %p254
      %p256 = scmp.ne.s32.totalorder %s245, %s248
      %p257 = scmp.eq.s32.totalorder %s25, 1
      %p258 = por %p256, %p257
      %p259 = scmp.ne.s32.totalorder %s248, %s249
      %p260 = scmp.eq.s32.totalorder %s25, 0
      %p261 = por %p259, %p260
      %p262 = scmp.ne.s32.totalorder %s248, %s249
      %p263 = scmp.eq.s32.totalorder %s26, 1
      %p264 = por %p262, %p263
      %p266 = scmp.ne.s32.totalorder %s249, %s265
      %p267 = scmp.eq.s32.totalorder %s26, 0
      %p268 = por %p266, %p267
      %p269 = scmp.le.s32.totalorder 1, %s20
      %p270 = scmp.lt.s32.totalorder %s20, 3
      %p271 = pnand %p269, %p270
      %p272 = pneg %p271
      // Predicated region
      $region9: #{ncf_forward.1} parent=5 // pred_check
        _
      $region10: #{ncf_forward.1} parent=5 // pred_check_branch
        %274 = sbr.rel (%p271) target = $region12
      $region11: #{ncf_forward.1} parent=5 // pred_region
        %s275 = ssub.s32 %s20, 1
        // Predicated region
        $region13: #{ncf_forward.1} parent=11 // pred_check
          %p276 = pneg %p67
        $region14: #{ncf_forward.1} parent=11 // pred_check_branch
          %278 = sbr.rel (%p276) target = $region16
        $region15: #{ncf_forward.1} parent=11 // pred_region
          _
        $region16: #{ncf_forward.1} parent=11 // pred_fallthru
          _
        // Predicated region
        $region17: #{ncf_forward.1} parent=11 // pred_check
          %p279 = pneg %p88
        $region18: #{ncf_forward.1} parent=11 // pred_check_branch
          %281 = sbr.rel (%p279) target = $region20
        $region19: #{ncf_forward.1} parent=11 // pred_region
          _
        $region20: #{ncf_forward.1} parent=11 // pred_fallthru
          _
        // Predicated region
        $region21: #{ncf_forward.1} parent=11 // pred_check
          %p282 = pneg %p109
        $region22: #{ncf_forward.1} parent=11 // pred_check_branch
          %284 = sbr.rel (%p282) target = $region24
        $region23: #{ncf_forward.1} parent=11 // pred_region
          _
        $region24: #{ncf_forward.1} parent=11 // pred_fallthru
          _
        // Predicated region
        $region25: #{ncf_forward.1} parent=11 // pred_check
          %p285 = pneg %p130
        $region26: #{ncf_forward.1} parent=11 // pred_check_branch
          %287 = sbr.rel (%p285) target = $region28
        $region27: #{ncf_forward.1} parent=11 // pred_region
          _
        $region28: #{ncf_forward.1} parent=11 // pred_fallthru
          _
        // Predicated region
        $region29: #{ncf_forward.1} parent=11 // pred_check
          %p288 = pneg %p151
        $region30: #{ncf_forward.1} parent=11 // pred_check_branch
          %290 = sbr.rel (%p288) target = $region32
        $region31: #{ncf_forward.1} parent=11 // pred_region
          _
        $region32: #{ncf_forward.1} parent=11 // pred_fallthru
          _
        // Predicated region
        $region33: #{ncf_forward.1} parent=11 // pred_check
          %p291 = pneg %p172
        $region34: #{ncf_forward.1} parent=11 // pred_check_branch
          %293 = sbr.rel (%p291) target = $region36
        $region35: #{ncf_forward.1} parent=11 // pred_region
          _
        $region36: #{ncf_forward.1} parent=11 // pred_fallthru
          _
        // Predicated region
        $region37: #{ncf_forward.1} parent=11 // pred_check
          %p294 = pneg %p193
        $region38: #{ncf_forward.1} parent=11 // pred_check_branch
          %296 = sbr.rel (%p294) target = $region40
        $region39: #{ncf_forward.1} parent=11 // pred_region
          _
        $region40: #{ncf_forward.1} parent=11 // pred_fallthru
          _
        // Predicated region
        $region41: #{ncf_forward.1} parent=11 // pred_check
          %p297 = pneg %p214
        $region42: #{ncf_forward.1} parent=11 // pred_check_branch
          %299 = sbr.rel (%p297) target = $region44
        $region43: #{ncf_forward.1} parent=11 // pred_region
          _
        $region44: #{ncf_forward.1} parent=11 // pred_fallthru
          _
        // Predicated region
        $region45: #{ncf_forward.1} parent=11 // pred_check
          %p300 = pneg %p235
        $region46: #{ncf_forward.1} parent=11 // pred_check_branch
          %302 = sbr.rel (%p300) target = $region48
        $region47: #{ncf_forward.1} parent=11 // pred_region
          _
        $region48: #{ncf_forward.1} parent=11 // pred_fallthru
          _
      $region12: #{ncf_forward.1} parent=5 // pred_fallthru
        _
      %p303 = scmp.lt.s32.totalorder %s20, 2
      // Predicated region
      $region49: #{ncf_forward.1} parent=5 // pred_check
        %p304 = pneg %p303
      $region50: #{ncf_forward.1} parent=5 // pred_check_branch
        %306 = sbr.rel (%p304) target = $region52
      $region51: #{ncf_forward.1} parent=5 // pred_region
        // Predicated region
        $region53: #{ncf_forward.1} parent=51 // pred_check
          %p307 = pneg %p40
        $region54: #{ncf_forward.1} parent=51 // pred_check_branch
          %309 = sbr.rel (%p307) target = $region56
        $region55: #{ncf_forward.1} parent=51 // pred_region
          %s310 = smul.u32 2, %s20
          %p311 = scmp.lt.s32.totalorder %s310, 3
          %s312 = scalar_select %p311, %s310, 3
          %s313 = smul.addr %s312, 2
          %s314 = scalar_lea.vmem %s0, %s313
          %s315 = smul.u32 2, %s20
        $region56: #{ncf_forward.1} parent=51 // pred_fallthru
          _
      $region52: #{ncf_forward.1} parent=5 // pred_fallthru
        _
      %p316 = scmp.le.s32.totalorder 1, %s20
      %p317 = scmp.lt.s32.totalorder %s20, 3
      %p318 = pnand %p316, %p317
      %p319 = pneg %p318
      // Predicated region
      $region57: #{ncf_forward.1} parent=5 // pred_check
        _
      $region58: #{ncf_forward.1} parent=5 // pred_check_branch
        %321 = sbr.rel (%p318) target = $region60
      $region59: #{ncf_forward.1} parent=5 // pred_region
        %s322 = ssub.s32 %s20, 1
        %s323 = smul.u32 2, %s25
        %p324 = scmp.lt.s32.totalorder %s323, 3
        %s325 = scalar_select %p324, %s323, 3
        %s326 = smul.addr %s325, 2
        %s327 = scalar_lea.vmem %s0, %s326
        %p328 = pneg %p46
        %p329 = pneg %p43
        %p330 = pneg %p67
        %p331 = pneg %p64
        %p332 = pneg %p88
        %p333 = pneg %p85
        %p334 = pneg %p109
        %p335 = pneg %p106
        %p336 = pneg %p130
        %p337 = pneg %p127
        %p338 = pneg %p151
        %p339 = pneg %p148
        %p340 = pneg %p172
        %p341 = pneg %p169
        %p342 = pneg %p193
        %p343 = pneg %p190
        %p344 = pneg %p214
        %p345 = pneg %p211
        %p346 = pneg %p235
        %p347 = pneg %p232
        %p348 = pneg %p261
        %p349 = pneg %p258
        %s350 = sand.u32 %s248, 1
        %s351 = scalar_lea.sflag [#allocation4], %s350
        %s352 = sand.u32 %s248, 1
        %s353 = smul.addr %s352, 2
        %s354 = scalar_lea.vmem [#allocation3], %s353
        %s355 = smul.u32 2, %s25
        %p356 = scmp.lt.s32.totalorder %s355, 3
        %s357 = scalar_select %p356, %s355, 3
        %s358 = smul.addr %s357, 2
        %s359 = scalar_lea.vmem %s0, %s358
        %s360 = smul.u32 2, %s25
        %s361 = smul.u32 2, %s25
        %v362 = vld [vmem:[%s359] ss:$2 sm:$0x3]
        %s363 = scalar_lea.vmem %s359, 1
        %v364 = vld [vmem:[%s363] ss:$2 sm:$0x3]
        %v365 = vlaneseq
        %v366 = vshrl.u32 %v365, 7
        %v367 = vadd.s32 %v366, 8
        %v368 = vadd.s32 %v366, 16
        %v369 = vadd.s32 %v366, 24
        %v370 = vadd.s32 %v366, 32
        %v371 = vadd.s32 %v366, 40
        %v372 = vadd.s32 %v366, 48
        %v373 = vadd.s32 %v366, 56
        %v374 = vadd.s32 %v366, 64
        %v375 = vadd.s32 %v366, 72
        %v376 = vadd.s32 %v366, 80
        %v377 = vadd.s32 %v366, 88
        %v378 = vadd.s32 %v366, 96
        %v379 = vperm.slane %v362, 0
        %v380 = vperm.slane %v362, 1
        %vm381 = vcmp.eq.s32.totalorder %v366, %v379
        %vm382 = vcmp.eq.s32.totalorder %v366, %v380
        %vm383 = vcmp.eq.s32.totalorder %v367, %v379
        %vm384 = vcmp.eq.s32.totalorder %v367, %v380
        %vm385 = vcmp.eq.s32.totalorder %v368, %v379
        %vm386 = vcmp.eq.s32.totalorder %v368, %v380
        %vm387 = vcmp.eq.s32.totalorder %v369, %v379
        %vm388 = vcmp.eq.s32.totalorder %v369, %v380
        %vm389 = vcmp.eq.s32.totalorder %v370, %v379
        %vm390 = vcmp.eq.s32.totalorder %v370, %v380
        %vm391 = vcmp.eq.s32.totalorder %v371, %v379
        %vm392 = vcmp.eq.s32.totalorder %v371, %v380
        %vm393 = vcmp.eq.s32.totalorder %v372, %v379
        %vm394 = vcmp.eq.s32.totalorder %v372, %v380
        %vm395 = vcmp.eq.s32.totalorder %v373, %v379
        %vm396 = vcmp.eq.s32.totalorder %v373, %v380
        %vm397 = vcmp.eq.s32.totalorder %v374, %v379
        %vm398 = vcmp.eq.s32.totalorder %v374, %v380
        %vm399 = vcmp.eq.s32.totalorder %v375, %v379
        %vm400 = vcmp.eq.s32.totalorder %v375, %v380
        %vm401 = vcmp.eq.s32.totalorder %v376, %v379
        %vm402 = vcmp.eq.s32.totalorder %v376, %v380
        %vm403 = vcmp.eq.s32.totalorder %v377, %v379
        %vm404 = vcmp.eq.s32.totalorder %v377, %v380
        %vm405 = vcmp.eq.s32.totalorder %v378, %v379
        %vm406 = vcmp.eq.s32.totalorder %v378, %v380
        %v407 = vsel %vm381, 1.0, 0.0
        %v408 = vsel %vm382, 1.0, 0.0
        %v409 = vsel %vm383, 1.0, 0.0
        %v410 = vsel %vm384, 1.0, 0.0
        %v411 = vsel %vm385, 1.0, 0.0
        %v412 = vsel %vm386, 1.0, 0.0
        %v413 = vsel %vm387, 1.0, 0.0
        %v414 = vsel %vm388, 1.0, 0.0
        %v415 = vsel %vm389, 1.0, 0.0
        %v416 = vsel %vm390, 1.0, 0.0
        %v417 = vsel %vm391, 1.0, 0.0
        %v418 = vsel %vm392, 1.0, 0.0
        %v419 = vsel %vm393, 1.0, 0.0
        %v420 = vsel %vm394, 1.0, 0.0
        %v421 = vsel %vm395, 1.0, 0.0
        %v422 = vsel %vm396, 1.0, 0.0
        %v423 = vsel %vm397, 1.0, 0.0
        %v424 = vsel %vm398, 1.0, 0.0
        %v425 = vsel %vm399, 1.0, 0.0
        %v426 = vsel %vm400, 1.0, 0.0
        %v427 = vsel %vm401, 1.0, 0.0
        %v428 = vsel %vm402, 1.0, 0.0
        %v429 = vsel %vm403, 1.0, 0.0
        %v430 = vsel %vm404, 1.0, 0.0
        %v431 = vsel %vm405, 1.0, 0.0
        %v432 = vsel %vm406, 1.0, 0.0
        %v433 = vadd.s32 %v366, 104
        %v434 = vadd.s32 %v366, 112
        %v435 = vadd.s32 %v366, 120
        %v436 = vadd.s32 %v366, 128
        %v437 = vadd.s32 %v366, 136
        %v438 = vadd.s32 %v366, 144
        %v439 = vadd.s32 %v366, 152
        %v440 = vadd.s32 %v366, 160
        %v441 = vadd.s32 %v366, 168
        %v442 = vadd.s32 %v366, 176
        %v443 = vadd.s32 %v366, 184
        %v444 = vadd.s32 %v366, 192
        %v445 = vperm.slane %v364, 0
        %v446 = vperm.slane %v364, 1
        %vm447 = vcmp.eq.s32.totalorder %v366, %v445
        %vm448 = vcmp.eq.s32.totalorder %v366, %v446
        %vm449 = vcmp.eq.s32.totalorder %v367, %v445
        %vm450 = vcmp.eq.s32.totalorder %v367, %v446
        %vm451 = vcmp.eq.s32.totalorder %v368, %v445
        %vm452 = vcmp.eq.s32.totalorder %v368, %v446
        %vm453 = vcmp.eq.s32.totalorder %v369, %v445
        %vm454 = vcmp.eq.s32.totalorder %v369, %v446
        %vm455 = vcmp.eq.s32.totalorder %v370, %v445
        %vm456 = vcmp.eq.s32.totalorder %v370, %v446
        %vm457 = vcmp.eq.s32.totalorder %v371, %v445
        %vm458 = vcmp.eq.s32.totalorder %v371, %v446
        %vm459 = vcmp.eq.s32.totalorder %v372, %v445
        %vm460 = vcmp.eq.s32.totalorder %v372, %v446
        %vm461 = vcmp.eq.s32.totalorder %v373, %v445
        %vm462 = vcmp.eq.s32.totalorder %v373, %v446
        %vm463 = vcmp.eq.s32.totalorder %v374, %v445
        %vm464 = vcmp.eq.s32.totalorder %v374, %v446
        %vm465 = vcmp.eq.s32.totalorder %v375, %v445
        %vm466 = vcmp.eq.s32.totalorder %v375, %v446
        %vm467 = vcmp.eq.s32.totalorder %v376, %v445
        %vm468 = vcmp.eq.s32.totalorder %v376, %v446
        %vm469 = vcmp.eq.s32.totalorder %v377, %v445
        %vm470 = vcmp.eq.s32.totalorder %v377, %v446
        %vm471 = vcmp.eq.s32.totalorder %v378, %v445
        %vm472 = vcmp.eq.s32.totalorder %v378, %v446
        %vm473 = vcmp.eq.s32.totalorder %v433, %v445
        %vm474 = vcmp.eq.s32.totalorder %v433, %v446
        %vm475 = vcmp.eq.s32.totalorder %v434, %v445
        %vm476 = vcmp.eq.s32.totalorder %v434, %v446
        %vm477 = vcmp.eq.s32.totalorder %v435, %v445
        %vm478 = vcmp.eq.s32.totalorder %v435, %v446
        %vm479 = vcmp.eq.s32.totalorder %v436, %v445
        %vm480 = vcmp.eq.s32.totalorder %v436, %v446
        %vm481 = vcmp.eq.s32.totalorder %v437, %v445
        %vm482 = vcmp.eq.s32.totalorder %v437, %v446
        %vm483 = vcmp.eq.s32.totalorder %v438, %v445
        %vm484 = vcmp.eq.s32.totalorder %v438, %v446
        %vm485 = vcmp.eq.s32.totalorder %v439, %v445
        %vm486 = vcmp.eq.s32.totalorder %v439, %v446
        %vm487 = vcmp.eq.s32.totalorder %v440, %v445
        %vm488 = vcmp.eq.s32.totalorder %v440, %v446
        %vm489 = vcmp.eq.s32.totalorder %v441, %v445
        %vm490 = vcmp.eq.s32.totalorder %v441, %v446
        %vm491 = vcmp.eq.s32.totalorder %v442, %v445
        %vm492 = vcmp.eq.s32.totalorder %v442, %v446
        %vm493 = vcmp.eq.s32.totalorder %v443, %v445
        %vm494 = vcmp.eq.s32.totalorder %v443, %v446
        %vm495 = vcmp.eq.s32.totalorder %v444, %v445
        %vm496 = vcmp.eq.s32.totalorder %v444, %v446
        %v497 = vsel %vm447, 1.0, 0.0
        %v498 = vsel %vm448, 1.0, 0.0
        %v499 = vsel %vm449, 1.0, 0.0
        %v500 = vsel %vm450, 1.0, 0.0
        %v501 = vsel %vm451, 1.0, 0.0
        %v502 = vsel %vm452, 1.0, 0.0
        %v503 = vsel %vm453, 1.0, 0.0
        %v504 = vsel %vm454, 1.0, 0.0
        %v505 = vsel %vm455, 1.0, 0.0
        %v506 = vsel %vm456, 1.0, 0.0
        %v507 = vsel %vm457, 1.0, 0.0
        %v508 = vsel %vm458, 1.0, 0.0
        %v509 = vsel %vm459, 1.0, 0.0
        %v510 = vsel %vm460, 1.0, 0.0
        %v511 = vsel %vm461, 1.0, 0.0
        %v512 = vsel %vm462, 1.0, 0.0
        %v513 = vsel %vm463, 1.0, 0.0
        %v514 = vsel %vm464, 1.0, 0.0
        %v515 = vsel %vm465, 1.0, 0.0
        %v516 = vsel %vm466, 1.0, 0.0
        %v517 = vsel %vm467, 1.0, 0.0
        %v518 = vsel %vm468, 1.0, 0.0
        %v519 = vsel %vm469, 1.0, 0.0
        %v520 = vsel %vm470, 1.0, 0.0
        %v521 = vsel %vm471, 1.0, 0.0
        %v522 = vsel %vm472, 1.0, 0.0
        %v523 = vsel %vm473, 1.0, 0.0
        %v524 = vsel %vm474, 1.0, 0.0
        %v525 = vsel %vm475, 1.0, 0.0
        %v526 = vsel %vm476, 1.0, 0.0
        %v527 = vsel %vm477, 1.0, 0.0
        %v528 = vsel %vm478, 1.0, 0.0
        %v529 = vsel %vm479, 1.0, 0.0
        %v530 = vsel %vm480, 1.0, 0.0
        %v531 = vsel %vm481, 1.0, 0.0
        %v532 = vsel %vm482, 1.0, 0.0
        %v533 = vsel %vm483, 1.0, 0.0
        %v534 = vsel %vm484, 1.0, 0.0
        %v535 = vsel %vm485, 1.0, 0.0
        %v536 = vsel %vm486, 1.0, 0.0
        %v537 = vsel %vm487, 1.0, 0.0
        %v538 = vsel %vm488, 1.0, 0.0
        %v539 = vsel %vm489, 1.0, 0.0
        %v540 = vsel %vm490, 1.0, 0.0
        %v541 = vsel %vm491, 1.0, 0.0
        %v542 = vsel %vm492, 1.0, 0.0
        %v543 = vsel %vm493, 1.0, 0.0
        %v544 = vsel %vm494, 1.0, 0.0
        %v545 = vsel %vm495, 1.0, 0.0
        %v546 = vsel %vm496, 1.0, 0.0
        %v547 = vld [vmem:[%s1] sm:$0xff]
        %v548 = vld [vmem:[%s1 + $0x8] sm:$0xff]
        %v549 = vld [vmem:[%s1 + $0x10] sm:$0xff]
        %v550 = vld [vmem:[%s1 + $0x18] sm:$0xff]
        %vm551 = vcmask 818176
        %v553 = vsel %vm551, %v547, 0
        %v556 = vsel %vm551, %v548, 0
        %v559 = vsel %vm551, %v549, 0
        %v562 = vsel %vm551, %v550, 0
        %vm564 = vcmask 1043456
        %v566 = vsel %vm564, %v431, 0
        %v569 = vsel %vm564, %v432, 0
        %571 = vmatpush.msra.mxu0 0.0
        %572 = vmatpush.msra.mxu0 0.0
        %573 = vmatpush.msra.mxu0 0.0
        %v574 = vand.u32 %v566, 4294901760
        %575 = vmatpush.msra.mxu0 %v574
        %576 = vmatpush.msra.mxu0 %v429
        %577 = vmatpush.msra.mxu0 %v427
        %578 = vmatpush.msra.mxu0 %v425
        %579 = vmatpush.msra.mxu0 %v423
        %580 = vmatpush.msra.mxu0 %v421
        %581 = vmatpush.msra.mxu0 %v419
        %582 = vmatpush.msra.mxu0 %v417
        %583 = vmatpush.msra.mxu0 %v415
        %584 = vmatpush.msra.mxu0 %v413
        %585 = vmatpush.msra.mxu0 %v411
        %586 = vmatpush.msra.mxu0 %v409
        %587 = vmatpush.msra.mxu0 %v407
        %v588 = vand.u32 %v553, 4294901760
        %v589 = vsub.f32 %v553, %v588
        %v590 = vand.u32 %v589, 4294901760
        %v591 = vsub.f32 %v589, %v590
        %v592 = vand.u32 %v591, 4294901760
        %593 = vmatmul.f32.gmra.mxu0 %v592
        %v594 = vpop.f32.mrf.mxu0
        %v595 = vadd.f32 0.0, %v594
        %v596 = vand.u32 %v556, 4294901760
        %v597 = vsub.f32 %v556, %v596
        %v598 = vand.u32 %v597, 4294901760
        %v599 = vsub.f32 %v597, %v598
        %v600 = vand.u32 %v599, 4294901760
        %601 = vmatmul.f32.gmra.mxu0 %v600
        %v602 = vpop.f32.mrf.mxu0
        %v603 = vadd.f32 0.0, %v602
        %v604 = vand.u32 %v559, 4294901760
        %v605 = vsub.f32 %v559, %v604
        %v606 = vand.u32 %v605, 4294901760
        %v607 = vsub.f32 %v605, %v606
        %v608 = vand.u32 %v607, 4294901760
        %609 = vmatmul.f32.gmra.mxu0 %v608
        %v610 = vpop.f32.mrf.mxu0
        %v611 = vadd.f32 0.0, %v610
        %v612 = vand.u32 %v562, 4294901760
        %v613 = vsub.f32 %v562, %v612
        %v614 = vand.u32 %v613, 4294901760
        %v615 = vsub.f32 %v613, %v614
        %v616 = vand.u32 %v615, 4294901760
        %617 = vmatmul.f32.gmra.mxu0 %v616
        %v618 = vpop.f32.mrf.mxu0
        %v619 = vadd.f32 0.0, %v618
        %620 = vdwg.mxu0
        %621 = vmatpush.msra.mxu0 0.0
        %622 = vmatpush.msra.mxu0 0.0
        %623 = vmatpush.msra.mxu0 0.0
        %v624 = vand.u32 %v566, 4294901760
        %v625 = vsub.f32 %v566, %v624
        %v626 = vand.u32 %v625, 4294901760
        %v627 = vsub.f32 %v625, %v626
        %v628 = vand.u32 %v627, 4294901760
        %629 = vmatpush.msra.mxu0 %v628
        %v630 = vsub.f32 %v429, %v429
        %v631 = vand.u32 %v630, 4294901760
        %v632 = vsub.f32 %v630, %v631
        %v633 = vand.u32 %v632, 4294901760
        %634 = vmatpush.msra.mxu0 %v633
        %v635 = vsub.f32 %v427, %v427
        %v636 = vand.u32 %v635, 4294901760
        %v637 = vsub.f32 %v635, %v636
        %v638 = vand.u32 %v637, 4294901760
        %639 = vmatpush.msra.mxu0 %v638
        %v640 = vsub.f32 %v425, %v425
        %v641 = vand.u32 %v640, 4294901760
        %v642 = vsub.f32 %v640, %v641
        %v643 = vand.u32 %v642, 4294901760
        %644 = vmatpush.msra.mxu0 %v643
        %v645 = vsub.f32 %v423, %v423
        %v646 = vand.u32 %v645, 4294901760
        %v647 = vsub.f32 %v645, %v646
        %v648 = vand.u32 %v647, 4294901760
        %649 = vmatpush.msra.mxu0 %v648
        %v650 = vsub.f32 %v421, %v421
        %v651 = vand.u32 %v650, 4294901760
        %v652 = vsub.f32 %v650, %v651
        %v653 = vand.u32 %v652, 4294901760
        %654 = vmatpush.msra.mxu0 %v653
        %v655 = vsub.f32 %v419, %v419
        %v656 = vand.u32 %v655, 4294901760
        %v657 = vsub.f32 %v655, %v656
        %v658 = vand.u32 %v657, 4294901760
        %659 = vmatpush.msra.mxu0 %v658
        %v660 = vsub.f32 %v417, %v417
        %v661 = vand.u32 %v660, 4294901760
        %v662 = vsub.f32 %v660, %v661
        %v663 = vand.u32 %v662, 4294901760
        %664 = vmatpush.msra.mxu0 %v663
        %v665 = vsub.f32 %v415, %v415
        %v666 = vand.u32 %v665, 4294901760
        %v667 = vsub.f32 %v665, %v666
        %v668 = vand.u32 %v667, 4294901760
        %669 = vmatpush.msra.mxu0 %v668
        %v670 = vsub.f32 %v413, %v413
        %v671 = vand.u32 %v670, 4294901760
        %v672 = vsub.f32 %v670, %v671
        %v673 = vand.u32 %v672, 4294901760
        %674 = vmatpush.msra.mxu0 %v673
        %v675 = vsub.f32 %v411, %v411
        %v676 = vand.u32 %v675, 4294901760
        %v677 = vsub.f32 %v675, %v676
        %v678 = vand.u32 %v677, 4294901760
        %679 = vmatpush.msra.mxu0 %v678
        %v680 = vsub.f32 %v409, %v409
        %v681 = vand.u32 %v680, 4294901760
        %v682 = vsub.f32 %v680, %v681
        %v683 = vand.u32 %v682, 4294901760
        %684 = vmatpush.msra.mxu0 %v683
        %v685 = vsub.f32 %v407, %v407
        %v686 = vand.u32 %v685, 4294901760
        %v687 = vsub.f32 %v685, %v686
        %v688 = vand.u32 %v687, 4294901760
        %689 = vmatpush.msra.mxu0 %v688
        %v690 = vand.u32 %v553, 4294901760
        %691 = vmatmul.f32.gmra.mxu0 %v690
        %v692 = vpop.f32.mrf.mxu0
        %v693 = vadd.f32 %v595, %v692
        %v694 = vand.u32 %v556, 4294901760
        %695 = vmatmul.f32.gmra.mxu0 %v694
        %v696 = vpop.f32.mrf.mxu0
        %v697 = vadd.f32 %v603, %v696
        %v698 = vand.u32 %v559, 4294901760
        %699 = vmatmul.f32.gmra.mxu0 %v698
        %v700 = vpop.f32.mrf.mxu0
        %v701 = vadd.f32 %v611, %v700
        %v702 = vand.u32 %v562, 4294901760
        %703 = vmatmul.f32.gmra.mxu0 %v702
        %v704 = vpop.f32.mrf.mxu0
        %v705 = vadd.f32 %v619, %v704
        %706 = vdwg.mxu0
        %707 = vmatpush.msra.mxu0 0.0
        %708 = vmatpush.msra.mxu0 0.0
        %709 = vmatpush.msra.mxu0 0.0
        %v710 = vand.u32 %v566, 4294901760
        %v711 = vsub.f32 %v566, %v710
        %712 = vmatpush.msra.mxu0 %v711
        %v713 = vsub.f32 %v429, %v429
        %714 = vmatpush.msra.mxu0 %v713
        %v715 = vsub.f32 %v427, %v427
        %716 = vmatpush.msra.mxu0 %v715
        %v717 = vsub.f32 %v425, %v425
        %718 = vmatpush.msra.mxu0 %v717
        %v719 = vsub.f32 %v423, %v423
        %720 = vmatpush.msra.mxu0 %v719
        %v721 = vsub.f32 %v421, %v421
        %722 = vmatpush.msra.mxu0 %v721
        %v723 = vsub.f32 %v419, %v419
        %724 = vmatpush.msra.mxu0 %v723
        %v725 = vsub.f32 %v417, %v417
        %726 = vmatpush.msra.mxu0 %v725
        %v727 = vsub.f32 %v415, %v415
        %728 = vmatpush.msra.mxu0 %v727
        %v729 = vsub.f32 %v413, %v413
        %730 = vmatpush.msra.mxu0 %v729
        %v731 = vsub.f32 %v411, %v411
        %732 = vmatpush.msra.mxu0 %v731
        %v733 = vsub.f32 %v409, %v409
        %734 = vmatpush.msra.mxu0 %v733
        %v735 = vsub.f32 %v407, %v407
        %736 = vmatpush.msra.mxu0 %v735
        %v737 = vand.u32 %v553, 4294901760
        %v738 = vsub.f32 %v553, %v737
        %739 = vmatmul.f32.gmra.mxu0 %v738
        %v740 = vpop.f32.mrf.mxu0
        %v741 = vadd.f32 %v693, %v740
        %v742 = vand.u32 %v556, 4294901760
        %v743 = vsub.f32 %v556, %v742
        %744 = vmatmul.f32.gmra.mxu0 %v743
        %v745 = vpop.f32.mrf.mxu0
        %v746 = vadd.f32 %v697, %v745
        %v747 = vand.u32 %v559, 4294901760
        %v748 = vsub.f32 %v559, %v747
        %749 = vmatmul.f32.gmra.mxu0 %v748
        %v750 = vpop.f32.mrf.mxu0
        %v751 = vadd.f32 %v701, %v750
        %v752 = vand.u32 %v562, 4294901760
        %v753 = vsub.f32 %v562, %v752
        %754 = vmatmul.f32.gmra.mxu0 %v753
        %v755 = vpop.f32.mrf.mxu0
        %v756 = vadd.f32 %v705, %v755
        %757 = vdwg.mxu0
        %758 = vmatpush.msra.mxu0 0.0
        %759 = vmatpush.msra.mxu0 0.0
        %760 = vmatpush.msra.mxu0 0.0
        %v761 = vand.u32 %v566, 4294901760
        %762 = vmatpush.msra.mxu0 %v761
        %763 = vmatpush.msra.mxu0 %v429
        %764 = vmatpush.msra.mxu0 %v427
        %765 = vmatpush.msra.mxu0 %v425
        %766 = vmatpush.msra.mxu0 %v423
        %767 = vmatpush.msra.mxu0 %v421
        %768 = vmatpush.msra.mxu0 %v419
        %769 = vmatpush.msra.mxu0 %v417
        %770 = vmatpush.msra.mxu0 %v415
        %771 = vmatpush.msra.mxu0 %v413
        %772 = vmatpush.msra.mxu0 %v411
        %773 = vmatpush.msra.mxu0 %v409
        %774 = vmatpush.msra.mxu0 %v407
        %v775 = vand.u32 %v553, 4294901760
        %v776 = vsub.f32 %v553, %v775
        %v777 = vand.u32 %v776, 4294901760
        %778 = vmatmul.f32.gmra.mxu0 %v777
        %v779 = vpop.f32.mrf.mxu0
        %v780 = vadd.f32 %v741, %v779
        %v781 = vand.u32 %v556, 4294901760
        %v782 = vsub.f32 %v556, %v781
        %v783 = vand.u32 %v782, 4294901760
        %784 = vmatmul.f32.gmra.mxu0 %v783
        %v785 = vpop.f32.mrf.mxu0
        %v786 = vadd.f32 %v746, %v785
        %v787 = vand.u32 %v559, 4294901760
        %v788 = vsub.f32 %v559, %v787
        %v789 = vand.u32 %v788, 4294901760
        %790 = vmatmul.f32.gmra.mxu0 %v789
        %v791 = vpop.f32.mrf.mxu0
        %v792 = vadd.f32 %v751, %v791
        %v793 = vand.u32 %v562, 4294901760
        %v794 = vsub.f32 %v562, %v793
        %v795 = vand.u32 %v794, 4294901760
        %796 = vmatmul.f32.gmra.mxu0 %v795
        %v797 = vpop.f32.mrf.mxu0
        %v798 = vadd.f32 %v756, %v797
        %799 = vdwg.mxu0
        %800 = vmatpush.msra.mxu0 0.0
        %801 = vmatpush.msra.mxu0 0.0
        %802 = vmatpush.msra.mxu0 0.0
        %v803 = vand.u32 %v566, 4294901760
        %v804 = vsub.f32 %v566, %v803
        %v805 = vand.u32 %v804, 4294901760
        %806 = vmatpush.msra.mxu0 %v805
        %v807 = vsub.f32 %v429, %v429
        %v808 = vand.u32 %v807, 4294901760
        %809 = vmatpush.msra.mxu0 %v808
        %v810 = vsub.f32 %v427, %v427
        %v811 = vand.u32 %v810, 4294901760
        %812 = vmatpush.msra.mxu0 %v811
        %v813 = vsub.f32 %v425, %v425
        %v814 = vand.u32 %v813, 4294901760
        %815 = vmatpush.msra.mxu0 %v814
        %v816 = vsub.f32 %v423, %v423
        %v817 = vand.u32 %v816, 4294901760
        %818 = vmatpush.msra.mxu0 %v817
        %v819 = vsub.f32 %v421, %v421
        %v820 = vand.u32 %v819, 4294901760
        %821 = vmatpush.msra.mxu0 %v820
        %v822 = vsub.f32 %v419, %v419
        %v823 = vand.u32 %v822, 4294901760
        %824 = vmatpush.msra.mxu0 %v823
        %v825 = vsub.f32 %v417, %v417
        %v826 = vand.u32 %v825, 4294901760
        %827 = vmatpush.msra.mxu0 %v826
        %v828 = vsub.f32 %v415, %v415
        %v829 = vand.u32 %v828, 4294901760
        %830 = vmatpush.msra.mxu0 %v829
        %v831 = vsub.f32 %v413, %v413
        %v832 = vand.u32 %v831, 4294901760
        %833 = vmatpush.msra.mxu0 %v832
        %v834 = vsub.f32 %v411, %v411
        %v835 = vand.u32 %v834, 4294901760
        %836 = vmatpush.msra.mxu0 %v835
        %v837 = vsub.f32 %v409, %v409
        %v838 = vand.u32 %v837, 4294901760
        %839 = vmatpush.msra.mxu0 %v838
        %v840 = vsub.f32 %v407, %v407
        %v841 = vand.u32 %v840, 4294901760
        %842 = vmatpush.msra.mxu0 %v841
        %v843 = vand.u32 %v553, 4294901760
        %844 = vmatmul.f32.gmra.mxu0 %v843
        %v845 = vpop.f32.mrf.mxu0
        %v846 = vadd.f32 %v780, %v845
        %v847 = vand.u32 %v556, 4294901760
        %848 = vmatmul.f32.gmra.mxu0 %v847
        %v849 = vpop.f32.mrf.mxu0
        %v850 = vadd.f32 %v786, %v849
        %v851 = vand.u32 %v559, 4294901760
        %852 = vmatmul.f32.gmra.mxu0 %v851
        %v853 = vpop.f32.mrf.mxu0
        %v854 = vadd.f32 %v792, %v853
        %v855 = vand.u32 %v562, 4294901760
        %856 = vmatmul.f32.gmra.mxu0 %v855
        %v857 = vpop.f32.mrf.mxu0
        %v858 = vadd.f32 %v798, %v857
        %859 = vdwg.mxu0
        %860 = vmatpush.msra.mxu0 0.0
        %861 = vmatpush.msra.mxu0 0.0
        %862 = vmatpush.msra.mxu0 0.0
        %v863 = vand.u32 %v566, 4294901760
        %864 = vmatpush.msra.mxu0 %v863
        %865 = vmatpush.msra.mxu0 %v429
        %866 = vmatpush.msra.mxu0 %v427
        %867 = vmatpush.msra.mxu0 %v425
        %868 = vmatpush.msra.mxu0 %v423
        %869 = vmatpush.msra.mxu0 %v421
        %870 = vmatpush.msra.mxu0 %v419
        %871 = vmatpush.msra.mxu0 %v417
        %872 = vmatpush.msra.mxu0 %v415
        %873 = vmatpush.msra.mxu0 %v413
        %874 = vmatpush.msra.mxu0 %v411
        %875 = vmatpush.msra.mxu0 %v409
        %876 = vmatpush.msra.mxu0 %v407
        %v877 = vand.u32 %v553, 4294901760
        %878 = vmatmul.f32.gmra.mxu0 %v877
        %v879 = vpop.f32.mrf.mxu0
        %v880 = vadd.f32 %v846, %v879
        %v881 = vand.u32 %v556, 4294901760
        %882 = vmatmul.f32.gmra.mxu0 %v881
        %v883 = vpop.f32.mrf.mxu0
        %v884 = vadd.f32 %v850, %v883
        %v885 = vand.u32 %v559, 4294901760
        %886 = vmatmul.f32.gmra.mxu0 %v885
        %v887 = vpop.f32.mrf.mxu0
        %v888 = vadd.f32 %v854, %v887
        %v889 = vand.u32 %v562, 4294901760
        %890 = vmatmul.f32.gmra.mxu0 %v889
        %v891 = vpop.f32.mrf.mxu0
        %v892 = vadd.f32 %v858, %v891
        %893 = vdwg.mxu0
        %894 = vmatpush.msra.mxu0 0.0
        %895 = vmatpush.msra.mxu0 0.0
        %896 = vmatpush.msra.mxu0 0.0
        %v897 = vand.u32 %v569, 4294901760
        %898 = vmatpush.msra.mxu0 %v897
        %899 = vmatpush.msra.mxu0 %v430
        %900 = vmatpush.msra.mxu0 %v428
        %901 = vmatpush.msra.mxu0 %v426
        %902 = vmatpush.msra.mxu0 %v424
        %903 = vmatpush.msra.mxu0 %v422
        %904 = vmatpush.msra.mxu0 %v420
        %905 = vmatpush.msra.mxu0 %v418
        %906 = vmatpush.msra.mxu0 %v416
        %907 = vmatpush.msra.mxu0 %v414
        %908 = vmatpush.msra.mxu0 %v412
        %909 = vmatpush.msra.mxu0 %v410
        %910 = vmatpush.msra.mxu0 %v408
        %v911 = vand.u32 %v553, 4294901760
        %v912 = vsub.f32 %v553, %v911
        %v913 = vand.u32 %v912, 4294901760
        %v914 = vsub.f32 %v912, %v913
        %v915 = vand.u32 %v914, 4294901760
        %916 = vmatmul.f32.gmra.mxu0 %v915
        %v917 = vpop.f32.mrf.mxu0
        %v918 = vadd.f32 0.0, %v917
        %v919 = vand.u32 %v556, 4294901760
        %v920 = vsub.f32 %v556, %v919
        %v921 = vand.u32 %v920, 4294901760
        %v922 = vsub.f32 %v920, %v921
        %v923 = vand.u32 %v922, 4294901760
        %924 = vmatmul.f32.gmra.mxu0 %v923
        %v925 = vpop.f32.mrf.mxu0
        %v926 = vadd.f32 0.0, %v925
        %v927 = vand.u32 %v559, 4294901760
        %v928 = vsub.f32 %v559, %v927
        %v929 = vand.u32 %v928, 4294901760
        %v930 = vsub.f32 %v928, %v929
        %v931 = vand.u32 %v930, 4294901760
        %932 = vmatmul.f32.gmra.mxu0 %v931
        %v933 = vpop.f32.mrf.mxu0
        %v934 = vadd.f32 0.0, %v933
        %v935 = vand.u32 %v562, 4294901760
        %v936 = vsub.f32 %v562, %v935
        %v937 = vand.u32 %v936, 4294901760
        %v938 = vsub.f32 %v936, %v937
        %v939 = vand.u32 %v938, 4294901760
        %940 = vmatmul.f32.gmra.mxu0 %v939
        %v941 = vpop.f32.mrf.mxu0
        %v942 = vadd.f32 0.0, %v941
        %943 = vdwg.mxu0
        %944 = vmatpush.msra.mxu0 0.0
        %945 = vmatpush.msra.mxu0 0.0
        %946 = vmatpush.msra.mxu0 0.0
        %v947 = vand.u32 %v569, 4294901760
        %v948 = vsub.f32 %v569, %v947
        %v949 = vand.u32 %v948, 4294901760
        %v950 = vsub.f32 %v948, %v949
        %v951 = vand.u32 %v950, 4294901760
        %952 = vmatpush.msra.mxu0 %v951
        %v953 = vsub.f32 %v430, %v430
        %v954 = vand.u32 %v953, 4294901760
        %v955 = vsub.f32 %v953, %v954
        %v956 = vand.u32 %v955, 4294901760
        %957 = vmatpush.msra.mxu0 %v956
        %v958 = vsub.f32 %v428, %v428
        %v959 = vand.u32 %v958, 4294901760
        %v960 = vsub.f32 %v958, %v959
        %v961 = vand.u32 %v960, 4294901760
        %962 = vmatpush.msra.mxu0 %v961
        %v963 = vsub.f32 %v426, %v426
        %v964 = vand.u32 %v963, 4294901760
        %v965 = vsub.f32 %v963, %v964
        %v966 = vand.u32 %v965, 4294901760
        %967 = vmatpush.msra.mxu0 %v966
        %v968 = vsub.f32 %v424, %v424
        %v969 = vand.u32 %v968, 4294901760
        %v970 = vsub.f32 %v968, %v969
        %v971 = vand.u32 %v970, 4294901760
        %972 = vmatpush.msra.mxu0 %v971
        %v973 = vsub.f32 %v422, %v422
        %v974 = vand.u32 %v973, 4294901760
        %v975 = vsub.f32 %v973, %v974
        %v976 = vand.u32 %v975, 4294901760
        %977 = vmatpush.msra.mxu0 %v976
        %v978 = vsub.f32 %v420, %v420
        %v979 = vand.u32 %v978, 4294901760
        %v980 = vsub.f32 %v978, %v979
        %v981 = vand.u32 %v980, 4294901760
        %982 = vmatpush.msra.mxu0 %v981
        %v983 = vsub.f32 %v418, %v418
        %v984 = vand.u32 %v983, 4294901760
        %v985 = vsub.f32 %v983, %v984
        %v986 = vand.u32 %v985, 4294901760
        %987 = vmatpush.msra.mxu0 %v986
        %v988 = vsub.f32 %v416, %v416
        %v989 = vand.u32 %v988, 4294901760
        %v990 = vsub.f32 %v988, %v989
        %v991 = vand.u32 %v990, 4294901760
        %992 = vmatpush.msra.mxu0 %v991
        %v993 = vsub.f32 %v414, %v414
        %v994 = vand.u32 %v993, 4294901760
        %v995 = vsub.f32 %v993, %v994
        %v996 = vand.u32 %v995, 4294901760
        %997 = vmatpush.msra.mxu0 %v996
        %v998 = vsub.f32 %v412, %v412
        %v999 = vand.u32 %v998, 4294901760
        %v1000 = vsub.f32 %v998, %v999
        %v1001 = vand.u32 %v1000, 4294901760
        %1002 = vmatpush.msra.mxu0 %v1001
        %v1003 = vsub.f32 %v410, %v410
        %v1004 = vand.u32 %v1003, 4294901760
        %v1005 = vsub.f32 %v1003, %v1004
        %v1006 = vand.u32 %v1005, 4294901760
        %1007 = vmatpush.msra.mxu0 %v1006
        %v1008 = vsub.f32 %v408, %v408
        %v1009 = vand.u32 %v1008, 4294901760
        %v1010 = vsub.f32 %v1008, %v1009
        %v1011 = vand.u32 %v1010, 4294901760
        %1012 = vmatpush.msra.mxu0 %v1011
        %v1013 = vand.u32 %v553, 4294901760
        %1014 = vmatmul.f32.gmra.mxu0 %v1013
        %v1015 = vpop.f32.mrf.mxu0
        %v1016 = vadd.f32 %v918, %v1015
        %v1017 = vand.u32 %v556, 4294901760
        %1018 = vmatmul.f32.gmra.mxu0 %v1017
        %v1019 = vpop.f32.mrf.mxu0
        %v1020 = vadd.f32 %v926, %v1019
        %v1021 = vand.u32 %v559, 4294901760
        %1022 = vmatmul.f32.gmra.mxu0 %v1021
        %v1023 = vpop.f32.mrf.mxu0
        %v1024 = vadd.f32 %v934, %v1023
        %v1025 = vand.u32 %v562, 4294901760
        %1026 = vmatmul.f32.gmra.mxu0 %v1025
        %v1027 = vpop.f32.mrf.mxu0
        %v1028 = vadd.f32 %v942, %v1027
        %1029 = vdwg.mxu0
        %1030 = vmatpush.msra.mxu0 0.0
        %1031 = vmatpush.msra.mxu0 0.0
        %1032 = vmatpush.msra.mxu0 0.0
        %v1033 = vand.u32 %v569, 4294901760
        %v1034 = vsub.f32 %v569, %v1033
        %1035 = vmatpush.msra.mxu0 %v1034
        %v1036 = vsub.f32 %v430, %v430
        %1037 = vmatpush.msra.mxu0 %v1036
        %v1038 = vsub.f32 %v428, %v428
        %1039 = vmatpush.msra.mxu0 %v1038
        %v1040 = vsub.f32 %v426, %v426
        %1041 = vmatpush.msra.mxu0 %v1040
        %v1042 = vsub.f32 %v424, %v424
        %1043 = vmatpush.msra.mxu0 %v1042
        %v1044 = vsub.f32 %v422, %v422
        %1045 = vmatpush.msra.mxu0 %v1044
        %v1046 = vsub.f32 %v420, %v420
        %1047 = vmatpush.msra.mxu0 %v1046
        %v1048 = vsub.f32 %v418, %v418
        %1049 = vmatpush.msra.mxu0 %v1048
        %v1050 = vsub.f32 %v416, %v416
        %1051 = vmatpush.msra.mxu0 %v1050
        %v1052 = vsub.f32 %v414, %v414
        %1053 = vmatpush.msra.mxu0 %v1052
        %v1054 = vsub.f32 %v412, %v412
        %1055 = vmatpush.msra.mxu0 %v1054
        %v1056 = vsub.f32 %v410, %v410
        %1057 = vmatpush.msra.mxu0 %v1056
        %v1058 = vsub.f32 %v408, %v408
        %1059 = vmatpush.msra.mxu0 %v1058
        %v1060 = vand.u32 %v553, 4294901760
        %v1061 = vsub.f32 %v553, %v1060
        %1062 = vmatmul.f32.gmra.mxu0 %v1061
        %v1063 = vpop.f32.mrf.mxu0
        %v1064 = vadd.f32 %v1016, %v1063
        %v1065 = vand.u32 %v556, 4294901760
        %v1066 = vsub.f32 %v556, %v1065
        %1067 = vmatmul.f32.gmra.mxu0 %v1066
        %v1068 = vpop.f32.mrf.mxu0
        %v1069 = vadd.f32 %v1020, %v1068
        %v1070 = vand.u32 %v559, 4294901760
        %v1071 = vsub.f32 %v559, %v1070
        %1072 = vmatmul.f32.gmra.mxu0 %v1071
        %v1073 = vpop.f32.mrf.mxu0
        %v1074 = vadd.f32 %v1024, %v1073
        %v1075 = vand.u32 %v562, 4294901760
        %v1076 = vsub.f32 %v562, %v1075
        %1077 = vmatmul.f32.gmra.mxu0 %v1076
        %v1078 = vpop.f32.mrf.mxu0
        %v1079 = vadd.f32 %v1028, %v1078
        %1080 = vdwg.mxu0
        %1081 = vmatpush.msra.mxu0 0.0
        %1082 = vmatpush.msra.mxu0 0.0
        %1083 = vmatpush.msra.mxu0 0.0
        %v1084 = vand.u32 %v569, 4294901760
        %1085 = vmatpush.msra.mxu0 %v1084
        %1086 = vmatpush.msra.mxu0 %v430
        %1087 = vmatpush.msra.mxu0 %v428
        %1088 = vmatpush.msra.mxu0 %v426
        %1089 = vmatpush.msra.mxu0 %v424
        %1090 = vmatpush.msra.mxu0 %v422
        %1091 = vmatpush.msra.mxu0 %v420
        %1092 = vmatpush.msra.mxu0 %v418
        %1093 = vmatpush.msra.mxu0 %v416
        %1094 = vmatpush.msra.mxu0 %v414
        %1095 = vmatpush.msra.mxu0 %v412
        %1096 = vmatpush.msra.mxu0 %v410
        %1097 = vmatpush.msra.mxu0 %v408
        %v1098 = vand.u32 %v553, 4294901760
        %v1099 = vsub.f32 %v553, %v1098
        %v1100 = vand.u32 %v1099, 4294901760
        %1101 = vmatmul.f32.gmra.mxu0 %v1100
        %v1102 = vpop.f32.mrf.mxu0
        %v1103 = vadd.f32 %v1064, %v1102
        %v1104 = vand.u32 %v556, 4294901760
        %v1105 = vsub.f32 %v556, %v1104
        %v1106 = vand.u32 %v1105, 4294901760
        %1107 = vmatmul.f32.gmra.mxu0 %v1106
        %v1108 = vpop.f32.mrf.mxu0
        %v1109 = vadd.f32 %v1069, %v1108
        %v1110 = vand.u32 %v559, 4294901760
        %v1111 = vsub.f32 %v559, %v1110
        %v1112 = vand.u32 %v1111, 4294901760
        %1113 = vmatmul.f32.gmra.mxu0 %v1112
        %v1114 = vpop.f32.mrf.mxu0
        %v1115 = vadd.f32 %v1074, %v1114
        %v1116 = vand.u32 %v562, 4294901760
        %v1117 = vsub.f32 %v562, %v1116
        %v1118 = vand.u32 %v1117, 4294901760
        %1119 = vmatmul.f32.gmra.mxu0 %v1118
        %v1120 = vpop.f32.mrf.mxu0
        %v1121 = vadd.f32 %v1079, %v1120
        %1122 = vdwg.mxu0
        %1123 = vmatpush.msra.mxu0 0.0
        %1124 = vmatpush.msra.mxu0 0.0
        %1125 = vmatpush.msra.mxu0 0.0
        %v1126 = vand.u32 %v569, 4294901760
        %v1127 = vsub.f32 %v569, %v1126
        %v1128 = vand.u32 %v1127, 4294901760
        %1129 = vmatpush.msra.mxu0 %v1128
        %v1130 = vsub.f32 %v430, %v430
        %v1131 = vand.u32 %v1130, 4294901760
        %1132 = vmatpush.msra.mxu0 %v1131
        %v1133 = vsub.f32 %v428, %v428
        %v1134 = vand.u32 %v1133, 4294901760
        %1135 = vmatpush.msra.mxu0 %v1134
        %v1136 = vsub.f32 %v426, %v426
        %v1137 = vand.u32 %v1136, 4294901760
        %1138 = vmatpush.msra.mxu0 %v1137
        %v1139 = vsub.f32 %v424, %v424
        %v1140 = vand.u32 %v1139, 4294901760
        %1141 = vmatpush.msra.mxu0 %v1140
        %v1142 = vsub.f32 %v422, %v422
        %v1143 = vand.u32 %v1142, 4294901760
        %1144 = vmatpush.msra.mxu0 %v1143
        %v1145 = vsub.f32 %v420, %v420
        %v1146 = vand.u32 %v1145, 4294901760
        %1147 = vmatpush.msra.mxu0 %v1146
        %v1148 = vsub.f32 %v418, %v418
        %v1149 = vand.u32 %v1148, 4294901760
        %1150 = vmatpush.msra.mxu0 %v1149
        %v1151 = vsub.f32 %v416, %v416
        %v1152 = vand.u32 %v1151, 4294901760
        %1153 = vmatpush.msra.mxu0 %v1152
        %v1154 = vsub.f32 %v414, %v414
        %v1155 = vand.u32 %v1154, 4294901760
        %1156 = vmatpush.msra.mxu0 %v1155
        %v1157 = vsub.f32 %v412, %v412
        %v1158 = vand.u32 %v1157, 4294901760
        %1159 = vmatpush.msra.mxu0 %v1158
        %v1160 = vsub.f32 %v410, %v410
        %v1161 = vand.u32 %v1160, 4294901760
        %1162 = vmatpush.msra.mxu0 %v1161
        %v1163 = vsub.f32 %v408, %v408
        %v1164 = vand.u32 %v1163, 4294901760
        %1165 = vmatpush.msra.mxu0 %v1164
        %v1166 = vand.u32 %v553, 4294901760
        %1167 = vmatmul.f32.gmra.mxu0 %v1166
        %v1168 = vpop.f32.mrf.mxu0
        %v1169 = vadd.f32 %v1103, %v1168
        %v1170 = vand.u32 %v556, 4294901760
        %1171 = vmatmul.f32.gmra.mxu0 %v1170
        %v1172 = vpop.f32.mrf.mxu0
        %v1173 = vadd.f32 %v1109, %v1172
        %v1174 = vand.u32 %v559, 4294901760
        %1175 = vmatmul.f32.gmra.mxu0 %v1174
        %v1176 = vpop.f32.mrf.mxu0
        %v1177 = vadd.f32 %v1115, %v1176
        %v1178 = vand.u32 %v562, 4294901760
        %1179 = vmatmul.f32.gmra.mxu0 %v1178
        %v1180 = vpop.f32.mrf.mxu0
        %v1181 = vadd.f32 %v1121, %v1180
        %1182 = vdwg.mxu0
        %1183 = vmatpush.msra.mxu0 0.0
        %1184 = vmatpush.msra.mxu0 0.0
        %1185 = vmatpush.msra.mxu0 0.0
        %v1186 = vand.u32 %v569, 4294901760
        %1187 = vmatpush.msra.mxu0 %v1186
        %1188 = vmatpush.msra.mxu0 %v430
        %1189 = vmatpush.msra.mxu0 %v428
        %1190 = vmatpush.msra.mxu0 %v426
        %1191 = vmatpush.msra.mxu0 %v424
        %1192 = vmatpush.msra.mxu0 %v422
        %1193 = vmatpush.msra.mxu0 %v420
        %1194 = vmatpush.msra.mxu0 %v418
        %1195 = vmatpush.msra.mxu0 %v416
        %1196 = vmatpush.msra.mxu0 %v414
        %1197 = vmatpush.msra.mxu0 %v412
        %1198 = vmatpush.msra.mxu0 %v410
        %1199 = vmatpush.msra.mxu0 %v408
        %v1200 = vand.u32 %v553, 4294901760
        %1201 = vmatmul.f32.gmra.mxu0 %v1200
        %v1202 = vpop.f32.mrf.mxu0
        %v1203 = vadd.f32 %v1169, %v1202
        %v1204 = vand.u32 %v556, 4294901760
        %1205 = vmatmul.f32.gmra.mxu0 %v1204
        %v1206 = vpop.f32.mrf.mxu0
        %v1207 = vadd.f32 %v1173, %v1206
        %v1208 = vand.u32 %v559, 4294901760
        %1209 = vmatmul.f32.gmra.mxu0 %v1208
        %v1210 = vpop.f32.mrf.mxu0
        %v1211 = vadd.f32 %v1177, %v1210
        %v1212 = vand.u32 %v562, 4294901760
        %1213 = vmatmul.f32.gmra.mxu0 %v1212
        %v1214 = vpop.f32.mrf.mxu0
        %v1215 = vadd.f32 %v1181, %v1214
        %1216 = vdwg.mxu0
        %v1217 = vld [vmem:[%s2] sm:$0xff]
        %v1218 = vld [vmem:[%s2 + $0x8] sm:$0xff]
        %v1219 = vld [vmem:[%s2 + $0x10] sm:$0xff]
        %v1220 = vld [vmem:[%s2 + $0x18] sm:$0xff]
        %v1221 = vld [vmem:[%s2 + $0x20] sm:$0xff]
        %v1222 = vld [vmem:[%s2 + $0x28] sm:$0xff]
        %v1223 = vld [vmem:[%s2 + $0x30] sm:$0xff]
        %v1224 = vld [vmem:[%s2 + $0x38] sm:$0xff]
        %vm1225 = vcmask 588800
        %v1227 = vsel %vm1225, %v1218, 0
        %v1230 = vsel %vm1225, %v1220, 0
        %v1233 = vsel %vm1225, %v1222, 0
        %v1236 = vsel %vm1225, %v1224, 0
        %1238 = vmatpush.msra.mxu0 %v527
        %1239 = vmatpush.msra.mxu0 %v525
        %1240 = vmatpush.msra.mxu0 %v523
        %1241 = vmatpush.msra.mxu0 %v521
        %1242 = vmatpush.msra.mxu0 %v519
        %1243 = vmatpush.msra.mxu0 %v517
        %1244 = vmatpush.msra.mxu0 %v515
        %1245 = vmatpush.msra.mxu0 %v513
        %1246 = vmatpush.msra.mxu0 %v511
        %1247 = vmatpush.msra.mxu0 %v509
        %1248 = vmatpush.msra.mxu0 %v507
        %1249 = vmatpush.msra.mxu0 %v505
        %1250 = vmatpush.msra.mxu0 %v503
        %1251 = vmatpush.msra.mxu0 %v501
        %1252 = vmatpush.msra.mxu0 %v499
        %1253 = vmatpush.msra.mxu0 %v497
        %v1254 = vand.u32 %v1217, 4294901760
        %v1255 = vsub.f32 %v1217, %v1254
        %v1256 = vand.u32 %v1255, 4294901760
        %v1257 = vsub.f32 %v1255, %v1256
        %v1258 = vand.u32 %v1257, 4294901760
        %1259 = vmatmul.f32.gmra.mxu0 %v1258
        %v1260 = vpop.f32.mrf.mxu0
        %v1261 = vadd.f32 0.0, %v1260
        %v1262 = vand.u32 %v1219, 4294901760
        %v1263 = vsub.f32 %v1219, %v1262
        %v1264 = vand.u32 %v1263, 4294901760
        %v1265 = vsub.f32 %v1263, %v1264
        %v1266 = vand.u32 %v1265, 4294901760
        %1267 = vmatmul.f32.gmra.mxu0 %v1266
        %v1268 = vpop.f32.mrf.mxu0
        %v1269 = vadd.f32 0.0, %v1268
        %v1270 = vand.u32 %v1221, 4294901760
        %v1271 = vsub.f32 %v1221, %v1270
        %v1272 = vand.u32 %v1271, 4294901760
        %v1273 = vsub.f32 %v1271, %v1272
        %v1274 = vand.u32 %v1273, 4294901760
        %1275 = vmatmul.f32.gmra.mxu0 %v1274
        %v1276 = vpop.f32.mrf.mxu0
        %v1277 = vadd.f32 0.0, %v1276
        %v1278 = vand.u32 %v1223, 4294901760
        %v1279 = vsub.f32 %v1223, %v1278
        %v1280 = vand.u32 %v1279, 4294901760
        %v1281 = vsub.f32 %v1279, %v1280
        %v1282 = vand.u32 %v1281, 4294901760
        %1283 = vmatmul.f32.gmra.mxu0 %v1282
        %v1284 = vpop.f32.mrf.mxu0
        %v1285 = vadd.f32 0.0, %v1284
        %1286 = vdwg.mxu0
        %v1287 = vsub.f32 %v527, %v527
        %v1288 = vand.u32 %v1287, 4294901760
        %v1289 = vsub.f32 %v1287, %v1288
        %v1290 = vand.u32 %v1289, 4294901760
        %1291 = vmatpush.msra.mxu0 %v1290
        %v1292 = vsub.f32 %v525, %v525
        %v1293 = vand.u32 %v1292, 4294901760
        %v1294 = vsub.f32 %v1292, %v1293
        %v1295 = vand.u32 %v1294, 4294901760
        %1296 = vmatpush.msra.mxu0 %v1295
        %v1297 = vsub.f32 %v523, %v523
        %v1298 = vand.u32 %v1297, 4294901760
        %v1299 = vsub.f32 %v1297, %v1298
        %v1300 = vand.u32 %v1299, 4294901760
        %1301 = vmatpush.msra.mxu0 %v1300
        %v1302 = vsub.f32 %v521, %v521
        %v1303 = vand.u32 %v1302, 4294901760
        %v1304 = vsub.f32 %v1302, %v1303
        %v1305 = vand.u32 %v1304, 4294901760
        %1306 = vmatpush.msra.mxu0 %v1305
        %v1307 = vsub.f32 %v519, %v519
        %v1308 = vand.u32 %v1307, 4294901760
        %v1309 = vsub.f32 %v1307, %v1308
        %v1310 = vand.u32 %v1309, 4294901760
        %1311 = vmatpush.msra.mxu0 %v1310
        %v1312 = vsub.f32 %v517, %v517
        %v1313 = vand.u32 %v1312, 4294901760
        %v1314 = vsub.f32 %v1312, %v1313
        %v1315 = vand.u32 %v1314, 4294901760
        %1316 = vmatpush.msra.mxu0 %v1315
        %v1317 = vsub.f32 %v515, %v515
        %v1318 = vand.u32 %v1317, 4294901760
        %v1319 = vsub.f32 %v1317, %v1318
        %v1320 = vand.u32 %v1319, 4294901760
        %1321 = vmatpush.msra.mxu0 %v1320
        %v1322 = vsub.f32 %v513, %v513
        %v1323 = vand.u32 %v1322, 4294901760
        %v1324 = vsub.f32 %v1322, %v1323
        %v1325 = vand.u32 %v1324, 4294901760
        %1326 = vmatpush.msra.mxu0 %v1325
        %v1327 = vsub.f32 %v511, %v511
        %v1328 = vand.u32 %v1327, 4294901760
        %v1329 = vsub.f32 %v1327, %v1328
        %v1330 = vand.u32 %v1329, 4294901760
        %1331 = vmatpush.msra.mxu0 %v1330
        %v1332 = vsub.f32 %v509, %v509
        %v1333 = vand.u32 %v1332, 4294901760
        %v1334 = vsub.f32 %v1332, %v1333
        %v1335 = vand.u32 %v1334, 4294901760
        %1336 = vmatpush.msra.mxu0 %v1335
        %v1337 = vsub.f32 %v507, %v507
        %v1338 = vand.u32 %v1337, 4294901760
        %v1339 = vsub.f32 %v1337, %v1338
        %v1340 = vand.u32 %v1339, 4294901760
        %1341 = vmatpush.msra.mxu0 %v1340
        %v1342 = vsub.f32 %v505, %v505
        %v1343 = vand.u32 %v1342, 4294901760
        %v1344 = vsub.f32 %v1342, %v1343
        %v1345 = vand.u32 %v1344, 4294901760
        %1346 = vmatpush.msra.mxu0 %v1345
        %v1347 = vsub.f32 %v503, %v503
        %v1348 = vand.u32 %v1347, 4294901760
        %v1349 = vsub.f32 %v1347, %v1348
        %v1350 = vand.u32 %v1349, 4294901760
        %1351 = vmatpush.msra.mxu0 %v1350
        %v1352 = vsub.f32 %v501, %v501
        %v1353 = vand.u32 %v1352, 4294901760
        %v1354 = vsub.f32 %v1352, %v1353
        %v1355 = vand.u32 %v1354, 4294901760
        %1356 = vmatpush.msra.mxu0 %v1355
        %v1357 = vsub.f32 %v499, %v499
        %v1358 = vand.u32 %v1357, 4294901760
        %v1359 = vsub.f32 %v1357, %v1358
        %v1360 = vand.u32 %v1359, 4294901760
        %1361 = vmatpush.msra.mxu0 %v1360
        %v1362 = vsub.f32 %v497, %v497
        %v1363 = vand.u32 %v1362, 4294901760
        %v1364 = vsub.f32 %v1362, %v1363
        %v1365 = vand.u32 %v1364, 4294901760
        %1366 = vmatpush.msra.mxu0 %v1365
        %v1367 = vand.u32 %v1217, 4294901760
        %1368 = vmatmul.f32.gmra.mxu0 %v1367
        %v1369 = vpop.f32.mrf.mxu0
        %v1370 = vadd.f32 %v1261, %v1369
        %v1371 = vand.u32 %v1219, 4294901760
        %1372 = vmatmul.f32.gmra.mxu0 %v1371
        %v1373 = vpop.f32.mrf.mxu0
        %v1374 = vadd.f32 %v1269, %v1373
        %v1375 = vand.u32 %v1221, 4294901760
        %1376 = vmatmul.f32.gmra.mxu0 %v1375
        %v1377 = vpop.f32.mrf.mxu0
        %v1378 = vadd.f32 %v1277, %v1377
        %v1379 = vand.u32 %v1223, 4294901760
        %1380 = vmatmul.f32.gmra.mxu0 %v1379
        %v1381 = vpop.f32.mrf.mxu0
        %v1382 = vadd.f32 %v1285, %v1381
        %1383 = vdwg.mxu0
        %v1384 = vsub.f32 %v527, %v527
        %1385 = vmatpush.msra.mxu0 %v1384
        %v1386 = vsub.f32 %v525, %v525
        %1387 = vmatpush.msra.mxu0 %v1386
        %v1388 = vsub.f32 %v523, %v523
        %1389 = vmatpush.msra.mxu0 %v1388
        %v1390 = vsub.f32 %v521, %v521
        %1391 = vmatpush.msra.mxu0 %v1390
        %v1392 = vsub.f32 %v519, %v519
        %1393 = vmatpush.msra.mxu0 %v1392
        %v1394 = vsub.f32 %v517, %v517
        %1395 = vmatpush.msra.mxu0 %v1394
        %v1396 = vsub.f32 %v515, %v515
        %1397 = vmatpush.msra.mxu0 %v1396
        %v1398 = vsub.f32 %v513, %v513
        %1399 = vmatpush.msra.mxu0 %v1398
        %v1400 = vsub.f32 %v511, %v511
        %1401 = vmatpush.msra.mxu0 %v1400
        %v1402 = vsub.f32 %v509, %v509
        %1403 = vmatpush.msra.mxu0 %v1402
        %v1404 = vsub.f32 %v507, %v507
        %1405 = vmatpush.msra.mxu0 %v1404
        %v1406 = vsub.f32 %v505, %v505
        %1407 = vmatpush.msra.mxu0 %v1406
        %v1408 = vsub.f32 %v503, %v503
        %1409 = vmatpush.msra.mxu0 %v1408
        %v1410 = vsub.f32 %v501, %v501
        %1411 = vmatpush.msra.mxu0 %v1410
        %v1412 = vsub.f32 %v499, %v499
        %1413 = vmatpush.msra.mxu0 %v1412
        %v1414 = vsub.f32 %v497, %v497
        %1415 = vmatpush.msra.mxu0 %v1414
        %v1416 = vand.u32 %v1217, 4294901760
        %v1417 = vsub.f32 %v1217, %v1416
        %1418 = vmatmul.f32.gmra.mxu0 %v1417
        %v1419 = vpop.f32.mrf.mxu0
        %v1420 = vadd.f32 %v1370, %v1419
        %v1421 = vand.u32 %v1219, 4294901760
        %v1422 = vsub.f32 %v1219, %v1421
        %1423 = vmatmul.f32.gmra.mxu0 %v1422
        %v1424 = vpop.f32.mrf.mxu0
        %v1425 = vadd.f32 %v1374, %v1424
        %v1426 = vand.u32 %v1221, 4294901760
        %v1427 = vsub.f32 %v1221, %v1426
        %1428 = vmatmul.f32.gmra.mxu0 %v1427
        %v1429 = vpop.f32.mrf.mxu0
        %v1430 = vadd.f32 %v1378, %v1429
        %v1431 = vand.u32 %v1223, 4294901760
        %v1432 = vsub.f32 %v1223, %v1431
        %1433 = vmatmul.f32.gmra.mxu0 %v1432
        %v1434 = vpop.f32.mrf.mxu0
        %v1435 = vadd.f32 %v1382, %v1434
        %1436 = vdwg.mxu0
        %1437 = vmatpush.msra.mxu0 %v527
        %1438 = vmatpush.msra.mxu0 %v525
        %1439 = vmatpush.msra.mxu0 %v523
        %1440 = vmatpush.msra.mxu0 %v521
        %1441 = vmatpush.msra.mxu0 %v519
        %1442 = vmatpush.msra.mxu0 %v517
        %1443 = vmatpush.msra.mxu0 %v515
        %1444 = vmatpush.msra.mxu0 %v513
        %1445 = vmatpush.msra.mxu0 %v511
        %1446 = vmatpush.msra.mxu0 %v509
        %1447 = vmatpush.msra.mxu0 %v507
        %1448 = vmatpush.msra.mxu0 %v505
        %1449 = vmatpush.msra.mxu0 %v503
        %1450 = vmatpush.msra.mxu0 %v501
        %1451 = vmatpush.msra.mxu0 %v499
        %1452 = vmatpush.msra.mxu0 %v497
        %v1453 = vand.u32 %v1217, 4294901760
        %v1454 = vsub.f32 %v1217, %v1453
        %v1455 = vand.u32 %v1454, 4294901760
        %1456 = vmatmul.f32.gmra.mxu0 %v1455
        %v1457 = vpop.f32.mrf.mxu0
        %v1458 = vadd.f32 %v1420, %v1457
        %v1459 = vand.u32 %v1219, 4294901760
        %v1460 = vsub.f32 %v1219, %v1459
        %v1461 = vand.u32 %v1460, 4294901760
        %1462 = vmatmul.f32.gmra.mxu0 %v1461
        %v1463 = vpop.f32.mrf.mxu0
        %v1464 = vadd.f32 %v1425, %v1463
        %v1465 = vand.u32 %v1221, 4294901760
        %v1466 = vsub.f32 %v1221, %v1465
        %v1467 = vand.u32 %v1466, 4294901760
        %1468 = vmatmul.f32.gmra.mxu0 %v1467
        %v1469 = vpop.f32.mrf.mxu0
        %v1470 = vadd.f32 %v1430, %v1469
        %v1471 = vand.u32 %v1223, 4294901760
        %v1472 = vsub.f32 %v1223, %v1471
        %v1473 = vand.u32 %v1472, 4294901760
        %1474 = vmatmul.f32.gmra.mxu0 %v1473
        %v1475 = vpop.f32.mrf.mxu0
        %v1476 = vadd.f32 %v1435, %v1475
        %1477 = vdwg.mxu0
        %v1478 = vsub.f32 %v527, %v527
        %v1479 = vand.u32 %v1478, 4294901760
        %1480 = vmatpush.msra.mxu0 %v1479
        %v1481 = vsub.f32 %v525, %v525
        %v1482 = vand.u32 %v1481, 4294901760
        %1483 = vmatpush.msra.mxu0 %v1482
        %v1484 = vsub.f32 %v523, %v523
        %v1485 = vand.u32 %v1484, 4294901760
        %1486 = vmatpush.msra.mxu0 %v1485
        %v1487 = vsub.f32 %v521, %v521
        %v1488 = vand.u32 %v1487, 4294901760
        %1489 = vmatpush.msra.mxu0 %v1488
        %v1490 = vsub.f32 %v519, %v519
        %v1491 = vand.u32 %v1490, 4294901760
        %1492 = vmatpush.msra.mxu0 %v1491
        %v1493 = vsub.f32 %v517, %v517
        %v1494 = vand.u32 %v1493, 4294901760
        %1495 = vmatpush.msra.mxu0 %v1494
        %v1496 = vsub.f32 %v515, %v515
        %v1497 = vand.u32 %v1496, 4294901760
        %1498 = vmatpush.msra.mxu0 %v1497
        %v1499 = vsub.f32 %v513, %v513
        %v1500 = vand.u32 %v1499, 4294901760
        %1501 = vmatpush.msra.mxu0 %v1500
        %v1502 = vsub.f32 %v511, %v511
        %v1503 = vand.u32 %v1502, 4294901760
        %1504 = vmatpush.msra.mxu0 %v1503
        %v1505 = vsub.f32 %v509, %v509
        %v1506 = vand.u32 %v1505, 4294901760
        %1507 = vmatpush.msra.mxu0 %v1506
        %v1508 = vsub.f32 %v507, %v507
        %v1509 = vand.u32 %v1508, 4294901760
        %1510 = vmatpush.msra.mxu0 %v1509
        %v1511 = vsub.f32 %v505, %v505
        %v1512 = vand.u32 %v1511, 4294901760
        %1513 = vmatpush.msra.mxu0 %v1512
        %v1514 = vsub.f32 %v503, %v503
        %v1515 = vand.u32 %v1514, 4294901760
        %1516 = vmatpush.msra.mxu0 %v1515
        %v1517 = vsub.f32 %v501, %v501
        %v1518 = vand.u32 %v1517, 4294901760
        %1519 = vmatpush.msra.mxu0 %v1518
        %v1520 = vsub.f32 %v499, %v499
        %v1521 = vand.u32 %v1520, 4294901760
        %1522 = vmatpush.msra.mxu0 %v1521
        %v1523 = vsub.f32 %v497, %v497
        %v1524 = vand.u32 %v1523, 4294901760
        %1525 = vmatpush.msra.mxu0 %v1524
        %v1526 = vand.u32 %v1217, 4294901760
        %1527 = vmatmul.f32.gmra.mxu0 %v1526
        %v1528 = vpop.f32.mrf.mxu0
        %v1529 = vadd.f32 %v1458, %v1528
        %v1530 = vand.u32 %v1219, 4294901760
        %1531 = vmatmul.f32.gmra.mxu0 %v1530
        %v1532 = vpop.f32.mrf.mxu0
        %v1533 = vadd.f32 %v1464, %v1532
        %v1534 = vand.u32 %v1221, 4294901760
        %1535 = vmatmul.f32.gmra.mxu0 %v1534
        %v1536 = vpop.f32.mrf.mxu0
        %v1537 = vadd.f32 %v1470, %v1536
        %v1538 = vand.u32 %v1223, 4294901760
        %1539 = vmatmul.f32.gmra.mxu0 %v1538
        %v1540 = vpop.f32.mrf.mxu0
        %v1541 = vadd.f32 %v1476, %v1540
        %1542 = vdwg.mxu0
        %1543 = vmatpush.msra.mxu0 %v527
        %1544 = vmatpush.msra.mxu0 %v525
        %1545 = vmatpush.msra.mxu0 %v523
        %1546 = vmatpush.msra.mxu0 %v521
        %1547 = vmatpush.msra.mxu0 %v519
        %1548 = vmatpush.msra.mxu0 %v517
        %1549 = vmatpush.msra.mxu0 %v515
        %1550 = vmatpush.msra.mxu0 %v513
        %1551 = vmatpush.msra.mxu0 %v511
        %1552 = vmatpush.msra.mxu0 %v509
        %1553 = vmatpush.msra.mxu0 %v507
        %1554 = vmatpush.msra.mxu0 %v505
        %1555 = vmatpush.msra.mxu0 %v503
        %1556 = vmatpush.msra.mxu0 %v501
        %1557 = vmatpush.msra.mxu0 %v499
        %1558 = vmatpush.msra.mxu0 %v497
        %v1559 = vand.u32 %v1217, 4294901760
        %1560 = vmatmul.f32.gmra.mxu0 %v1559
        %v1561 = vpop.f32.mrf.mxu0
        %v1562 = vadd.f32 %v1529, %v1561
        %v1563 = vand.u32 %v1219, 4294901760
        %1564 = vmatmul.f32.gmra.mxu0 %v1563
        %v1565 = vpop.f32.mrf.mxu0
        %v1566 = vadd.f32 %v1533, %v1565
        %v1567 = vand.u32 %v1221, 4294901760
        %1568 = vmatmul.f32.gmra.mxu0 %v1567
        %v1569 = vpop.f32.mrf.mxu0
        %v1570 = vadd.f32 %v1537, %v1569
        %v1571 = vand.u32 %v1223, 4294901760
        %1572 = vmatmul.f32.gmra.mxu0 %v1571
        %v1573 = vpop.f32.mrf.mxu0
        %v1574 = vadd.f32 %v1541, %v1573
        %1575 = vdwg.mxu0
        %1576 = vmatpush.msra.mxu0 0.0
        %1577 = vmatpush.msra.mxu0 0.0
        %1578 = vmatpush.msra.mxu0 0.0
        %1579 = vmatpush.msra.mxu0 0.0
        %1580 = vmatpush.msra.mxu0 0.0
        %1581 = vmatpush.msra.mxu0 0.0
        %1582 = vmatpush.msra.mxu0 0.0
        %1583 = vmatpush.msra.mxu0 %v545
        %1584 = vmatpush.msra.mxu0 %v543
        %1585 = vmatpush.msra.mxu0 %v541
        %1586 = vmatpush.msra.mxu0 %v539
        %1587 = vmatpush.msra.mxu0 %v537
        %1588 = vmatpush.msra.mxu0 %v535
        %1589 = vmatpush.msra.mxu0 %v533
        %1590 = vmatpush.msra.mxu0 %v531
        %1591 = vmatpush.msra.mxu0 %v529
        %v1592 = vand.u32 %v1227, 4294901760
        %v1593 = vsub.f32 %v1227, %v1592
        %v1594 = vand.u32 %v1593, 4294901760
        %v1595 = vsub.f32 %v1593, %v1594
        %v1596 = vand.u32 %v1595, 4294901760
        %1597 = vmatmul.f32.gmra.mxu0 %v1596
        %v1598 = vpop.f32.mrf.mxu0
        %v1599 = vadd.f32 %v1562, %v1598
        %v1600 = vand.u32 %v1230, 4294901760
        %v1601 = vsub.f32 %v1230, %v1600
        %v1602 = vand.u32 %v1601, 4294901760
        %v1603 = vsub.f32 %v1601, %v1602
        %v1604 = vand.u32 %v1603, 4294901760
        %1605 = vmatmul.f32.gmra.mxu0 %v1604
        %v1606 = vpop.f32.mrf.mxu0
        %v1607 = vadd.f32 %v1566, %v1606
        %v1608 = vand.u32 %v1233, 4294901760
        %v1609 = vsub.f32 %v1233, %v1608
        %v1610 = vand.u32 %v1609, 4294901760
        %v1611 = vsub.f32 %v1609, %v1610
        %v1612 = vand.u32 %v1611, 4294901760
        %1613 = vmatmul.f32.gmra.mxu0 %v1612
        %v1614 = vpop.f32.mrf.mxu0
        %v1615 = vadd.f32 %v1570, %v1614
        %v1616 = vand.u32 %v1236, 4294901760
        %v1617 = vsub.f32 %v1236, %v1616
        %v1618 = vand.u32 %v1617, 4294901760
        %v1619 = vsub.f32 %v1617, %v1618
        %v1620 = vand.u32 %v1619, 4294901760
        %1621 = vmatmul.f32.gmra.mxu0 %v1620
        %v1622 = vpop.f32.mrf.mxu0
        %v1623 = vadd.f32 %v1574, %v1622
        %1624 = vdwg.mxu0
        %1625 = vmatpush.msra.mxu0 0.0
        %1626 = vmatpush.msra.mxu0 0.0
        %1627 = vmatpush.msra.mxu0 0.0
        %1628 = vmatpush.msra.mxu0 0.0
        %1629 = vmatpush.msra.mxu0 0.0
        %1630 = vmatpush.msra.mxu0 0.0
        %1631 = vmatpush.msra.mxu0 0.0
        %v1632 = vsub.f32 %v545, %v545
        %v1633 = vand.u32 %v1632, 4294901760
        %v1634 = vsub.f32 %v1632, %v1633
        %v1635 = vand.u32 %v1634, 4294901760
        %1636 = vmatpush.msra.mxu0 %v1635
        %v1637 = vsub.f32 %v543, %v543
        %v1638 = vand.u32 %v1637, 4294901760
        %v1639 = vsub.f32 %v1637, %v1638
        %v1640 = vand.u32 %v1639, 4294901760
        %1641 = vmatpush.msra.mxu0 %v1640
        %v1642 = vsub.f32 %v541, %v541
        %v1643 = vand.u32 %v1642, 4294901760
        %v1644 = vsub.f32 %v1642, %v1643
        %v1645 = vand.u32 %v1644, 4294901760
        %1646 = vmatpush.msra.mxu0 %v1645
        %v1647 = vsub.f32 %v539, %v539
        %v1648 = vand.u32 %v1647, 4294901760
        %v1649 = vsub.f32 %v1647, %v1648
        %v1650 = vand.u32 %v1649, 4294901760
        %1651 = vmatpush.msra.mxu0 %v1650
        %v1652 = vsub.f32 %v537, %v537
        %v1653 = vand.u32 %v1652, 4294901760
        %v1654 = vsub.f32 %v1652, %v1653
        %v1655 = vand.u32 %v1654, 4294901760
        %1656 = vmatpush.msra.mxu0 %v1655
        %v1657 = vsub.f32 %v535, %v535
        %v1658 = vand.u32 %v1657, 4294901760
        %v1659 = vsub.f32 %v1657, %v1658
        %v1660 = vand.u32 %v1659, 4294901760
        %1661 = vmatpush.msra.mxu0 %v1660
        %v1662 = vsub.f32 %v533, %v533
        %v1663 = vand.u32 %v1662, 4294901760
        %v1664 = vsub.f32 %v1662, %v1663
        %v1665 = vand.u32 %v1664, 4294901760
        %1666 = vmatpush.msra.mxu0 %v1665
        %v1667 = vsub.f32 %v531, %v531
        %v1668 = vand.u32 %v1667, 4294901760
        %v1669 = vsub.f32 %v1667, %v1668
        %v1670 = vand.u32 %v1669, 4294901760
        %1671 = vmatpush.msra.mxu0 %v1670
        %v1672 = vsub.f32 %v529, %v529
        %v1673 = vand.u32 %v1672, 4294901760
        %v1674 = vsub.f32 %v1672, %v1673
        %v1675 = vand.u32 %v1674, 4294901760
        %1676 = vmatpush.msra.mxu0 %v1675
        %v1677 = vand.u32 %v1227, 4294901760
        %1678 = vmatmul.f32.gmra.mxu0 %v1677
        %v1679 = vpop.f32.mrf.mxu0
        %v1680 = vadd.f32 %v1599, %v1679
        %v1681 = vand.u32 %v1230, 4294901760
        %1682 = vmatmul.f32.gmra.mxu0 %v1681
        %v1683 = vpop.f32.mrf.mxu0
        %v1684 = vadd.f32 %v1607, %v1683
        %v1685 = vand.u32 %v1233, 4294901760
        %1686 = vmatmul.f32.gmra.mxu0 %v1685
        %v1687 = vpop.f32.mrf.mxu0
        %v1688 = vadd.f32 %v1615, %v1687
        %v1689 = vand.u32 %v1236, 4294901760
        %1690 = vmatmul.f32.gmra.mxu0 %v1689
        %v1691 = vpop.f32.mrf.mxu0
        %v1692 = vadd.f32 %v1623, %v1691
        %1693 = vdwg.mxu0
        %1694 = vmatpush.msra.mxu0 0.0
        %1695 = vmatpush.msra.mxu0 0.0
        %1696 = vmatpush.msra.mxu0 0.0
        %1697 = vmatpush.msra.mxu0 0.0
        %1698 = vmatpush.msra.mxu0 0.0
        %1699 = vmatpush.msra.mxu0 0.0
        %1700 = vmatpush.msra.mxu0 0.0
        %v1701 = vsub.f32 %v545, %v545
        %1702 = vmatpush.msra.mxu0 %v1701
        %v1703 = vsub.f32 %v543, %v543
        %1704 = vmatpush.msra.mxu0 %v1703
        %v1705 = vsub.f32 %v541, %v541
        %1706 = vmatpush.msra.mxu0 %v1705
        %v1707 = vsub.f32 %v539, %v539
        %1708 = vmatpush.msra.mxu0 %v1707
        %v1709 = vsub.f32 %v537, %v537
        %1710 = vmatpush.msra.mxu0 %v1709
        %v1711 = vsub.f32 %v535, %v535
        %1712 = vmatpush.msra.mxu0 %v1711
        %v1713 = vsub.f32 %v533, %v533
        %1714 = vmatpush.msra.mxu0 %v1713
        %v1715 = vsub.f32 %v531, %v531
        %1716 = vmatpush.msra.mxu0 %v1715
        %v1717 = vsub.f32 %v529, %v529
        %1718 = vmatpush.msra.mxu0 %v1717
        %v1719 = vand.u32 %v1227, 4294901760
        %v1720 = vsub.f32 %v1227, %v1719
        %1721 = vmatmul.f32.gmra.mxu0 %v1720
        %v1722 = vpop.f32.mrf.mxu0
        %v1723 = vadd.f32 %v1680, %v1722
        %v1724 = vand.u32 %v1230, 4294901760
        %v1725 = vsub.f32 %v1230, %v1724
        %1726 = vmatmul.f32.gmra.mxu0 %v1725
        %v1727 = vpop.f32.mrf.mxu0
        %v1728 = vadd.f32 %v1684, %v1727
        %v1729 = vand.u32 %v1233, 4294901760
        %v1730 = vsub.f32 %v1233, %v1729
        %1731 = vmatmul.f32.gmra.mxu0 %v1730
        %v1732 = vpop.f32.mrf.mxu0
        %v1733 = vadd.f32 %v1688, %v1732
        %v1734 = vand.u32 %v1236, 4294901760
        %v1735 = vsub.f32 %v1236, %v1734
        %1736 = vmatmul.f32.gmra.mxu0 %v1735
        %v1737 = vpop.f32.mrf.mxu0
        %v1738 = vadd.f32 %v1692, %v1737
        %1739 = vdwg.mxu0
        %1740 = vmatpush.msra.mxu0 0.0
        %1741 = vmatpush.msra.mxu0 0.0
        %1742 = vmatpush.msra.mxu0 0.0
        %1743 = vmatpush.msra.mxu0 0.0
        %1744 = vmatpush.msra.mxu0 0.0
        %1745 = vmatpush.msra.mxu0 0.0
        %1746 = vmatpush.msra.mxu0 0.0
        %1747 = vmatpush.msra.mxu0 %v545
        %1748 = vmatpush.msra.mxu0 %v543
        %1749 = vmatpush.msra.mxu0 %v541
        %1750 = vmatpush.msra.mxu0 %v539
        %1751 = vmatpush.msra.mxu0 %v537
        %1752 = vmatpush.msra.mxu0 %v535
        %1753 = vmatpush.msra.mxu0 %v533
        %1754 = vmatpush.msra.mxu0 %v531
        %1755 = vmatpush.msra.mxu0 %v529
        %v1756 = vand.u32 %v1227, 4294901760
        %v1757 = vsub.f32 %v1227, %v1756
        %v1758 = vand.u32 %v1757, 4294901760
        %1759 = vmatmul.f32.gmra.mxu0 %v1758
        %v1760 = vpop.f32.mrf.mxu0
        %v1761 = vadd.f32 %v1723, %v1760
        %v1762 = vand.u32 %v1230, 4294901760
        %v1763 = vsub.f32 %v1230, %v1762
        %v1764 = vand.u32 %v1763, 4294901760
        %1765 = vmatmul.f32.gmra.mxu0 %v1764
        %v1766 = vpop.f32.mrf.mxu0
        %v1767 = vadd.f32 %v1728, %v1766
        %v1768 = vand.u32 %v1233, 4294901760
        %v1769 = vsub.f32 %v1233, %v1768
        %v1770 = vand.u32 %v1769, 4294901760
        %1771 = vmatmul.f32.gmra.mxu0 %v1770
        %v1772 = vpop.f32.mrf.mxu0
        %v1773 = vadd.f32 %v1733, %v1772
        %v1774 = vand.u32 %v1236, 4294901760
        %v1775 = vsub.f32 %v1236, %v1774
        %v1776 = vand.u32 %v1775, 4294901760
        %1777 = vmatmul.f32.gmra.mxu0 %v1776
        %v1778 = vpop.f32.mrf.mxu0
        %v1779 = vadd.f32 %v1738, %v1778
        %1780 = vdwg.mxu0
        %1781 = vmatpush.msra.mxu0 0.0
        %1782 = vmatpush.msra.mxu0 0.0
        %1783 = vmatpush.msra.mxu0 0.0
        %1784 = vmatpush.msra.mxu0 0.0
        %1785 = vmatpush.msra.mxu0 0.0
        %1786 = vmatpush.msra.mxu0 0.0
        %1787 = vmatpush.msra.mxu0 0.0
        %v1788 = vsub.f32 %v545, %v545
        %v1789 = vand.u32 %v1788, 4294901760
        %1790 = vmatpush.msra.mxu0 %v1789
        %v1791 = vsub.f32 %v543, %v543
        %v1792 = vand.u32 %v1791, 4294901760
        %1793 = vmatpush.msra.mxu0 %v1792
        %v1794 = vsub.f32 %v541, %v541
        %v1795 = vand.u32 %v1794, 4294901760
        %1796 = vmatpush.msra.mxu0 %v1795
        %v1797 = vsub.f32 %v539, %v539
        %v1798 = vand.u32 %v1797, 4294901760
        %1799 = vmatpush.msra.mxu0 %v1798
        %v1800 = vsub.f32 %v537, %v537
        %v1801 = vand.u32 %v1800, 4294901760
        %1802 = vmatpush.msra.mxu0 %v1801
        %v1803 = vsub.f32 %v535, %v535
        %v1804 = vand.u32 %v1803, 4294901760
        %1805 = vmatpush.msra.mxu0 %v1804
        %v1806 = vsub.f32 %v533, %v533
        %v1807 = vand.u32 %v1806, 4294901760
        %1808 = vmatpush.msra.mxu0 %v1807
        %v1809 = vsub.f32 %v531, %v531
        %v1810 = vand.u32 %v1809, 4294901760
        %1811 = vmatpush.msra.mxu0 %v1810
        %v1812 = vsub.f32 %v529, %v529
        %v1813 = vand.u32 %v1812, 4294901760
        %1814 = vmatpush.msra.mxu0 %v1813
        %v1815 = vand.u32 %v1227, 4294901760
        %1816 = vmatmul.f32.gmra.mxu0 %v1815
        %v1817 = vpop.f32.mrf.mxu0
        %v1818 = vadd.f32 %v1761, %v1817
        %v1819 = vand.u32 %v1230, 4294901760
        %1820 = vmatmul.f32.gmra.mxu0 %v1819
        %v1821 = vpop.f32.mrf.mxu0
        %v1822 = vadd.f32 %v1767, %v1821
        %v1823 = vand.u32 %v1233, 4294901760
        %1824 = vmatmul.f32.gmra.mxu0 %v1823
        %v1825 = vpop.f32.mrf.mxu0
        %v1826 = vadd.f32 %v1773, %v1825
        %v1827 = vand.u32 %v1236, 4294901760
        %1828 = vmatmul.f32.gmra.mxu0 %v1827
        %v1829 = vpop.f32.mrf.mxu0
        %v1830 = vadd.f32 %v1779, %v1829
        %1831 = vdwg.mxu0
        %1832 = vmatpush.msra.mxu0 0.0
        %1833 = vmatpush.msra.mxu0 0.0
        %1834 = vmatpush.msra.mxu0 0.0
        %1835 = vmatpush.msra.mxu0 0.0
        %1836 = vmatpush.msra.mxu0 0.0
        %1837 = vmatpush.msra.mxu0 0.0
        %1838 = vmatpush.msra.mxu0 0.0
        %1839 = vmatpush.msra.mxu0 %v545
        %1840 = vmatpush.msra.mxu0 %v543
        %1841 = vmatpush.msra.mxu0 %v541
        %1842 = vmatpush.msra.mxu0 %v539
        %1843 = vmatpush.msra.mxu0 %v537
        %1844 = vmatpush.msra.mxu0 %v535
        %1845 = vmatpush.msra.mxu0 %v533
        %1846 = vmatpush.msra.mxu0 %v531
        %1847 = vmatpush.msra.mxu0 %v529
        %v1848 = vand.u32 %v1227, 4294901760
        %1849 = vmatmul.f32.gmra.mxu0 %v1848
        %v1850 = vpop.f32.mrf.mxu0
        %v1851 = vadd.f32 %v1818, %v1850
        %v1852 = vand.u32 %v1230, 4294901760
        %1853 = vmatmul.f32.gmra.mxu0 %v1852
        %v1854 = vpop.f32.mrf.mxu0
        %v1855 = vadd.f32 %v1822, %v1854
        %v1856 = vand.u32 %v1233, 4294901760
        %1857 = vmatmul.f32.gmra.mxu0 %v1856
        %v1858 = vpop.f32.mrf.mxu0
        %v1859 = vadd.f32 %v1826, %v1858
        %v1860 = vand.u32 %v1236, 4294901760
        %1861 = vmatmul.f32.gmra.mxu0 %v1860
        %v1862 = vpop.f32.mrf.mxu0
        %v1863 = vadd.f32 %v1830, %v1862
        %1864 = vdwg.mxu0
        %1865 = vmatpush.msra.mxu0 %v528
        %1866 = vmatpush.msra.mxu0 %v526
        %1867 = vmatpush.msra.mxu0 %v524
        %1868 = vmatpush.msra.mxu0 %v522
        %1869 = vmatpush.msra.mxu0 %v520
        %1870 = vmatpush.msra.mxu0 %v518
        %1871 = vmatpush.msra.mxu0 %v516
        %1872 = vmatpush.msra.mxu0 %v514
        %1873 = vmatpush.msra.mxu0 %v512
        %1874 = vmatpush.msra.mxu0 %v510
        %1875 = vmatpush.msra.mxu0 %v508
        %1876 = vmatpush.msra.mxu0 %v506
        %1877 = vmatpush.msra.mxu0 %v504
        %1878 = vmatpush.msra.mxu0 %v502
        %1879 = vmatpush.msra.mxu0 %v500
        %1880 = vmatpush.msra.mxu0 %v498
        %v1881 = vand.u32 %v1217, 4294901760
        %v1882 = vsub.f32 %v1217, %v1881
        %v1883 = vand.u32 %v1882, 4294901760
        %v1884 = vsub.f32 %v1882, %v1883
        %v1885 = vand.u32 %v1884, 4294901760
        %1886 = vmatmul.f32.gmra.mxu0 %v1885
        %v1887 = vpop.f32.mrf.mxu0
        %v1888 = vadd.f32 0.0, %v1887
        %v1889 = vand.u32 %v1219, 4294901760
        %v1890 = vsub.f32 %v1219, %v1889
        %v1891 = vand.u32 %v1890, 4294901760
        %v1892 = vsub.f32 %v1890, %v1891
        %v1893 = vand.u32 %v1892, 4294901760
        %1894 = vmatmul.f32.gmra.mxu0 %v1893
        %v1895 = vpop.f32.mrf.mxu0
        %v1896 = vadd.f32 0.0, %v1895
        %v1897 = vand.u32 %v1221, 4294901760
        %v1898 = vsub.f32 %v1221, %v1897
        %v1899 = vand.u32 %v1898, 4294901760
        %v1900 = vsub.f32 %v1898, %v1899
        %v1901 = vand.u32 %v1900, 4294901760
        %1902 = vmatmul.f32.gmra.mxu0 %v1901
        %v1903 = vpop.f32.mrf.mxu0
        %v1904 = vadd.f32 0.0, %v1903
        %v1905 = vand.u32 %v1223, 4294901760
        %v1906 = vsub.f32 %v1223, %v1905
        %v1907 = vand.u32 %v1906, 4294901760
        %v1908 = vsub.f32 %v1906, %v1907
        %v1909 = vand.u32 %v1908, 4294901760
        %1910 = vmatmul.f32.gmra.mxu0 %v1909
        %v1911 = vpop.f32.mrf.mxu0
        %v1912 = vadd.f32 0.0, %v1911
        %1913 = vdwg.mxu0
        %v1914 = vsub.f32 %v528, %v528
        %v1915 = vand.u32 %v1914, 4294901760
        %v1916 = vsub.f32 %v1914, %v1915
        %v1917 = vand.u32 %v1916, 4294901760
        %1918 = vmatpush.msra.mxu0 %v1917
        %v1919 = vsub.f32 %v526, %v526
        %v1920 = vand.u32 %v1919, 4294901760
        %v1921 = vsub.f32 %v1919, %v1920
        %v1922 = vand.u32 %v1921, 4294901760
        %1923 = vmatpush.msra.mxu0 %v1922
        %v1924 = vsub.f32 %v524, %v524
        %v1925 = vand.u32 %v1924, 4294901760
        %v1926 = vsub.f32 %v1924, %v1925
        %v1927 = vand.u32 %v1926, 4294901760
        %1928 = vmatpush.msra.mxu0 %v1927
        %v1929 = vsub.f32 %v522, %v522
        %v1930 = vand.u32 %v1929, 4294901760
        %v1931 = vsub.f32 %v1929, %v1930
        %v1932 = vand.u32 %v1931, 4294901760
        %1933 = vmatpush.msra.mxu0 %v1932
        %v1934 = vsub.f32 %v520, %v520
        %v1935 = vand.u32 %v1934, 4294901760
        %v1936 = vsub.f32 %v1934, %v1935
        %v1937 = vand.u32 %v1936, 4294901760
        %1938 = vmatpush.msra.mxu0 %v1937
        %v1939 = vsub.f32 %v518, %v518
        %v1940 = vand.u32 %v1939, 4294901760
        %v1941 = vsub.f32 %v1939, %v1940
        %v1942 = vand.u32 %v1941, 4294901760
        %1943 = vmatpush.msra.mxu0 %v1942
        %v1944 = vsub.f32 %v516, %v516
        %v1945 = vand.u32 %v1944, 4294901760
        %v1946 = vsub.f32 %v1944, %v1945
        %v1947 = vand.u32 %v1946, 4294901760
        %1948 = vmatpush.msra.mxu0 %v1947
        %v1949 = vsub.f32 %v514, %v514
        %v1950 = vand.u32 %v1949, 4294901760
        %v1951 = vsub.f32 %v1949, %v1950
        %v1952 = vand.u32 %v1951, 4294901760
        %1953 = vmatpush.msra.mxu0 %v1952
        %v1954 = vsub.f32 %v512, %v512
        %v1955 = vand.u32 %v1954, 4294901760
        %v1956 = vsub.f32 %v1954, %v1955
        %v1957 = vand.u32 %v1956, 4294901760
        %1958 = vmatpush.msra.mxu0 %v1957
        %v1959 = vsub.f32 %v510, %v510
        %v1960 = vand.u32 %v1959, 4294901760
        %v1961 = vsub.f32 %v1959, %v1960
        %v1962 = vand.u32 %v1961, 4294901760
        %1963 = vmatpush.msra.mxu0 %v1962
        %v1964 = vsub.f32 %v508, %v508
        %v1965 = vand.u32 %v1964, 4294901760
        %v1966 = vsub.f32 %v1964, %v1965
        %v1967 = vand.u32 %v1966, 4294901760
        %1968 = vmatpush.msra.mxu0 %v1967
        %v1969 = vsub.f32 %v506, %v506
        %v1970 = vand.u32 %v1969, 4294901760
        %v1971 = vsub.f32 %v1969, %v1970
        %v1972 = vand.u32 %v1971, 4294901760
        %1973 = vmatpush.msra.mxu0 %v1972
        %v1974 = vsub.f32 %v504, %v504
        %v1975 = vand.u32 %v1974, 4294901760
        %v1976 = vsub.f32 %v1974, %v1975
        %v1977 = vand.u32 %v1976, 4294901760
        %1978 = vmatpush.msra.mxu0 %v1977
        %v1979 = vsub.f32 %v502, %v502
        %v1980 = vand.u32 %v1979, 4294901760
        %v1981 = vsub.f32 %v1979, %v1980
        %v1982 = vand.u32 %v1981, 4294901760
        %1983 = vmatpush.msra.mxu0 %v1982
        %v1984 = vsub.f32 %v500, %v500
        %v1985 = vand.u32 %v1984, 4294901760
        %v1986 = vsub.f32 %v1984, %v1985
        %v1987 = vand.u32 %v1986, 4294901760
        %1988 = vmatpush.msra.mxu0 %v1987
        %v1989 = vsub.f32 %v498, %v498
        %v1990 = vand.u32 %v1989, 4294901760
        %v1991 = vsub.f32 %v1989, %v1990
        %v1992 = vand.u32 %v1991, 4294901760
        %1993 = vmatpush.msra.mxu0 %v1992
        %v1994 = vand.u32 %v1217, 4294901760
        %1995 = vmatmul.f32.gmra.mxu0 %v1994
        %v1996 = vpop.f32.mrf.mxu0
        %v1997 = vadd.f32 %v1888, %v1996
        %v1998 = vand.u32 %v1219, 4294901760
        %1999 = vmatmul.f32.gmra.mxu0 %v1998
        %v2000 = vpop.f32.mrf.mxu0
        %v2001 = vadd.f32 %v1896, %v2000
        %v2002 = vand.u32 %v1221, 4294901760
        %2003 = vmatmul.f32.gmra.mxu0 %v2002
        %v2004 = vpop.f32.mrf.mxu0
        %v2005 = vadd.f32 %v1904, %v2004
        %v2006 = vand.u32 %v1223, 4294901760
        %2007 = vmatmul.f32.gmra.mxu0 %v2006
        %v2008 = vpop.f32.mrf.mxu0
        %v2009 = vadd.f32 %v1912, %v2008
        %2010 = vdwg.mxu0
        %v2011 = vsub.f32 %v528, %v528
        %2012 = vmatpush.msra.mxu0 %v2011
        %v2013 = vsub.f32 %v526, %v526
        %2014 = vmatpush.msra.mxu0 %v2013
        %v2015 = vsub.f32 %v524, %v524
        %2016 = vmatpush.msra.mxu0 %v2015
        %v2017 = vsub.f32 %v522, %v522
        %2018 = vmatpush.msra.mxu0 %v2017
        %v2019 = vsub.f32 %v520, %v520
        %2020 = vmatpush.msra.mxu0 %v2019
        %v2021 = vsub.f32 %v518, %v518
        %2022 = vmatpush.msra.mxu0 %v2021
        %v2023 = vsub.f32 %v516, %v516
        %2024 = vmatpush.msra.mxu0 %v2023
        %v2025 = vsub.f32 %v514, %v514
        %2026 = vmatpush.msra.mxu0 %v2025
        %v2027 = vsub.f32 %v512, %v512
        %2028 = vmatpush.msra.mxu0 %v2027
        %v2029 = vsub.f32 %v510, %v510
        %2030 = vmatpush.msra.mxu0 %v2029
        %v2031 = vsub.f32 %v508, %v508
        %2032 = vmatpush.msra.mxu0 %v2031
        %v2033 = vsub.f32 %v506, %v506
        %2034 = vmatpush.msra.mxu0 %v2033
        %v2035 = vsub.f32 %v504, %v504
        %2036 = vmatpush.msra.mxu0 %v2035
        %v2037 = vsub.f32 %v502, %v502
        %2038 = vmatpush.msra.mxu0 %v2037
        %v2039 = vsub.f32 %v500, %v500
        %2040 = vmatpush.msra.mxu0 %v2039
        %v2041 = vsub.f32 %v498, %v498
        %2042 = vmatpush.msra.mxu0 %v2041
        %v2043 = vand.u32 %v1217, 4294901760
        %v2044 = vsub.f32 %v1217, %v2043
        %2045 = vmatmul.f32.gmra.mxu0 %v2044
        %v2046 = vpop.f32.mrf.mxu0
        %v2047 = vadd.f32 %v1997, %v2046
        %v2048 = vand.u32 %v1219, 4294901760
        %v2049 = vsub.f32 %v1219, %v2048
        %2050 = vmatmul.f32.gmra.mxu0 %v2049
        %v2051 = vpop.f32.mrf.mxu0
        %v2052 = vadd.f32 %v2001, %v2051
        %v2053 = vand.u32 %v1221, 4294901760
        %v2054 = vsub.f32 %v1221, %v2053
        %2055 = vmatmul.f32.gmra.mxu0 %v2054
        %v2056 = vpop.f32.mrf.mxu0
        %v2057 = vadd.f32 %v2005, %v2056
        %v2058 = vand.u32 %v1223, 4294901760
        %v2059 = vsub.f32 %v1223, %v2058
        %2060 = vmatmul.f32.gmra.mxu0 %v2059
        %v2061 = vpop.f32.mrf.mxu0
        %v2062 = vadd.f32 %v2009, %v2061
        %2063 = vdwg.mxu0
        %2064 = vmatpush.msra.mxu0 %v528
        %2065 = vmatpush.msra.mxu0 %v526
        %2066 = vmatpush.msra.mxu0 %v524
        %2067 = vmatpush.msra.mxu0 %v522
        %2068 = vmatpush.msra.mxu0 %v520
        %2069 = vmatpush.msra.mxu0 %v518
        %2070 = vmatpush.msra.mxu0 %v516
        %2071 = vmatpush.msra.mxu0 %v514
        %2072 = vmatpush.msra.mxu0 %v512
        %2073 = vmatpush.msra.mxu0 %v510
        %2074 = vmatpush.msra.mxu0 %v508
        %2075 = vmatpush.msra.mxu0 %v506
        %2076 = vmatpush.msra.mxu0 %v504
        %2077 = vmatpush.msra.mxu0 %v502
        %2078 = vmatpush.msra.mxu0 %v500
        %2079 = vmatpush.msra.mxu0 %v498
        %v2080 = vand.u32 %v1217, 4294901760
        %v2081 = vsub.f32 %v1217, %v2080
        %v2082 = vand.u32 %v2081, 4294901760
        %2083 = vmatmul.f32.gmra.mxu0 %v2082
        %v2084 = vpop.f32.mrf.mxu0
        %v2085 = vadd.f32 %v2047, %v2084
        %v2086 = vand.u32 %v1219, 4294901760
        %v2087 = vsub.f32 %v1219, %v2086
        %v2088 = vand.u32 %v2087, 4294901760
        %2089 = vmatmul.f32.gmra.mxu0 %v2088
        %v2090 = vpop.f32.mrf.mxu0
        %v2091 = vadd.f32 %v2052, %v2090
        %v2092 = vand.u32 %v1221, 4294901760
        %v2093 = vsub.f32 %v1221, %v2092
        %v2094 = vand.u32 %v2093, 4294901760
        %2095 = vmatmul.f32.gmra.mxu0 %v2094
        %v2096 = vpop.f32.mrf.mxu0
        %v2097 = vadd.f32 %v2057, %v2096
        %v2098 = vand.u32 %v1223, 4294901760
        %v2099 = vsub.f32 %v1223, %v2098
        %v2100 = vand.u32 %v2099, 4294901760
        %2101 = vmatmul.f32.gmra.mxu0 %v2100
        %v2102 = vpop.f32.mrf.mxu0
        %v2103 = vadd.f32 %v2062, %v2102
        %2104 = vdwg.mxu0
        %v2105 = vsub.f32 %v528, %v528
        %v2106 = vand.u32 %v2105, 4294901760
        %2107 = vmatpush.msra.mxu0 %v2106
        %v2108 = vsub.f32 %v526, %v526
        %v2109 = vand.u32 %v2108, 4294901760
        %2110 = vmatpush.msra.mxu0 %v2109
        %v2111 = vsub.f32 %v524, %v524
        %v2112 = vand.u32 %v2111, 4294901760
        %2113 = vmatpush.msra.mxu0 %v2112
        %v2114 = vsub.f32 %v522, %v522
        %v2115 = vand.u32 %v2114, 4294901760
        %2116 = vmatpush.msra.mxu0 %v2115
        %v2117 = vsub.f32 %v520, %v520
        %v2118 = vand.u32 %v2117, 4294901760
        %2119 = vmatpush.msra.mxu0 %v2118
        %v2120 = vsub.f32 %v518, %v518
        %v2121 = vand.u32 %v2120, 4294901760
        %2122 = vmatpush.msra.mxu0 %v2121
        %v2123 = vsub.f32 %v516, %v516
        %v2124 = vand.u32 %v2123, 4294901760
        %2125 = vmatpush.msra.mxu0 %v2124
        %v2126 = vsub.f32 %v514, %v514
        %v2127 = vand.u32 %v2126, 4294901760
        %2128 = vmatpush.msra.mxu0 %v2127
        %v2129 = vsub.f32 %v512, %v512
        %v2130 = vand.u32 %v2129, 4294901760
        %2131 = vmatpush.msra.mxu0 %v2130
        %v2132 = vsub.f32 %v510, %v510
        %v2133 = vand.u32 %v2132, 4294901760
        %2134 = vmatpush.msra.mxu0 %v2133
        %v2135 = vsub.f32 %v508, %v508
        %v2136 = vand.u32 %v2135, 4294901760
        %2137 = vmatpush.msra.mxu0 %v2136
        %v2138 = vsub.f32 %v506, %v506
        %v2139 = vand.u32 %v2138, 4294901760
        %2140 = vmatpush.msra.mxu0 %v2139
        %v2141 = vsub.f32 %v504, %v504
        %v2142 = vand.u32 %v2141, 4294901760
        %2143 = vmatpush.msra.mxu0 %v2142
        %v2144 = vsub.f32 %v502, %v502
        %v2145 = vand.u32 %v2144, 4294901760
        %2146 = vmatpush.msra.mxu0 %v2145
        %v2147 = vsub.f32 %v500, %v500
        %v2148 = vand.u32 %v2147, 4294901760
        %2149 = vmatpush.msra.mxu0 %v2148
        %v2150 = vsub.f32 %v498, %v498
        %v2151 = vand.u32 %v2150, 4294901760
        %2152 = vmatpush.msra.mxu0 %v2151
        %v2153 = vand.u32 %v1217, 4294901760
        %2154 = vmatmul.f32.gmra.mxu0 %v2153
        %v2155 = vpop.f32.mrf.mxu0
        %v2156 = vadd.f32 %v2085, %v2155
        %v2157 = vand.u32 %v1219, 4294901760
        %2158 = vmatmul.f32.gmra.mxu0 %v2157
        %v2159 = vpop.f32.mrf.mxu0
        %v2160 = vadd.f32 %v2091, %v2159
        %v2161 = vand.u32 %v1221, 4294901760
        %2162 = vmatmul.f32.gmra.mxu0 %v2161
        %v2163 = vpop.f32.mrf.mxu0
        %v2164 = vadd.f32 %v2097, %v2163
        %v2165 = vand.u32 %v1223, 4294901760
        %2166 = vmatmul.f32.gmra.mxu0 %v2165
        %v2167 = vpop.f32.mrf.mxu0
        %v2168 = vadd.f32 %v2103, %v2167
        %2169 = vdwg.mxu0
        %2170 = vmatpush.msra.mxu0 %v528
        %2171 = vmatpush.msra.mxu0 %v526
        %2172 = vmatpush.msra.mxu0 %v524
        %2173 = vmatpush.msra.mxu0 %v522
        %2174 = vmatpush.msra.mxu0 %v520
        %2175 = vmatpush.msra.mxu0 %v518
        %2176 = vmatpush.msra.mxu0 %v516
        %2177 = vmatpush.msra.mxu0 %v514
        %2178 = vmatpush.msra.mxu0 %v512
        %2179 = vmatpush.msra.mxu0 %v510
        %2180 = vmatpush.msra.mxu0 %v508
        %2181 = vmatpush.msra.mxu0 %v506
        %2182 = vmatpush.msra.mxu0 %v504
        %2183 = vmatpush.msra.mxu0 %v502
        %2184 = vmatpush.msra.mxu0 %v500
        %2185 = vmatpush.msra.mxu0 %v498
        %v2186 = vand.u32 %v1217, 4294901760
        %2187 = vmatmul.f32.gmra.mxu0 %v2186
        %v2188 = vpop.f32.mrf.mxu0
        %v2189 = vadd.f32 %v2156, %v2188
        %v2190 = vand.u32 %v1219, 4294901760
        %2191 = vmatmul.f32.gmra.mxu0 %v2190
        %v2192 = vpop.f32.mrf.mxu0
        %v2193 = vadd.f32 %v2160, %v2192
        %v2194 = vand.u32 %v1221, 4294901760
        %2195 = vmatmul.f32.gmra.mxu0 %v2194
        %v2196 = vpop.f32.mrf.mxu0
        %v2197 = vadd.f32 %v2164, %v2196
        %v2198 = vand.u32 %v1223, 4294901760
        %2199 = vmatmul.f32.gmra.mxu0 %v2198
        %v2200 = vpop.f32.mrf.mxu0
        %v2201 = vadd.f32 %v2168, %v2200
        %2202 = vdwg.mxu0
        %2203 = vmatpush.msra.mxu0 0.0
        %2204 = vmatpush.msra.mxu0 0.0
        %2205 = vmatpush.msra.mxu0 0.0
        %2206 = vmatpush.msra.mxu0 0.0
        %2207 = vmatpush.msra.mxu0 0.0
        %2208 = vmatpush.msra.mxu0 0.0
        %2209 = vmatpush.msra.mxu0 0.0
        %2210 = vmatpush.msra.mxu0 %v546
        %2211 = vmatpush.msra.mxu0 %v544
        %2212 = vmatpush.msra.mxu0 %v542
        %2213 = vmatpush.msra.mxu0 %v540
        %2214 = vmatpush.msra.mxu0 %v538
        %2215 = vmatpush.msra.mxu0 %v536
        %2216 = vmatpush.msra.mxu0 %v534
        %2217 = vmatpush.msra.mxu0 %v532
        %2218 = vmatpush.msra.mxu0 %v530
        %v2219 = vand.u32 %v1227, 4294901760
        %v2220 = vsub.f32 %v1227, %v2219
        %v2221 = vand.u32 %v2220, 4294901760
        %v2222 = vsub.f32 %v2220, %v2221
        %v2223 = vand.u32 %v2222, 4294901760
        %2224 = vmatmul.f32.gmra.mxu0 %v2223
        %v2225 = vpop.f32.mrf.mxu0
        %v2226 = vadd.f32 %v2189, %v2225
        %v2227 = vand.u32 %v1230, 4294901760
        %v2228 = vsub.f32 %v1230, %v2227
        %v2229 = vand.u32 %v2228, 4294901760
        %v2230 = vsub.f32 %v2228, %v2229
        %v2231 = vand.u32 %v2230, 4294901760
        %2232 = vmatmul.f32.gmra.mxu0 %v2231
        %v2233 = vpop.f32.mrf.mxu0
        %v2234 = vadd.f32 %v2193, %v2233
        %v2235 = vand.u32 %v1233, 4294901760
        %v2236 = vsub.f32 %v1233, %v2235
        %v2237 = vand.u32 %v2236, 4294901760
        %v2238 = vsub.f32 %v2236, %v2237
        %v2239 = vand.u32 %v2238, 4294901760
        %2240 = vmatmul.f32.gmra.mxu0 %v2239
        %v2241 = vpop.f32.mrf.mxu0
        %v2242 = vadd.f32 %v2197, %v2241
        %v2243 = vand.u32 %v1236, 4294901760
        %v2244 = vsub.f32 %v1236, %v2243
        %v2245 = vand.u32 %v2244, 4294901760
        %v2246 = vsub.f32 %v2244, %v2245
        %v2247 = vand.u32 %v2246, 4294901760
        %2248 = vmatmul.f32.gmra.mxu0 %v2247
        %v2249 = vpop.f32.mrf.mxu0
        %v2250 = vadd.f32 %v2201, %v2249
        %2251 = vdwg.mxu0
        %2252 = vmatpush.msra.mxu0 0.0
        %2253 = vmatpush.msra.mxu0 0.0
        %2254 = vmatpush.msra.mxu0 0.0
        %2255 = vmatpush.msra.mxu0 0.0
        %2256 = vmatpush.msra.mxu0 0.0
        %2257 = vmatpush.msra.mxu0 0.0
        %2258 = vmatpush.msra.mxu0 0.0
        %v2259 = vsub.f32 %v546, %v546
        %v2260 = vand.u32 %v2259, 4294901760
        %v2261 = vsub.f32 %v2259, %v2260
        %v2262 = vand.u32 %v2261, 4294901760
        %2263 = vmatpush.msra.mxu0 %v2262
        %v2264 = vsub.f32 %v544, %v544
        %v2265 = vand.u32 %v2264, 4294901760
        %v2266 = vsub.f32 %v2264, %v2265
        %v2267 = vand.u32 %v2266, 4294901760
        %2268 = vmatpush.msra.mxu0 %v2267
        %v2269 = vsub.f32 %v542, %v542
        %v2270 = vand.u32 %v2269, 4294901760
        %v2271 = vsub.f32 %v2269, %v2270
        %v2272 = vand.u32 %v2271, 4294901760
        %2273 = vmatpush.msra.mxu0 %v2272
        %v2274 = vsub.f32 %v540, %v540
        %v2275 = vand.u32 %v2274, 4294901760
        %v2276 = vsub.f32 %v2274, %v2275
        %v2277 = vand.u32 %v2276, 4294901760
        %2278 = vmatpush.msra.mxu0 %v2277
        %v2279 = vsub.f32 %v538, %v538
        %v2280 = vand.u32 %v2279, 4294901760
        %v2281 = vsub.f32 %v2279, %v2280
        %v2282 = vand.u32 %v2281, 4294901760
        %2283 = vmatpush.msra.mxu0 %v2282
        %v2284 = vsub.f32 %v536, %v536
        %v2285 = vand.u32 %v2284, 4294901760
        %v2286 = vsub.f32 %v2284, %v2285
        %v2287 = vand.u32 %v2286, 4294901760
        %2288 = vmatpush.msra.mxu0 %v2287
        %v2289 = vsub.f32 %v534, %v534
        %v2290 = vand.u32 %v2289, 4294901760
        %v2291 = vsub.f32 %v2289, %v2290
        %v2292 = vand.u32 %v2291, 4294901760
        %2293 = vmatpush.msra.mxu0 %v2292
        %v2294 = vsub.f32 %v532, %v532
        %v2295 = vand.u32 %v2294, 4294901760
        %v2296 = vsub.f32 %v2294, %v2295
        %v2297 = vand.u32 %v2296, 4294901760
        %2298 = vmatpush.msra.mxu0 %v2297
        %v2299 = vsub.f32 %v530, %v530
        %v2300 = vand.u32 %v2299, 4294901760
        %v2301 = vsub.f32 %v2299, %v2300
        %v2302 = vand.u32 %v2301, 4294901760
        %2303 = vmatpush.msra.mxu0 %v2302
        %v2304 = vand.u32 %v1227, 4294901760
        %2305 = vmatmul.f32.gmra.mxu0 %v2304
        %v2306 = vpop.f32.mrf.mxu0
        %v2307 = vadd.f32 %v2226, %v2306
        %v2308 = vand.u32 %v1230, 4294901760
        %2309 = vmatmul.f32.gmra.mxu0 %v2308
        %v2310 = vpop.f32.mrf.mxu0
        %v2311 = vadd.f32 %v2234, %v2310
        %v2312 = vand.u32 %v1233, 4294901760
        %2313 = vmatmul.f32.gmra.mxu0 %v2312
        %v2314 = vpop.f32.mrf.mxu0
        %v2315 = vadd.f32 %v2242, %v2314
        %v2316 = vand.u32 %v1236, 4294901760
        %2317 = vmatmul.f32.gmra.mxu0 %v2316
        %v2318 = vpop.f32.mrf.mxu0
        %v2319 = vadd.f32 %v2250, %v2318
        %2320 = vdwg.mxu0
        %2321 = vmatpush.msra.mxu0 0.0
        %2322 = vmatpush.msra.mxu0 0.0
        %2323 = vmatpush.msra.mxu0 0.0
        %2324 = vmatpush.msra.mxu0 0.0
        %2325 = vmatpush.msra.mxu0 0.0
        %2326 = vmatpush.msra.mxu0 0.0
        %2327 = vmatpush.msra.mxu0 0.0
        %v2328 = vsub.f32 %v546, %v546
        %2329 = vmatpush.msra.mxu0 %v2328
        %v2330 = vsub.f32 %v544, %v544
        %2331 = vmatpush.msra.mxu0 %v2330
        %v2332 = vsub.f32 %v542, %v542
        %2333 = vmatpush.msra.mxu0 %v2332
        %v2334 = vsub.f32 %v540, %v540
        %2335 = vmatpush.msra.mxu0 %v2334
        %v2336 = vsub.f32 %v538, %v538
        %2337 = vmatpush.msra.mxu0 %v2336
        %v2338 = vsub.f32 %v536, %v536
        %2339 = vmatpush.msra.mxu0 %v2338
        %v2340 = vsub.f32 %v534, %v534
        %2341 = vmatpush.msra.mxu0 %v2340
        %v2342 = vsub.f32 %v532, %v532
        %2343 = vmatpush.msra.mxu0 %v2342
        %v2344 = vsub.f32 %v530, %v530
        %2345 = vmatpush.msra.mxu0 %v2344
        %v2346 = vand.u32 %v1227, 4294901760
        %v2347 = vsub.f32 %v1227, %v2346
        %2348 = vmatmul.f32.gmra.mxu0 %v2347
        %v2349 = vpop.f32.mrf.mxu0
        %v2350 = vadd.f32 %v2307, %v2349
        %v2351 = vand.u32 %v1230, 4294901760
        %v2352 = vsub.f32 %v1230, %v2351
        %2353 = vmatmul.f32.gmra.mxu0 %v2352
        %v2354 = vpop.f32.mrf.mxu0
        %v2355 = vadd.f32 %v2311, %v2354
        %v2356 = vand.u32 %v1233, 4294901760
        %v2357 = vsub.f32 %v1233, %v2356
        %2358 = vmatmul.f32.gmra.mxu0 %v2357
        %v2359 = vpop.f32.mrf.mxu0
        %v2360 = vadd.f32 %v2315, %v2359
        %v2361 = vand.u32 %v1236, 4294901760
        %v2362 = vsub.f32 %v1236, %v2361
        %2363 = vmatmul.f32.gmra.mxu0 %v2362
        %v2364 = vpop.f32.mrf.mxu0
        %v2365 = vadd.f32 %v2319, %v2364
        %2366 = vdwg.mxu0
        %2367 = vmatpush.msra.mxu0 0.0
        %2368 = vmatpush.msra.mxu0 0.0
        %2369 = vmatpush.msra.mxu0 0.0
        %2370 = vmatpush.msra.mxu0 0.0
        %2371 = vmatpush.msra.mxu0 0.0
        %2372 = vmatpush.msra.mxu0 0.0
        %2373 = vmatpush.msra.mxu0 0.0
        %2374 = vmatpush.msra.mxu0 %v546
        %2375 = vmatpush.msra.mxu0 %v544
        %2376 = vmatpush.msra.mxu0 %v542
        %2377 = vmatpush.msra.mxu0 %v540
        %2378 = vmatpush.msra.mxu0 %v538
        %2379 = vmatpush.msra.mxu0 %v536
        %2380 = vmatpush.msra.mxu0 %v534
        %2381 = vmatpush.msra.mxu0 %v532
        %2382 = vmatpush.msra.mxu0 %v530
        %v2383 = vand.u32 %v1227, 4294901760
        %v2384 = vsub.f32 %v1227, %v2383
        %v2385 = vand.u32 %v2384, 4294901760
        %2386 = vmatmul.f32.gmra.mxu0 %v2385
        %v2387 = vpop.f32.mrf.mxu0
        %v2388 = vadd.f32 %v2350, %v2387
        %v2389 = vand.u32 %v1230, 4294901760
        %v2390 = vsub.f32 %v1230, %v2389
        %v2391 = vand.u32 %v2390, 4294901760
        %2392 = vmatmul.f32.gmra.mxu0 %v2391
        %v2393 = vpop.f32.mrf.mxu0
        %v2394 = vadd.f32 %v2355, %v2393
        %v2395 = vand.u32 %v1233, 4294901760
        %v2396 = vsub.f32 %v1233, %v2395
        %v2397 = vand.u32 %v2396, 4294901760
        %2398 = vmatmul.f32.gmra.mxu0 %v2397
        %v2399 = vpop.f32.mrf.mxu0
        %v2400 = vadd.f32 %v2360, %v2399
        %v2401 = vand.u32 %v1236, 4294901760
        %v2402 = vsub.f32 %v1236, %v2401
        %v2403 = vand.u32 %v2402, 4294901760
        %2404 = vmatmul.f32.gmra.mxu0 %v2403
        %v2405 = vpop.f32.mrf.mxu0
        %v2406 = vadd.f32 %v2365, %v2405
        %2407 = vdwg.mxu0
        %2408 = vmatpush.msra.mxu0 0.0
        %2409 = vmatpush.msra.mxu0 0.0
        %2410 = vmatpush.msra.mxu0 0.0
        %2411 = vmatpush.msra.mxu0 0.0
        %2412 = vmatpush.msra.mxu0 0.0
        %2413 = vmatpush.msra.mxu0 0.0
        %2414 = vmatpush.msra.mxu0 0.0
        %v2415 = vsub.f32 %v546, %v546
        %v2416 = vand.u32 %v2415, 4294901760
        %2417 = vmatpush.msra.mxu0 %v2416
        %v2418 = vsub.f32 %v544, %v544
        %v2419 = vand.u32 %v2418, 4294901760
        %2420 = vmatpush.msra.mxu0 %v2419
        %v2421 = vsub.f32 %v542, %v542
        %v2422 = vand.u32 %v2421, 4294901760
        %2423 = vmatpush.msra.mxu0 %v2422
        %v2424 = vsub.f32 %v540, %v540
        %v2425 = vand.u32 %v2424, 4294901760
        %2426 = vmatpush.msra.mxu0 %v2425
        %v2427 = vsub.f32 %v538, %v538
        %v2428 = vand.u32 %v2427, 4294901760
        %2429 = vmatpush.msra.mxu0 %v2428
        %v2430 = vsub.f32 %v536, %v536
        %v2431 = vand.u32 %v2430, 4294901760
        %2432 = vmatpush.msra.mxu0 %v2431
        %v2433 = vsub.f32 %v534, %v534
        %v2434 = vand.u32 %v2433, 4294901760
        %2435 = vmatpush.msra.mxu0 %v2434
        %v2436 = vsub.f32 %v532, %v532
        %v2437 = vand.u32 %v2436, 4294901760
        %2438 = vmatpush.msra.mxu0 %v2437
        %v2439 = vsub.f32 %v530, %v530
        %v2440 = vand.u32 %v2439, 4294901760
        %2441 = vmatpush.msra.mxu0 %v2440
        %v2442 = vand.u32 %v1227, 4294901760
        %2443 = vmatmul.f32.gmra.mxu0 %v2442
        %v2444 = vpop.f32.mrf.mxu0
        %v2445 = vadd.f32 %v2388, %v2444
        %v2446 = vand.u32 %v1230, 4294901760
        %2447 = vmatmul.f32.gmra.mxu0 %v2446
        %v2448 = vpop.f32.mrf.mxu0
        %v2449 = vadd.f32 %v2394, %v2448
        %v2450 = vand.u32 %v1233, 4294901760
        %2451 = vmatmul.f32.gmra.mxu0 %v2450
        %v2452 = vpop.f32.mrf.mxu0
        %v2453 = vadd.f32 %v2400, %v2452
        %v2454 = vand.u32 %v1236, 4294901760
        %2455 = vmatmul.f32.gmra.mxu0 %v2454
        %v2456 = vpop.f32.mrf.mxu0
        %v2457 = vadd.f32 %v2406, %v2456
        %2458 = vdwg.mxu0
        %2459 = vmatpush.msra.mxu0 0.0
        %2460 = vmatpush.msra.mxu0 0.0
        %2461 = vmatpush.msra.mxu0 0.0
        %2462 = vmatpush.msra.mxu0 0.0
        %2463 = vmatpush.msra.mxu0 0.0
        %2464 = vmatpush.msra.mxu0 0.0
        %2465 = vmatpush.msra.mxu0 0.0
        %2466 = vmatpush.msra.mxu0 %v546
        %2467 = vmatpush.msra.mxu0 %v544
        %2468 = vmatpush.msra.mxu0 %v542
        %2469 = vmatpush.msra.mxu0 %v540
        %2470 = vmatpush.msra.mxu0 %v538
        %2471 = vmatpush.msra.mxu0 %v536
        %2472 = vmatpush.msra.mxu0 %v534
        %2473 = vmatpush.msra.mxu0 %v532
        %2474 = vmatpush.msra.mxu0 %v530
        %v2475 = vand.u32 %v1227, 4294901760
        %2476 = vmatmul.f32.gmra.mxu0 %v2475
        %v2477 = vpop.f32.mrf.mxu0
        %v2478 = vadd.f32 %v2445, %v2477
        %v2479 = vand.u32 %v1230, 4294901760
        %2480 = vmatmul.f32.gmra.mxu0 %v2479
        %v2481 = vpop.f32.mrf.mxu0
        %v2482 = vadd.f32 %v2449, %v2481
        %v2483 = vand.u32 %v1233, 4294901760
        %2484 = vmatmul.f32.gmra.mxu0 %v2483
        %v2485 = vpop.f32.mrf.mxu0
        %v2486 = vadd.f32 %v2453, %v2485
        %v2487 = vand.u32 %v1236, 4294901760
        %2488 = vmatmul.f32.gmra.mxu0 %v2487
        %v2489 = vpop.f32.mrf.mxu0
        %v2490 = vadd.f32 %v2457, %v2489
        %2491 = vdwg.mxu0
        %v2492 = vld [vmem:[%s3] sm:$0xff]
        %v2493 = vld [vmem:[%s3 + $0x8] sm:$0xff]
        %v2494 = vld [vmem:[%s3 + $0x10] sm:$0xff]
        %v2495 = vld [vmem:[%s3 + $0x18] sm:$0xff]
        %v2496 = vld [vmem:[%s3 + $0x20] sm:$0xff]
        %v2497 = vld [vmem:[%s3 + $0x28] sm:$0xff]
        %v2498 = vld [vmem:[%s3 + $0x30] sm:$0xff]
        %v2499 = vld [vmem:[%s3 + $0x38] sm:$0xff]
        %v2500 = vld [vmem:[%s4] sm:$0xff]
        %v2501 = vld [vmem:[%s4 + $0x8] sm:$0xff]
        %v2502 = vld [vmem:[%s4 + $0x10] sm:$0xff]
        %v2503 = vld [vmem:[%s4 + $0x18] sm:$0xff]
        %v2504 = vld [vmem:[%s4 + $0x20] sm:$0xff]
        %v2505 = vld [vmem:[%s4 + $0x28] sm:$0xff]
        %v2506 = vld [vmem:[%s4 + $0x30] sm:$0xff]
        %v2507 = vld [vmem:[%s4 + $0x38] sm:$0xff]
        %vm2508 = vcmask 261120
        %v2510 = vsel %vm2508, %v2500, 0
        %v2513 = vsel %vm2508, %v2501, 0
        %v2516 = vsel %vm2508, %v2502, 0
        %v2519 = vsel %vm2508, %v2503, 0
        %v2522 = vsel %vm2508, %v2504, 0
        %v2525 = vsel %vm2508, %v2505, 0
        %v2528 = vsel %vm2508, %v2506, 0
        %v2531 = vsel %vm2508, %v2507, 0
        %2533 = vmatpush.msra.mxu0 0.0
        %2534 = vmatpush.msra.mxu0 0.0
        %2535 = vmatpush.msra.mxu0 0.0
        %2536 = vmatpush.msra.mxu0 0.0
        %2537 = vmatpush.msra.mxu0 0.0
        %2538 = vmatpush.msra.mxu0 0.0
        %2539 = vmatpush.msra.mxu0 0.0
        %2540 = vmatpush.msra.mxu0 0.0
        %2541 = vmatpush.msra.mxu0 0.0
        %2542 = vmatpush.msra.mxu0 0.0
        %2543 = vmatpush.msra.mxu0 0.0
        %2544 = vmatpush.msra.mxu0 0.0
        %v2545 = vand.u32 %v1863, 4294901760
        %2546 = vmatpush.msra.mxu0 %v2545
        %v2547 = vand.u32 %v1859, 4294901760
        %2548 = vmatpush.msra.mxu0 %v2547
        %v2549 = vand.u32 %v1855, 4294901760
        %2550 = vmatpush.msra.mxu0 %v2549
        %v2551 = vand.u32 %v1851, 4294901760
        %2552 = vmatpush.msra.mxu0 %v2551
        %v2553 = vand.u32 %v2510, 4294901760
        %v2554 = vsub.f32 %v2510, %v2553
        %v2555 = vand.u32 %v2554, 4294901760
        %v2556 = vsub.f32 %v2554, %v2555
        %v2557 = vand.u32 %v2556, 4294901760
        %2558 = vmatmul.f32.gmra.mxu0 %v2557
        %v2559 = vpop.f32.mrf.mxu0
        %v2560 = vadd.f32 0.0, %v2559
        %v2561 = vand.u32 %v2513, 4294901760
        %v2562 = vsub.f32 %v2513, %v2561
        %v2563 = vand.u32 %v2562, 4294901760
        %v2564 = vsub.f32 %v2562, %v2563
        %v2565 = vand.u32 %v2564, 4294901760
        %2566 = vmatmul.f32.gmra.mxu0 %v2565
        %v2567 = vpop.f32.mrf.mxu0
        %v2568 = vadd.f32 0.0, %v2567
        %v2569 = vand.u32 %v2516, 4294901760
        %v2570 = vsub.f32 %v2516, %v2569
        %v2571 = vand.u32 %v2570, 4294901760
        %v2572 = vsub.f32 %v2570, %v2571
        %v2573 = vand.u32 %v2572, 4294901760
        %2574 = vmatmul.f32.gmra.mxu0 %v2573
        %v2575 = vpop.f32.mrf.mxu0
        %v2576 = vadd.f32 0.0, %v2575
        %v2577 = vand.u32 %v2519, 4294901760
        %v2578 = vsub.f32 %v2519, %v2577
        %v2579 = vand.u32 %v2578, 4294901760
        %v2580 = vsub.f32 %v2578, %v2579
        %v2581 = vand.u32 %v2580, 4294901760
        %2582 = vmatmul.f32.gmra.mxu0 %v2581
        %v2583 = vpop.f32.mrf.mxu0
        %v2584 = vadd.f32 0.0, %v2583
        %v2585 = vand.u32 %v2522, 4294901760
        %v2586 = vsub.f32 %v2522, %v2585
        %v2587 = vand.u32 %v2586, 4294901760
        %v2588 = vsub.f32 %v2586, %v2587
        %v2589 = vand.u32 %v2588, 4294901760
        %2590 = vmatmul.f32.gmra.mxu0 %v2589
        %v2591 = vpop.f32.mrf.mxu0
        %v2592 = vadd.f32 0.0, %v2591
        %v2593 = vand.u32 %v2525, 4294901760
        %v2594 = vsub.f32 %v2525, %v2593
        %v2595 = vand.u32 %v2594, 4294901760
        %v2596 = vsub.f32 %v2594, %v2595
        %v2597 = vand.u32 %v2596, 4294901760
        %2598 = vmatmul.f32.gmra.mxu0 %v2597
        %v2599 = vpop.f32.mrf.mxu0
        %v2600 = vadd.f32 0.0, %v2599
        %v2601 = vand.u32 %v2528, 4294901760
        %v2602 = vsub.f32 %v2528, %v2601
        %v2603 = vand.u32 %v2602, 4294901760
        %v2604 = vsub.f32 %v2602, %v2603
        %v2605 = vand.u32 %v2604, 4294901760
        %2606 = vmatmul.f32.gmra.mxu0 %v2605
        %v2607 = vpop.f32.mrf.mxu0
        %v2608 = vadd.f32 0.0, %v2607
        %v2609 = vand.u32 %v2531, 4294901760
        %v2610 = vsub.f32 %v2531, %v2609
        %v2611 = vand.u32 %v2610, 4294901760
        %v2612 = vsub.f32 %v2610, %v2611
        %v2613 = vand.u32 %v2612, 4294901760
        %2614 = vmatmul.f32.gmra.mxu0 %v2613
        %v2615 = vpop.f32.mrf.mxu0
        %v2616 = vadd.f32 0.0, %v2615
        %2617 = vdwg.mxu0
        %2618 = vmatpush.msra.mxu0 0.0
        %2619 = vmatpush.msra.mxu0 0.0
        %2620 = vmatpush.msra.mxu0 0.0
        %2621 = vmatpush.msra.mxu0 0.0
        %2622 = vmatpush.msra.mxu0 0.0
        %2623 = vmatpush.msra.mxu0 0.0
        %2624 = vmatpush.msra.mxu0 0.0
        %2625 = vmatpush.msra.mxu0 0.0
        %2626 = vmatpush.msra.mxu0 0.0
        %2627 = vmatpush.msra.mxu0 0.0
        %2628 = vmatpush.msra.mxu0 0.0
        %2629 = vmatpush.msra.mxu0 0.0
        %v2630 = vand.u32 %v1863, 4294901760
        %v2631 = vsub.f32 %v1863, %v2630
        %v2632 = vand.u32 %v2631, 4294901760
        %v2633 = vsub.f32 %v2631, %v2632
        %v2634 = vand.u32 %v2633, 4294901760
        %2635 = vmatpush.msra.mxu0 %v2634
        %v2636 = vand.u32 %v1859, 4294901760
        %v2637 = vsub.f32 %v1859, %v2636
        %v2638 = vand.u32 %v2637, 4294901760
        %v2639 = vsub.f32 %v2637, %v2638
        %v2640 = vand.u32 %v2639, 4294901760
        %2641 = vmatpush.msra.mxu0 %v2640
        %v2642 = vand.u32 %v1855, 4294901760
        %v2643 = vsub.f32 %v1855, %v2642
        %v2644 = vand.u32 %v2643, 4294901760
        %v2645 = vsub.f32 %v2643, %v2644
        %v2646 = vand.u32 %v2645, 4294901760
        %2647 = vmatpush.msra.mxu0 %v2646
        %v2648 = vand.u32 %v1851, 4294901760
        %v2649 = vsub.f32 %v1851, %v2648
        %v2650 = vand.u32 %v2649, 4294901760
        %v2651 = vsub.f32 %v2649, %v2650
        %v2652 = vand.u32 %v2651, 4294901760
        %2653 = vmatpush.msra.mxu0 %v2652
        %v2654 = vand.u32 %v2510, 4294901760
        %2655 = vmatmul.f32.gmra.mxu0 %v2654
        %v2656 = vpop.f32.mrf.mxu0
        %v2657 = vadd.f32 %v2560, %v2656
        %v2658 = vand.u32 %v2513, 4294901760
        %2659 = vmatmul.f32.gmra.mxu0 %v2658
        %v2660 = vpop.f32.mrf.mxu0
        %v2661 = vadd.f32 %v2568, %v2660
        %v2662 = vand.u32 %v2516, 4294901760
        %2663 = vmatmul.f32.gmra.mxu0 %v2662
        %v2664 = vpop.f32.mrf.mxu0
        %v2665 = vadd.f32 %v2576, %v2664
        %v2666 = vand.u32 %v2519, 4294901760
        %2667 = vmatmul.f32.gmra.mxu0 %v2666
        %v2668 = vpop.f32.mrf.mxu0
        %v2669 = vadd.f32 %v2584, %v2668
        %v2670 = vand.u32 %v2522, 4294901760
        %2671 = vmatmul.f32.gmra.mxu0 %v2670
        %v2672 = vpop.f32.mrf.mxu0
        %v2673 = vadd.f32 %v2592, %v2672
        %v2674 = vand.u32 %v2525, 4294901760
        %2675 = vmatmul.f32.gmra.mxu0 %v2674
        %v2676 = vpop.f32.mrf.mxu0
        %v2677 = vadd.f32 %v2600, %v2676
        %v2678 = vand.u32 %v2528, 4294901760
        %2679 = vmatmul.f32.gmra.mxu0 %v2678
        %v2680 = vpop.f32.mrf.mxu0
        %v2681 = vadd.f32 %v2608, %v2680
        %v2682 = vand.u32 %v2531, 4294901760
        %2683 = vmatmul.f32.gmra.mxu0 %v2682
        %v2684 = vpop.f32.mrf.mxu0
        %v2685 = vadd.f32 %v2616, %v2684
        %2686 = vdwg.mxu0
        %2687 = vmatpush.msra.mxu0 0.0
        %2688 = vmatpush.msra.mxu0 0.0
        %2689 = vmatpush.msra.mxu0 0.0
        %2690 = vmatpush.msra.mxu0 0.0
        %2691 = vmatpush.msra.mxu0 0.0
        %2692 = vmatpush.msra.mxu0 0.0
        %2693 = vmatpush.msra.mxu0 0.0
        %2694 = vmatpush.msra.mxu0 0.0
        %2695 = vmatpush.msra.mxu0 0.0
        %2696 = vmatpush.msra.mxu0 0.0
        %2697 = vmatpush.msra.mxu0 0.0
        %2698 = vmatpush.msra.mxu0 0.0
        %v2699 = vand.u32 %v1863, 4294901760
        %v2700 = vsub.f32 %v1863, %v2699
        %2701 = vmatpush.msra.mxu0 %v2700
        %v2702 = vand.u32 %v1859, 4294901760
        %v2703 = vsub.f32 %v1859, %v2702
        %2704 = vmatpush.msra.mxu0 %v2703
        %v2705 = vand.u32 %v1855, 4294901760
        %v2706 = vsub.f32 %v1855, %v2705
        %2707 = vmatpush.msra.mxu0 %v2706
        %v2708 = vand.u32 %v1851, 4294901760
        %v2709 = vsub.f32 %v1851, %v2708
        %2710 = vmatpush.msra.mxu0 %v2709
        %v2711 = vand.u32 %v2510, 4294901760
        %v2712 = vsub.f32 %v2510, %v2711
        %2713 = vmatmul.f32.gmra.mxu0 %v2712
        %v2714 = vpop.f32.mrf.mxu0
        %v2715 = vadd.f32 %v2657, %v2714
        %v2716 = vand.u32 %v2513, 4294901760
        %v2717 = vsub.f32 %v2513, %v2716
        %2718 = vmatmul.f32.gmra.mxu0 %v2717
        %v2719 = vpop.f32.mrf.mxu0
        %v2720 = vadd.f32 %v2661, %v2719
        %v2721 = vand.u32 %v2516, 4294901760
        %v2722 = vsub.f32 %v2516, %v2721
        %2723 = vmatmul.f32.gmra.mxu0 %v2722
        %v2724 = vpop.f32.mrf.mxu0
        %v2725 = vadd.f32 %v2665, %v2724
        %v2726 = vand.u32 %v2519, 4294901760
        %v2727 = vsub.f32 %v2519, %v2726
        %2728 = vmatmul.f32.gmra.mxu0 %v2727
        %v2729 = vpop.f32.mrf.mxu0
        %v2730 = vadd.f32 %v2669, %v2729
        %v2731 = vand.u32 %v2522, 4294901760
        %v2732 = vsub.f32 %v2522, %v2731
        %2733 = vmatmul.f32.gmra.mxu0 %v2732
        %v2734 = vpop.f32.mrf.mxu0
        %v2735 = vadd.f32 %v2673, %v2734
        %v2736 = vand.u32 %v2525, 4294901760
        %v2737 = vsub.f32 %v2525, %v2736
        %2738 = vmatmul.f32.gmra.mxu0 %v2737
        %v2739 = vpop.f32.mrf.mxu0
        %v2740 = vadd.f32 %v2677, %v2739
        %v2741 = vand.u32 %v2528, 4294901760
        %v2742 = vsub.f32 %v2528, %v2741
        %2743 = vmatmul.f32.gmra.mxu0 %v2742
        %v2744 = vpop.f32.mrf.mxu0
        %v2745 = vadd.f32 %v2681, %v2744
        %v2746 = vand.u32 %v2531, 4294901760
        %v2747 = vsub.f32 %v2531, %v2746
        %2748 = vmatmul.f32.gmra.mxu0 %v2747
        %v2749 = vpop.f32.mrf.mxu0
        %v2750 = vadd.f32 %v2685, %v2749
        %2751 = vdwg.mxu0
        %2752 = vmatpush.msra.mxu0 0.0
        %2753 = vmatpush.msra.mxu0 0.0
        %2754 = vmatpush.msra.mxu0 0.0
        %2755 = vmatpush.msra.mxu0 0.0
        %2756 = vmatpush.msra.mxu0 0.0
        %2757 = vmatpush.msra.mxu0 0.0
        %2758 = vmatpush.msra.mxu0 0.0
        %2759 = vmatpush.msra.mxu0 0.0
        %2760 = vmatpush.msra.mxu0 0.0
        %2761 = vmatpush.msra.mxu0 0.0
        %2762 = vmatpush.msra.mxu0 0.0
        %2763 = vmatpush.msra.mxu0 0.0
        %v2764 = vand.u32 %v1863, 4294901760
        %2765 = vmatpush.msra.mxu0 %v2764
        %v2766 = vand.u32 %v1859, 4294901760
        %2767 = vmatpush.msra.mxu0 %v2766
        %v2768 = vand.u32 %v1855, 4294901760
        %2769 = vmatpush.msra.mxu0 %v2768
        %v2770 = vand.u32 %v1851, 4294901760
        %2771 = vmatpush.msra.mxu0 %v2770
        %v2772 = vand.u32 %v2510, 4294901760
        %v2773 = vsub.f32 %v2510, %v2772
        %v2774 = vand.u32 %v2773, 4294901760
        %2775 = vmatmul.f32.gmra.mxu0 %v2774
        %v2776 = vpop.f32.mrf.mxu0
        %v2777 = vadd.f32 %v2715, %v2776
        %v2778 = vand.u32 %v2513, 4294901760
        %v2779 = vsub.f32 %v2513, %v2778
        %v2780 = vand.u32 %v2779, 4294901760
        %2781 = vmatmul.f32.gmra.mxu0 %v2780
        %v2782 = vpop.f32.mrf.mxu0
        %v2783 = vadd.f32 %v2720, %v2782
        %v2784 = vand.u32 %v2516, 4294901760
        %v2785 = vsub.f32 %v2516, %v2784
        %v2786 = vand.u32 %v2785, 4294901760
        %2787 = vmatmul.f32.gmra.mxu0 %v2786
        %v2788 = vpop.f32.mrf.mxu0
        %v2789 = vadd.f32 %v2725, %v2788
        %v2790 = vand.u32 %v2519, 4294901760
        %v2791 = vsub.f32 %v2519, %v2790
        %v2792 = vand.u32 %v2791, 4294901760
        %2793 = vmatmul.f32.gmra.mxu0 %v2792
        %v2794 = vpop.f32.mrf.mxu0
        %v2795 = vadd.f32 %v2730, %v2794
        %v2796 = vand.u32 %v2522, 4294901760
        %v2797 = vsub.f32 %v2522, %v2796
        %v2798 = vand.u32 %v2797, 4294901760
        %2799 = vmatmul.f32.gmra.mxu0 %v2798
        %v2800 = vpop.f32.mrf.mxu0
        %v2801 = vadd.f32 %v2735, %v2800
        %v2802 = vand.u32 %v2525, 4294901760
        %v2803 = vsub.f32 %v2525, %v2802
        %v2804 = vand.u32 %v2803, 4294901760
        %2805 = vmatmul.f32.gmra.mxu0 %v2804
        %v2806 = vpop.f32.mrf.mxu0
        %v2807 = vadd.f32 %v2740, %v2806
        %v2808 = vand.u32 %v2528, 4294901760
        %v2809 = vsub.f32 %v2528, %v2808
        %v2810 = vand.u32 %v2809, 4294901760
        %2811 = vmatmul.f32.gmra.mxu0 %v2810
        %v2812 = vpop.f32.mrf.mxu0
        %v2813 = vadd.f32 %v2745, %v2812
        %v2814 = vand.u32 %v2531, 4294901760
        %v2815 = vsub.f32 %v2531, %v2814
        %v2816 = vand.u32 %v2815, 4294901760
        %2817 = vmatmul.f32.gmra.mxu0 %v2816
        %v2818 = vpop.f32.mrf.mxu0
        %v2819 = vadd.f32 %v2750, %v2818
        %2820 = vdwg.mxu0
        %2821 = vmatpush.msra.mxu0 0.0
        %2822 = vmatpush.msra.mxu0 0.0
        %2823 = vmatpush.msra.mxu0 0.0
        %2824 = vmatpush.msra.mxu0 0.0
        %2825 = vmatpush.msra.mxu0 0.0
        %2826 = vmatpush.msra.mxu0 0.0
        %2827 = vmatpush.msra.mxu0 0.0
        %2828 = vmatpush.msra.mxu0 0.0
        %2829 = vmatpush.msra.mxu0 0.0
        %2830 = vmatpush.msra.mxu0 0.0
        %2831 = vmatpush.msra.mxu0 0.0
        %2832 = vmatpush.msra.mxu0 0.0
        %v2833 = vand.u32 %v1863, 4294901760
        %v2834 = vsub.f32 %v1863, %v2833
        %v2835 = vand.u32 %v2834, 4294901760
        %2836 = vmatpush.msra.mxu0 %v2835
        %v2837 = vand.u32 %v1859, 4294901760
        %v2838 = vsub.f32 %v1859, %v2837
        %v2839 = vand.u32 %v2838, 4294901760
        %2840 = vmatpush.msra.mxu0 %v2839
        %v2841 = vand.u32 %v1855, 4294901760
        %v2842 = vsub.f32 %v1855, %v2841
        %v2843 = vand.u32 %v2842, 4294901760
        %2844 = vmatpush.msra.mxu0 %v2843
        %v2845 = vand.u32 %v1851, 4294901760
        %v2846 = vsub.f32 %v1851, %v2845
        %v2847 = vand.u32 %v2846, 4294901760
        %2848 = vmatpush.msra.mxu0 %v2847
        %v2849 = vand.u32 %v2510, 4294901760
        %2850 = vmatmul.f32.gmra.mxu0 %v2849
        %v2851 = vpop.f32.mrf.mxu0
        %v2852 = vadd.f32 %v2777, %v2851
        %v2853 = vand.u32 %v2513, 4294901760
        %2854 = vmatmul.f32.gmra.mxu0 %v2853
        %v2855 = vpop.f32.mrf.mxu0
        %v2856 = vadd.f32 %v2783, %v2855
        %v2857 = vand.u32 %v2516, 4294901760
        %2858 = vmatmul.f32.gmra.mxu0 %v2857
        %v2859 = vpop.f32.mrf.mxu0
        %v2860 = vadd.f32 %v2789, %v2859
        %v2861 = vand.u32 %v2519, 4294901760
        %2862 = vmatmul.f32.gmra.mxu0 %v2861
        %v2863 = vpop.f32.mrf.mxu0
        %v2864 = vadd.f32 %v2795, %v2863
        %v2865 = vand.u32 %v2522, 4294901760
        %2866 = vmatmul.f32.gmra.mxu0 %v2865
        %v2867 = vpop.f32.mrf.mxu0
        %v2868 = vadd.f32 %v2801, %v2867
        %v2869 = vand.u32 %v2525, 4294901760
        %2870 = vmatmul.f32.gmra.mxu0 %v2869
        %v2871 = vpop.f32.mrf.mxu0
        %v2872 = vadd.f32 %v2807, %v2871
        %v2873 = vand.u32 %v2528, 4294901760
        %2874 = vmatmul.f32.gmra.mxu0 %v2873
        %v2875 = vpop.f32.mrf.mxu0
        %v2876 = vadd.f32 %v2813, %v2875
        %v2877 = vand.u32 %v2531, 4294901760
        %2878 = vmatmul.f32.gmra.mxu0 %v2877
        %v2879 = vpop.f32.mrf.mxu0
        %v2880 = vadd.f32 %v2819, %v2879
        %2881 = vdwg.mxu0
        %2882 = vmatpush.msra.mxu0 0.0
        %2883 = vmatpush.msra.mxu0 0.0
        %2884 = vmatpush.msra.mxu0 0.0
        %2885 = vmatpush.msra.mxu0 0.0
        %2886 = vmatpush.msra.mxu0 0.0
        %2887 = vmatpush.msra.mxu0 0.0
        %2888 = vmatpush.msra.mxu0 0.0
        %2889 = vmatpush.msra.mxu0 0.0
        %2890 = vmatpush.msra.mxu0 0.0
        %2891 = vmatpush.msra.mxu0 0.0
        %2892 = vmatpush.msra.mxu0 0.0
        %2893 = vmatpush.msra.mxu0 0.0
        %v2894 = vand.u32 %v1863, 4294901760
        %2895 = vmatpush.msra.mxu0 %v2894
        %v2896 = vand.u32 %v1859, 4294901760
        %2897 = vmatpush.msra.mxu0 %v2896
        %v2898 = vand.u32 %v1855, 4294901760
        %2899 = vmatpush.msra.mxu0 %v2898
        %v2900 = vand.u32 %v1851, 4294901760
        %2901 = vmatpush.msra.mxu0 %v2900
        %v2902 = vand.u32 %v2510, 4294901760
        %2903 = vmatmul.f32.gmra.mxu0 %v2902
        %v2904 = vpop.f32.mrf.mxu0
        %v2905 = vadd.f32 %v2852, %v2904
        %v2906 = vand.u32 %v2513, 4294901760
        %2907 = vmatmul.f32.gmra.mxu0 %v2906
        %v2908 = vpop.f32.mrf.mxu0
        %v2909 = vadd.f32 %v2856, %v2908
        %v2910 = vand.u32 %v2516, 4294901760
        %2911 = vmatmul.f32.gmra.mxu0 %v2910
        %v2912 = vpop.f32.mrf.mxu0
        %v2913 = vadd.f32 %v2860, %v2912
        %v2914 = vand.u32 %v2519, 4294901760
        %2915 = vmatmul.f32.gmra.mxu0 %v2914
        %v2916 = vpop.f32.mrf.mxu0
        %v2917 = vadd.f32 %v2864, %v2916
        %v2918 = vand.u32 %v2522, 4294901760
        %2919 = vmatmul.f32.gmra.mxu0 %v2918
        %v2920 = vpop.f32.mrf.mxu0
        %v2921 = vadd.f32 %v2868, %v2920
        %v2922 = vand.u32 %v2525, 4294901760
        %2923 = vmatmul.f32.gmra.mxu0 %v2922
        %v2924 = vpop.f32.mrf.mxu0
        %v2925 = vadd.f32 %v2872, %v2924
        %v2926 = vand.u32 %v2528, 4294901760
        %2927 = vmatmul.f32.gmra.mxu0 %v2926
        %v2928 = vpop.f32.mrf.mxu0
        %v2929 = vadd.f32 %v2876, %v2928
        %v2930 = vand.u32 %v2531, 4294901760
        %2931 = vmatmul.f32.gmra.mxu0 %v2930
        %v2932 = vpop.f32.mrf.mxu0
        %v2933 = vadd.f32 %v2880, %v2932
        %2934 = vdwg.mxu0
        %2935 = vmatpush.msra.mxu0 0.0
        %2936 = vmatpush.msra.mxu0 0.0
        %2937 = vmatpush.msra.mxu0 0.0
        %2938 = vmatpush.msra.mxu0 0.0
        %2939 = vmatpush.msra.mxu0 0.0
        %2940 = vmatpush.msra.mxu0 0.0
        %2941 = vmatpush.msra.mxu0 0.0
        %2942 = vmatpush.msra.mxu0 0.0
        %2943 = vmatpush.msra.mxu0 0.0
        %2944 = vmatpush.msra.mxu0 0.0
        %2945 = vmatpush.msra.mxu0 0.0
        %2946 = vmatpush.msra.mxu0 0.0
        %v2947 = vand.u32 %v2490, 4294901760
        %2948 = vmatpush.msra.mxu0 %v2947
        %v2949 = vand.u32 %v2486, 4294901760
        %2950 = vmatpush.msra.mxu0 %v2949
        %v2951 = vand.u32 %v2482, 4294901760
        %2952 = vmatpush.msra.mxu0 %v2951
        %v2953 = vand.u32 %v2478, 4294901760
        %2954 = vmatpush.msra.mxu0 %v2953
        %v2955 = vand.u32 %v2510, 4294901760
        %v2956 = vsub.f32 %v2510, %v2955
        %v2957 = vand.u32 %v2956, 4294901760
        %v2958 = vsub.f32 %v2956, %v2957
        %v2959 = vand.u32 %v2958, 4294901760
        %2960 = vmatmul.f32.gmra.mxu0 %v2959
        %v2961 = vpop.f32.mrf.mxu0
        %v2962 = vadd.f32 0.0, %v2961
        %v2963 = vand.u32 %v2513, 4294901760
        %v2964 = vsub.f32 %v2513, %v2963
        %v2965 = vand.u32 %v2964, 4294901760
        %v2966 = vsub.f32 %v2964, %v2965
        %v2967 = vand.u32 %v2966, 4294901760
        %2968 = vmatmul.f32.gmra.mxu0 %v2967
        %v2969 = vpop.f32.mrf.mxu0
        %v2970 = vadd.f32 0.0, %v2969
        %v2971 = vand.u32 %v2516, 4294901760
        %v2972 = vsub.f32 %v2516, %v2971
        %v2973 = vand.u32 %v2972, 4294901760
        %v2974 = vsub.f32 %v2972, %v2973
        %v2975 = vand.u32 %v2974, 4294901760
        %2976 = vmatmul.f32.gmra.mxu0 %v2975
        %v2977 = vpop.f32.mrf.mxu0
        %v2978 = vadd.f32 0.0, %v2977
        %v2979 = vand.u32 %v2519, 4294901760
        %v2980 = vsub.f32 %v2519, %v2979
        %v2981 = vand.u32 %v2980, 4294901760
        %v2982 = vsub.f32 %v2980, %v2981
        %v2983 = vand.u32 %v2982, 4294901760
        %2984 = vmatmul.f32.gmra.mxu0 %v2983
        %v2985 = vpop.f32.mrf.mxu0
        %v2986 = vadd.f32 0.0, %v2985
        %v2987 = vand.u32 %v2522, 4294901760
        %v2988 = vsub.f32 %v2522, %v2987
        %v2989 = vand.u32 %v2988, 4294901760
        %v2990 = vsub.f32 %v2988, %v2989
        %v2991 = vand.u32 %v2990, 4294901760
        %2992 = vmatmul.f32.gmra.mxu0 %v2991
        %v2993 = vpop.f32.mrf.mxu0
        %v2994 = vadd.f32 0.0, %v2993
        %v2995 = vand.u32 %v2525, 4294901760
        %v2996 = vsub.f32 %v2525, %v2995
        %v2997 = vand.u32 %v2996, 4294901760
        %v2998 = vsub.f32 %v2996, %v2997
        %v2999 = vand.u32 %v2998, 4294901760
        %3000 = vmatmul.f32.gmra.mxu0 %v2999
        %v3001 = vpop.f32.mrf.mxu0
        %v3002 = vadd.f32 0.0, %v3001
        %v3003 = vand.u32 %v2528, 4294901760
        %v3004 = vsub.f32 %v2528, %v3003
        %v3005 = vand.u32 %v3004, 4294901760
        %v3006 = vsub.f32 %v3004, %v3005
        %v3007 = vand.u32 %v3006, 4294901760
        %3008 = vmatmul.f32.gmra.mxu0 %v3007
        %v3009 = vpop.f32.mrf.mxu0
        %v3010 = vadd.f32 0.0, %v3009
        %v3011 = vand.u32 %v2531, 4294901760
        %v3012 = vsub.f32 %v2531, %v3011
        %v3013 = vand.u32 %v3012, 4294901760
        %v3014 = vsub.f32 %v3012, %v3013
        %v3015 = vand.u32 %v3014, 4294901760
        %3016 = vmatmul.f32.gmra.mxu0 %v3015
        %v3017 = vpop.f32.mrf.mxu0
        %v3018 = vadd.f32 0.0, %v3017
        %3019 = vdwg.mxu0
        %3020 = vmatpush.msra.mxu0 0.0
        %3021 = vmatpush.msra.mxu0 0.0
        %3022 = vmatpush.msra.mxu0 0.0
        %3023 = vmatpush.msra.mxu0 0.0
        %3024 = vmatpush.msra.mxu0 0.0
        %3025 = vmatpush.msra.mxu0 0.0
        %3026 = vmatpush.msra.mxu0 0.0
        %3027 = vmatpush.msra.mxu0 0.0
        %3028 = vmatpush.msra.mxu0 0.0
        %3029 = vmatpush.msra.mxu0 0.0
        %3030 = vmatpush.msra.mxu0 0.0
        %3031 = vmatpush.msra.mxu0 0.0
        %v3032 = vand.u32 %v2490, 4294901760
        %v3033 = vsub.f32 %v2490, %v3032
        %v3034 = vand.u32 %v3033, 4294901760
        %v3035 = vsub.f32 %v3033, %v3034
        %v3036 = vand.u32 %v3035, 4294901760
        %3037 = vmatpush.msra.mxu0 %v3036
        %v3038 = vand.u32 %v2486, 4294901760
        %v3039 = vsub.f32 %v2486, %v3038
        %v3040 = vand.u32 %v3039, 4294901760
        %v3041 = vsub.f32 %v3039, %v3040
        %v3042 = vand.u32 %v3041, 4294901760
        %3043 = vmatpush.msra.mxu0 %v3042
        %v3044 = vand.u32 %v2482, 4294901760
        %v3045 = vsub.f32 %v2482, %v3044
        %v3046 = vand.u32 %v3045, 4294901760
        %v3047 = vsub.f32 %v3045, %v3046
        %v3048 = vand.u32 %v3047, 4294901760
        %3049 = vmatpush.msra.mxu0 %v3048
        %v3050 = vand.u32 %v2478, 4294901760
        %v3051 = vsub.f32 %v2478, %v3050
        %v3052 = vand.u32 %v3051, 4294901760
        %v3053 = vsub.f32 %v3051, %v3052
        %v3054 = vand.u32 %v3053, 4294901760
        %3055 = vmatpush.msra.mxu0 %v3054
        %v3056 = vand.u32 %v2510, 4294901760
        %3057 = vmatmul.f32.gmra.mxu0 %v3056
        %v3058 = vpop.f32.mrf.mxu0
        %v3059 = vadd.f32 %v2962, %v3058
        %v3060 = vand.u32 %v2513, 4294901760
        %3061 = vmatmul.f32.gmra.mxu0 %v3060
        %v3062 = vpop.f32.mrf.mxu0
        %v3063 = vadd.f32 %v2970, %v3062
        %v3064 = vand.u32 %v2516, 4294901760
        %3065 = vmatmul.f32.gmra.mxu0 %v3064
        %v3066 = vpop.f32.mrf.mxu0
        %v3067 = vadd.f32 %v2978, %v3066
        %v3068 = vand.u32 %v2519, 4294901760
        %3069 = vmatmul.f32.gmra.mxu0 %v3068
        %v3070 = vpop.f32.mrf.mxu0
        %v3071 = vadd.f32 %v2986, %v3070
        %v3072 = vand.u32 %v2522, 4294901760
        %3073 = vmatmul.f32.gmra.mxu0 %v3072
        %v3074 = vpop.f32.mrf.mxu0
        %v3075 = vadd.f32 %v2994, %v3074
        %v3076 = vand.u32 %v2525, 4294901760
        %3077 = vmatmul.f32.gmra.mxu0 %v3076
        %v3078 = vpop.f32.mrf.mxu0
        %v3079 = vadd.f32 %v3002, %v3078
        %v3080 = vand.u32 %v2528, 4294901760
        %3081 = vmatmul.f32.gmra.mxu0 %v3080
        %v3082 = vpop.f32.mrf.mxu0
        %v3083 = vadd.f32 %v3010, %v3082
        %v3084 = vand.u32 %v2531, 4294901760
        %3085 = vmatmul.f32.gmra.mxu0 %v3084
        %v3086 = vpop.f32.mrf.mxu0
        %v3087 = vadd.f32 %v3018, %v3086
        %3088 = vdwg.mxu0
        %3089 = vmatpush.msra.mxu0 0.0
        %3090 = vmatpush.msra.mxu0 0.0
        %3091 = vmatpush.msra.mxu0 0.0
        %3092 = vmatpush.msra.mxu0 0.0
        %3093 = vmatpush.msra.mxu0 0.0
        %3094 = vmatpush.msra.mxu0 0.0
        %3095 = vmatpush.msra.mxu0 0.0
        %3096 = vmatpush.msra.mxu0 0.0
        %3097 = vmatpush.msra.mxu0 0.0
        %3098 = vmatpush.msra.mxu0 0.0
        %3099 = vmatpush.msra.mxu0 0.0
        %3100 = vmatpush.msra.mxu0 0.0
        %v3101 = vand.u32 %v2490, 4294901760
        %v3102 = vsub.f32 %v2490, %v3101
        %3103 = vmatpush.msra.mxu0 %v3102
        %v3104 = vand.u32 %v2486, 4294901760
        %v3105 = vsub.f32 %v2486, %v3104
        %3106 = vmatpush.msra.mxu0 %v3105
        %v3107 = vand.u32 %v2482, 4294901760
        %v3108 = vsub.f32 %v2482, %v3107
        %3109 = vmatpush.msra.mxu0 %v3108
        %v3110 = vand.u32 %v2478, 4294901760
        %v3111 = vsub.f32 %v2478, %v3110
        %3112 = vmatpush.msra.mxu0 %v3111
        %v3113 = vand.u32 %v2510, 4294901760
        %v3114 = vsub.f32 %v2510, %v3113
        %3115 = vmatmul.f32.gmra.mxu0 %v3114
        %v3116 = vpop.f32.mrf.mxu0
        %v3117 = vadd.f32 %v3059, %v3116
        %v3118 = vand.u32 %v2513, 4294901760
        %v3119 = vsub.f32 %v2513, %v3118
        %3120 = vmatmul.f32.gmra.mxu0 %v3119
        %v3121 = vpop.f32.mrf.mxu0
        %v3122 = vadd.f32 %v3063, %v3121
        %v3123 = vand.u32 %v2516, 4294901760
        %v3124 = vsub.f32 %v2516, %v3123
        %3125 = vmatmul.f32.gmra.mxu0 %v3124
        %v3126 = vpop.f32.mrf.mxu0
        %v3127 = vadd.f32 %v3067, %v3126
        %v3128 = vand.u32 %v2519, 4294901760
        %v3129 = vsub.f32 %v2519, %v3128
        %3130 = vmatmul.f32.gmra.mxu0 %v3129
        %v3131 = vpop.f32.mrf.mxu0
        %v3132 = vadd.f32 %v3071, %v3131
        %v3133 = vand.u32 %v2522, 4294901760
        %v3134 = vsub.f32 %v2522, %v3133
        %3135 = vmatmul.f32.gmra.mxu0 %v3134
        %v3136 = vpop.f32.mrf.mxu0
        %v3137 = vadd.f32 %v3075, %v3136
        %v3138 = vand.u32 %v2525, 4294901760
        %v3139 = vsub.f32 %v2525, %v3138
        %3140 = vmatmul.f32.gmra.mxu0 %v3139
        %v3141 = vpop.f32.mrf.mxu0
        %v3142 = vadd.f32 %v3079, %v3141
        %v3143 = vand.u32 %v2528, 4294901760
        %v3144 = vsub.f32 %v2528, %v3143
        %3145 = vmatmul.f32.gmra.mxu0 %v3144
        %v3146 = vpop.f32.mrf.mxu0
        %v3147 = vadd.f32 %v3083, %v3146
        %v3148 = vand.u32 %v2531, 4294901760
        %v3149 = vsub.f32 %v2531, %v3148
        %3150 = vmatmul.f32.gmra.mxu0 %v3149
        %v3151 = vpop.f32.mrf.mxu0
        %v3152 = vadd.f32 %v3087, %v3151
        %3153 = vdwg.mxu0
        %3154 = vmatpush.msra.mxu0 0.0
        %3155 = vmatpush.msra.mxu0 0.0
        %3156 = vmatpush.msra.mxu0 0.0
        %3157 = vmatpush.msra.mxu0 0.0
        %3158 = vmatpush.msra.mxu0 0.0
        %3159 = vmatpush.msra.mxu0 0.0
        %3160 = vmatpush.msra.mxu0 0.0
        %3161 = vmatpush.msra.mxu0 0.0
        %3162 = vmatpush.msra.mxu0 0.0
        %3163 = vmatpush.msra.mxu0 0.0
        %3164 = vmatpush.msra.mxu0 0.0
        %3165 = vmatpush.msra.mxu0 0.0
        %v3166 = vand.u32 %v2490, 4294901760
        %3167 = vmatpush.msra.mxu0 %v3166
        %v3168 = vand.u32 %v2486, 4294901760
        %3169 = vmatpush.msra.mxu0 %v3168
        %v3170 = vand.u32 %v2482, 4294901760
        %3171 = vmatpush.msra.mxu0 %v3170
        %v3172 = vand.u32 %v2478, 4294901760
        %3173 = vmatpush.msra.mxu0 %v3172
        %v3174 = vand.u32 %v2510, 4294901760
        %v3175 = vsub.f32 %v2510, %v3174
        %v3176 = vand.u32 %v3175, 4294901760
        %3177 = vmatmul.f32.gmra.mxu0 %v3176
        %v3178 = vpop.f32.mrf.mxu0
        %v3179 = vadd.f32 %v3117, %v3178
        %v3180 = vand.u32 %v2513, 4294901760
        %v3181 = vsub.f32 %v2513, %v3180
        %v3182 = vand.u32 %v3181, 4294901760
        %3183 = vmatmul.f32.gmra.mxu0 %v3182
        %v3184 = vpop.f32.mrf.mxu0
        %v3185 = vadd.f32 %v3122, %v3184
        %v3186 = vand.u32 %v2516, 4294901760
        %v3187 = vsub.f32 %v2516, %v3186
        %v3188 = vand.u32 %v3187, 4294901760
        %3189 = vmatmul.f32.gmra.mxu0 %v3188
        %v3190 = vpop.f32.mrf.mxu0
        %v3191 = vadd.f32 %v3127, %v3190
        %v3192 = vand.u32 %v2519, 4294901760
        %v3193 = vsub.f32 %v2519, %v3192
        %v3194 = vand.u32 %v3193, 4294901760
        %3195 = vmatmul.f32.gmra.mxu0 %v3194
        %v3196 = vpop.f32.mrf.mxu0
        %v3197 = vadd.f32 %v3132, %v3196
        %v3198 = vand.u32 %v2522, 4294901760
        %v3199 = vsub.f32 %v2522, %v3198
        %v3200 = vand.u32 %v3199, 4294901760
        %3201 = vmatmul.f32.gmra.mxu0 %v3200
        %v3202 = vpop.f32.mrf.mxu0
        %v3203 = vadd.f32 %v3137, %v3202
        %v3204 = vand.u32 %v2525, 4294901760
        %v3205 = vsub.f32 %v2525, %v3204
        %v3206 = vand.u32 %v3205, 4294901760
        %3207 = vmatmul.f32.gmra.mxu0 %v3206
        %v3208 = vpop.f32.mrf.mxu0
        %v3209 = vadd.f32 %v3142, %v3208
        %v3210 = vand.u32 %v2528, 4294901760
        %v3211 = vsub.f32 %v2528, %v3210
        %v3212 = vand.u32 %v3211, 4294901760
        %3213 = vmatmul.f32.gmra.mxu0 %v3212
        %v3214 = vpop.f32.mrf.mxu0
        %v3215 = vadd.f32 %v3147, %v3214
        %v3216 = vand.u32 %v2531, 4294901760
        %v3217 = vsub.f32 %v2531, %v3216
        %v3218 = vand.u32 %v3217, 4294901760
        %3219 = vmatmul.f32.gmra.mxu0 %v3218
        %v3220 = vpop.f32.mrf.mxu0
        %v3221 = vadd.f32 %v3152, %v3220
        %3222 = vdwg.mxu0
        %3223 = vmatpush.msra.mxu0 0.0
        %3224 = vmatpush.msra.mxu0 0.0
        %3225 = vmatpush.msra.mxu0 0.0
        %3226 = vmatpush.msra.mxu0 0.0
        %3227 = vmatpush.msra.mxu0 0.0
        %3228 = vmatpush.msra.mxu0 0.0
        %3229 = vmatpush.msra.mxu0 0.0
        %3230 = vmatpush.msra.mxu0 0.0
        %3231 = vmatpush.msra.mxu0 0.0
        %3232 = vmatpush.msra.mxu0 0.0
        %3233 = vmatpush.msra.mxu0 0.0
        %3234 = vmatpush.msra.mxu0 0.0
        %v3235 = vand.u32 %v2490, 4294901760
        %v3236 = vsub.f32 %v2490, %v3235
        %v3237 = vand.u32 %v3236, 4294901760
        %3238 = vmatpush.msra.mxu0 %v3237
        %v3239 = vand.u32 %v2486, 4294901760
        %v3240 = vsub.f32 %v2486, %v3239
        %v3241 = vand.u32 %v3240, 4294901760
        %3242 = vmatpush.msra.mxu0 %v3241
        %v3243 = vand.u32 %v2482, 4294901760
        %v3244 = vsub.f32 %v2482, %v3243
        %v3245 = vand.u32 %v3244, 4294901760
        %3246 = vmatpush.msra.mxu0 %v3245
        %v3247 = vand.u32 %v2478, 4294901760
        %v3248 = vsub.f32 %v2478, %v3247
        %v3249 = vand.u32 %v3248, 4294901760
        %3250 = vmatpush.msra.mxu0 %v3249
        %v3251 = vand.u32 %v2510, 4294901760
        %3252 = vmatmul.f32.gmra.mxu0 %v3251
        %v3253 = vpop.f32.mrf.mxu0
        %v3254 = vadd.f32 %v3179, %v3253
        %v3255 = vand.u32 %v2513, 4294901760
        %3256 = vmatmul.f32.gmra.mxu0 %v3255
        %v3257 = vpop.f32.mrf.mxu0
        %v3258 = vadd.f32 %v3185, %v3257
        %v3259 = vand.u32 %v2516, 4294901760
        %3260 = vmatmul.f32.gmra.mxu0 %v3259
        %v3261 = vpop.f32.mrf.mxu0
        %v3262 = vadd.f32 %v3191, %v3261
        %v3263 = vand.u32 %v2519, 4294901760
        %3264 = vmatmul.f32.gmra.mxu0 %v3263
        %v3265 = vpop.f32.mrf.mxu0
        %v3266 = vadd.f32 %v3197, %v3265
        %v3267 = vand.u32 %v2522, 4294901760
        %3268 = vmatmul.f32.gmra.mxu0 %v3267
        %v3269 = vpop.f32.mrf.mxu0
        %v3270 = vadd.f32 %v3203, %v3269
        %v3271 = vand.u32 %v2525, 4294901760
        %3272 = vmatmul.f32.gmra.mxu0 %v3271
        %v3273 = vpop.f32.mrf.mxu0
        %v3274 = vadd.f32 %v3209, %v3273
        %v3275 = vand.u32 %v2528, 4294901760
        %3276 = vmatmul.f32.gmra.mxu0 %v3275
        %v3277 = vpop.f32.mrf.mxu0
        %v3278 = vadd.f32 %v3215, %v3277
        %v3279 = vand.u32 %v2531, 4294901760
        %3280 = vmatmul.f32.gmra.mxu0 %v3279
        %v3281 = vpop.f32.mrf.mxu0
        %v3282 = vadd.f32 %v3221, %v3281
        %3283 = vdwg.mxu0
        %3284 = vmatpush.msra.mxu0 0.0
        %3285 = vmatpush.msra.mxu0 0.0
        %3286 = vmatpush.msra.mxu0 0.0
        %3287 = vmatpush.msra.mxu0 0.0
        %3288 = vmatpush.msra.mxu0 0.0
        %3289 = vmatpush.msra.mxu0 0.0
        %3290 = vmatpush.msra.mxu0 0.0
        %3291 = vmatpush.msra.mxu0 0.0
        %3292 = vmatpush.msra.mxu0 0.0
        %3293 = vmatpush.msra.mxu0 0.0
        %3294 = vmatpush.msra.mxu0 0.0
        %3295 = vmatpush.msra.mxu0 0.0
        %v3296 = vand.u32 %v2490, 4294901760
        %3297 = vmatpush.msra.mxu0 %v3296
        %v3298 = vand.u32 %v2486, 4294901760
        %3299 = vmatpush.msra.mxu0 %v3298
        %v3300 = vand.u32 %v2482, 4294901760
        %3301 = vmatpush.msra.mxu0 %v3300
        %v3302 = vand.u32 %v2478, 4294901760
        %3303 = vmatpush.msra.mxu0 %v3302
        %v3304 = vand.u32 %v2510, 4294901760
        %3305 = vmatmul.f32.gmra.mxu0 %v3304
        %v3306 = vpop.f32.mrf.mxu0
        %v3307 = vadd.f32 %v3254, %v3306
        %v3308 = vand.u32 %v2513, 4294901760
        %3309 = vmatmul.f32.gmra.mxu0 %v3308
        %v3310 = vpop.f32.mrf.mxu0
        %v3311 = vadd.f32 %v3258, %v3310
        %v3312 = vand.u32 %v2516, 4294901760
        %3313 = vmatmul.f32.gmra.mxu0 %v3312
        %v3314 = vpop.f32.mrf.mxu0
        %v3315 = vadd.f32 %v3262, %v3314
        %v3316 = vand.u32 %v2519, 4294901760
        %3317 = vmatmul.f32.gmra.mxu0 %v3316
        %v3318 = vpop.f32.mrf.mxu0
        %v3319 = vadd.f32 %v3266, %v3318
        %v3320 = vand.u32 %v2522, 4294901760
        %3321 = vmatmul.f32.gmra.mxu0 %v3320
        %v3322 = vpop.f32.mrf.mxu0
        %v3323 = vadd.f32 %v3270, %v3322
        %v3324 = vand.u32 %v2525, 4294901760
        %3325 = vmatmul.f32.gmra.mxu0 %v3324
        %v3326 = vpop.f32.mrf.mxu0
        %v3327 = vadd.f32 %v3274, %v3326
        %v3328 = vand.u32 %v2528, 4294901760
        %3329 = vmatmul.f32.gmra.mxu0 %v3328
        %v3330 = vpop.f32.mrf.mxu0
        %v3331 = vadd.f32 %v3278, %v3330
        %v3332 = vand.u32 %v2531, 4294901760
        %3333 = vmatmul.f32.gmra.mxu0 %v3332
        %v3334 = vpop.f32.mrf.mxu0
        %v3335 = vadd.f32 %v3282, %v3334
        %3336 = vdwg.mxu0
        %v3338 = vsel %vm2508, %v2492, 0
        %v3341 = vsel %vm2508, %v2493, 0
        %v3344 = vsel %vm2508, %v2494, 0
        %v3347 = vsel %vm2508, %v2495, 0
        %v3350 = vsel %vm2508, %v2496, 0
        %v3353 = vsel %vm2508, %v2497, 0
        %v3356 = vsel %vm2508, %v2498, 0
        %v3359 = vsel %vm2508, %v2499, 0
        %3361 = vmatpush.msra.mxu0 0.0
        %3362 = vmatpush.msra.mxu0 0.0
        %3363 = vmatpush.msra.mxu0 0.0
        %3364 = vmatpush.msra.mxu0 0.0
        %3365 = vmatpush.msra.mxu0 0.0
        %3366 = vmatpush.msra.mxu0 0.0
        %3367 = vmatpush.msra.mxu0 0.0
        %3368 = vmatpush.msra.mxu0 0.0
        %3369 = vmatpush.msra.mxu0 0.0
        %3370 = vmatpush.msra.mxu0 0.0
        %3371 = vmatpush.msra.mxu0 0.0
        %3372 = vmatpush.msra.mxu0 0.0
        %v3373 = vand.u32 %v892, 4294901760
        %3374 = vmatpush.msra.mxu0 %v3373
        %v3375 = vand.u32 %v888, 4294901760
        %3376 = vmatpush.msra.mxu0 %v3375
        %v3377 = vand.u32 %v884, 4294901760
        %3378 = vmatpush.msra.mxu0 %v3377
        %v3379 = vand.u32 %v880, 4294901760
        %3380 = vmatpush.msra.mxu0 %v3379
        %v3381 = vand.u32 %v3338, 4294901760
        %v3382 = vsub.f32 %v3338, %v3381
        %v3383 = vand.u32 %v3382, 4294901760
        %v3384 = vsub.f32 %v3382, %v3383
        %v3385 = vand.u32 %v3384, 4294901760
        %3386 = vmatmul.f32.gmra.mxu0 %v3385
        %v3387 = vpop.f32.mrf.mxu0
        %v3388 = vadd.f32 %v2905, %v3387
        %v3389 = vand.u32 %v3341, 4294901760
        %v3390 = vsub.f32 %v3341, %v3389
        %v3391 = vand.u32 %v3390, 4294901760
        %v3392 = vsub.f32 %v3390, %v3391
        %v3393 = vand.u32 %v3392, 4294901760
        %3394 = vmatmul.f32.gmra.mxu0 %v3393
        %v3395 = vpop.f32.mrf.mxu0
        %v3396 = vadd.f32 %v2909, %v3395
        %v3397 = vand.u32 %v3344, 4294901760
        %v3398 = vsub.f32 %v3344, %v3397
        %v3399 = vand.u32 %v3398, 4294901760
        %v3400 = vsub.f32 %v3398, %v3399
        %v3401 = vand.u32 %v3400, 4294901760
        %3402 = vmatmul.f32.gmra.mxu0 %v3401
        %v3403 = vpop.f32.mrf.mxu0
        %v3404 = vadd.f32 %v2913, %v3403
        %v3405 = vand.u32 %v3347, 4294901760
        %v3406 = vsub.f32 %v3347, %v3405
        %v3407 = vand.u32 %v3406, 4294901760
        %v3408 = vsub.f32 %v3406, %v3407
        %v3409 = vand.u32 %v3408, 4294901760
        %3410 = vmatmul.f32.gmra.mxu0 %v3409
        %v3411 = vpop.f32.mrf.mxu0
        %v3412 = vadd.f32 %v2917, %v3411
        %v3413 = vand.u32 %v3350, 4294901760
        %v3414 = vsub.f32 %v3350, %v3413
        %v3415 = vand.u32 %v3414, 4294901760
        %v3416 = vsub.f32 %v3414, %v3415
        %v3417 = vand.u32 %v3416, 4294901760
        %3418 = vmatmul.f32.gmra.mxu0 %v3417
        %v3419 = vpop.f32.mrf.mxu0
        %v3420 = vadd.f32 %v2921, %v3419
        %v3421 = vand.u32 %v3353, 4294901760
        %v3422 = vsub.f32 %v3353, %v3421
        %v3423 = vand.u32 %v3422, 4294901760
        %v3424 = vsub.f32 %v3422, %v3423
        %v3425 = vand.u32 %v3424, 4294901760
        %3426 = vmatmul.f32.gmra.mxu0 %v3425
        %v3427 = vpop.f32.mrf.mxu0
        %v3428 = vadd.f32 %v2925, %v3427
        %v3429 = vand.u32 %v3356, 4294901760
        %v3430 = vsub.f32 %v3356, %v3429
        %v3431 = vand.u32 %v3430, 4294901760
        %v3432 = vsub.f32 %v3430, %v3431
        %v3433 = vand.u32 %v3432, 4294901760
        %3434 = vmatmul.f32.gmra.mxu0 %v3433
        %v3435 = vpop.f32.mrf.mxu0
        %v3436 = vadd.f32 %v2929, %v3435
        %v3437 = vand.u32 %v3359, 4294901760
        %v3438 = vsub.f32 %v3359, %v3437
        %v3439 = vand.u32 %v3438, 4294901760
        %v3440 = vsub.f32 %v3438, %v3439
        %v3441 = vand.u32 %v3440, 4294901760
        %3442 = vmatmul.f32.gmra.mxu0 %v3441
        %v3443 = vpop.f32.mrf.mxu0
        %v3444 = vadd.f32 %v2933, %v3443
        %3445 = vdwg.mxu0
        %3446 = vmatpush.msra.mxu0 0.0
        %3447 = vmatpush.msra.mxu0 0.0
        %3448 = vmatpush.msra.mxu0 0.0
        %3449 = vmatpush.msra.mxu0 0.0
        %3450 = vmatpush.msra.mxu0 0.0
        %3451 = vmatpush.msra.mxu0 0.0
        %3452 = vmatpush.msra.mxu0 0.0
        %3453 = vmatpush.msra.mxu0 0.0
        %3454 = vmatpush.msra.mxu0 0.0
        %3455 = vmatpush.msra.mxu0 0.0
        %3456 = vmatpush.msra.mxu0 0.0
        %3457 = vmatpush.msra.mxu0 0.0
        %v3458 = vand.u32 %v892, 4294901760
        %v3459 = vsub.f32 %v892, %v3458
        %v3460 = vand.u32 %v3459, 4294901760
        %v3461 = vsub.f32 %v3459, %v3460
        %v3462 = vand.u32 %v3461, 4294901760
        %3463 = vmatpush.msra.mxu0 %v3462
        %v3464 = vand.u32 %v888, 4294901760
        %v3465 = vsub.f32 %v888, %v3464
        %v3466 = vand.u32 %v3465, 4294901760
        %v3467 = vsub.f32 %v3465, %v3466
        %v3468 = vand.u32 %v3467, 4294901760
        %3469 = vmatpush.msra.mxu0 %v3468
        %v3470 = vand.u32 %v884, 4294901760
        %v3471 = vsub.f32 %v884, %v3470
        %v3472 = vand.u32 %v3471, 4294901760
        %v3473 = vsub.f32 %v3471, %v3472
        %v3474 = vand.u32 %v3473, 4294901760
        %3475 = vmatpush.msra.mxu0 %v3474
        %v3476 = vand.u32 %v880, 4294901760
        %v3477 = vsub.f32 %v880, %v3476
        %v3478 = vand.u32 %v3477, 4294901760
        %v3479 = vsub.f32 %v3477, %v3478
        %v3480 = vand.u32 %v3479, 4294901760
        %3481 = vmatpush.msra.mxu0 %v3480
        %v3482 = vand.u32 %v3338, 4294901760
        %3483 = vmatmul.f32.gmra.mxu0 %v3482
        %v3484 = vpop.f32.mrf.mxu0
        %v3485 = vadd.f32 %v3388, %v3484
        %v3486 = vand.u32 %v3341, 4294901760
        %3487 = vmatmul.f32.gmra.mxu0 %v3486
        %v3488 = vpop.f32.mrf.mxu0
        %v3489 = vadd.f32 %v3396, %v3488
        %v3490 = vand.u32 %v3344, 4294901760
        %3491 = vmatmul.f32.gmra.mxu0 %v3490
        %v3492 = vpop.f32.mrf.mxu0
        %v3493 = vadd.f32 %v3404, %v3492
        %v3494 = vand.u32 %v3347, 4294901760
        %3495 = vmatmul.f32.gmra.mxu0 %v3494
        %v3496 = vpop.f32.mrf.mxu0
        %v3497 = vadd.f32 %v3412, %v3496
        %v3498 = vand.u32 %v3350, 4294901760
        %3499 = vmatmul.f32.gmra.mxu0 %v3498
        %v3500 = vpop.f32.mrf.mxu0
        %v3501 = vadd.f32 %v3420, %v3500
        %v3502 = vand.u32 %v3353, 4294901760
        %3503 = vmatmul.f32.gmra.mxu0 %v3502
        %v3504 = vpop.f32.mrf.mxu0
        %v3505 = vadd.f32 %v3428, %v3504
        %v3506 = vand.u32 %v3356, 4294901760
        %3507 = vmatmul.f32.gmra.mxu0 %v3506
        %v3508 = vpop.f32.mrf.mxu0
        %v3509 = vadd.f32 %v3436, %v3508
        %v3510 = vand.u32 %v3359, 4294901760
        %3511 = vmatmul.f32.gmra.mxu0 %v3510
        %v3512 = vpop.f32.mrf.mxu0
        %v3513 = vadd.f32 %v3444, %v3512
        %3514 = vdwg.mxu0
        %3515 = vmatpush.msra.mxu0 0.0
        %3516 = vmatpush.msra.mxu0 0.0
        %3517 = vmatpush.msra.mxu0 0.0
        %3518 = vmatpush.msra.mxu0 0.0
        %3519 = vmatpush.msra.mxu0 0.0
        %3520 = vmatpush.msra.mxu0 0.0
        %3521 = vmatpush.msra.mxu0 0.0
        %3522 = vmatpush.msra.mxu0 0.0
        %3523 = vmatpush.msra.mxu0 0.0
        %3524 = vmatpush.msra.mxu0 0.0
        %3525 = vmatpush.msra.mxu0 0.0
        %3526 = vmatpush.msra.mxu0 0.0
        %v3527 = vand.u32 %v892, 4294901760
        %v3528 = vsub.f32 %v892, %v3527
        %3529 = vmatpush.msra.mxu0 %v3528
        %v3530 = vand.u32 %v888, 4294901760
        %v3531 = vsub.f32 %v888, %v3530
        %3532 = vmatpush.msra.mxu0 %v3531
        %v3533 = vand.u32 %v884, 4294901760
        %v3534 = vsub.f32 %v884, %v3533
        %3535 = vmatpush.msra.mxu0 %v3534
        %v3536 = vand.u32 %v880, 4294901760
        %v3537 = vsub.f32 %v880, %v3536
        %3538 = vmatpush.msra.mxu0 %v3537
        %v3539 = vand.u32 %v3338, 4294901760
        %v3540 = vsub.f32 %v3338, %v3539
        %3541 = vmatmul.f32.gmra.mxu0 %v3540
        %v3542 = vpop.f32.mrf.mxu0
        %v3543 = vadd.f32 %v3485, %v3542
        %v3544 = vand.u32 %v3341, 4294901760
        %v3545 = vsub.f32 %v3341, %v3544
        %3546 = vmatmul.f32.gmra.mxu0 %v3545
        %v3547 = vpop.f32.mrf.mxu0
        %v3548 = vadd.f32 %v3489, %v3547
        %v3549 = vand.u32 %v3344, 4294901760
        %v3550 = vsub.f32 %v3344, %v3549
        %3551 = vmatmul.f32.gmra.mxu0 %v3550
        %v3552 = vpop.f32.mrf.mxu0
        %v3553 = vadd.f32 %v3493, %v3552
        %v3554 = vand.u32 %v3347, 4294901760
        %v3555 = vsub.f32 %v3347, %v3554
        %3556 = vmatmul.f32.gmra.mxu0 %v3555
        %v3557 = vpop.f32.mrf.mxu0
        %v3558 = vadd.f32 %v3497, %v3557
        %v3559 = vand.u32 %v3350, 4294901760
        %v3560 = vsub.f32 %v3350, %v3559
        %3561 = vmatmul.f32.gmra.mxu0 %v3560
        %v3562 = vpop.f32.mrf.mxu0
        %v3563 = vadd.f32 %v3501, %v3562
        %v3564 = vand.u32 %v3353, 4294901760
        %v3565 = vsub.f32 %v3353, %v3564
        %3566 = vmatmul.f32.gmra.mxu0 %v3565
        %v3567 = vpop.f32.mrf.mxu0
        %v3568 = vadd.f32 %v3505, %v3567
        %v3569 = vand.u32 %v3356, 4294901760
        %v3570 = vsub.f32 %v3356, %v3569
        %3571 = vmatmul.f32.gmra.mxu0 %v3570
        %v3572 = vpop.f32.mrf.mxu0
        %v3573 = vadd.f32 %v3509, %v3572
        %v3574 = vand.u32 %v3359, 4294901760
        %v3575 = vsub.f32 %v3359, %v3574
        %3576 = vmatmul.f32.gmra.mxu0 %v3575
        %v3577 = vpop.f32.mrf.mxu0
        %v3578 = vadd.f32 %v3513, %v3577
        %3579 = vdwg.mxu0
        %3580 = vmatpush.msra.mxu0 0.0
        %3581 = vmatpush.msra.mxu0 0.0
        %3582 = vmatpush.msra.mxu0 0.0
        %3583 = vmatpush.msra.mxu0 0.0
        %3584 = vmatpush.msra.mxu0 0.0
        %3585 = vmatpush.msra.mxu0 0.0
        %3586 = vmatpush.msra.mxu0 0.0
        %3587 = vmatpush.msra.mxu0 0.0
        %3588 = vmatpush.msra.mxu0 0.0
        %3589 = vmatpush.msra.mxu0 0.0
        %3590 = vmatpush.msra.mxu0 0.0
        %3591 = vmatpush.msra.mxu0 0.0
        %v3592 = vand.u32 %v892, 4294901760
        %3593 = vmatpush.msra.mxu0 %v3592
        %v3594 = vand.u32 %v888, 4294901760
        %3595 = vmatpush.msra.mxu0 %v3594
        %v3596 = vand.u32 %v884, 4294901760
        %3597 = vmatpush.msra.mxu0 %v3596
        %v3598 = vand.u32 %v880, 4294901760
        %3599 = vmatpush.msra.mxu0 %v3598
        %v3600 = vand.u32 %v3338, 4294901760
        %v3601 = vsub.f32 %v3338, %v3600
        %v3602 = vand.u32 %v3601, 4294901760
        %3603 = vmatmul.f32.gmra.mxu0 %v3602
        %v3604 = vpop.f32.mrf.mxu0
        %v3605 = vadd.f32 %v3543, %v3604
        %v3606 = vand.u32 %v3341, 4294901760
        %v3607 = vsub.f32 %v3341, %v3606
        %v3608 = vand.u32 %v3607, 4294901760
        %3609 = vmatmul.f32.gmra.mxu0 %v3608
        %v3610 = vpop.f32.mrf.mxu0
        %v3611 = vadd.f32 %v3548, %v3610
        %v3612 = vand.u32 %v3344, 4294901760
        %v3613 = vsub.f32 %v3344, %v3612
        %v3614 = vand.u32 %v3613, 4294901760
        %3615 = vmatmul.f32.gmra.mxu0 %v3614
        %v3616 = vpop.f32.mrf.mxu0
        %v3617 = vadd.f32 %v3553, %v3616
        %v3618 = vand.u32 %v3347, 4294901760
        %v3619 = vsub.f32 %v3347, %v3618
        %v3620 = vand.u32 %v3619, 4294901760
        %3621 = vmatmul.f32.gmra.mxu0 %v3620
        %v3622 = vpop.f32.mrf.mxu0
        %v3623 = vadd.f32 %v3558, %v3622
        %v3624 = vand.u32 %v3350, 4294901760
        %v3625 = vsub.f32 %v3350, %v3624
        %v3626 = vand.u32 %v3625, 4294901760
        %3627 = vmatmul.f32.gmra.mxu0 %v3626
        %v3628 = vpop.f32.mrf.mxu0
        %v3629 = vadd.f32 %v3563, %v3628
        %v3630 = vand.u32 %v3353, 4294901760
        %v3631 = vsub.f32 %v3353, %v3630
        %v3632 = vand.u32 %v3631, 4294901760
        %3633 = vmatmul.f32.gmra.mxu0 %v3632
        %v3634 = vpop.f32.mrf.mxu0
        %v3635 = vadd.f32 %v3568, %v3634
        %v3636 = vand.u32 %v3356, 4294901760
        %v3637 = vsub.f32 %v3356, %v3636
        %v3638 = vand.u32 %v3637, 4294901760
        %3639 = vmatmul.f32.gmra.mxu0 %v3638
        %v3640 = vpop.f32.mrf.mxu0
        %v3641 = vadd.f32 %v3573, %v3640
        %v3642 = vand.u32 %v3359, 4294901760
        %v3643 = vsub.f32 %v3359, %v3642
        %v3644 = vand.u32 %v3643, 4294901760
        %3645 = vmatmul.f32.gmra.mxu0 %v3644
        %v3646 = vpop.f32.mrf.mxu0
        %v3647 = vadd.f32 %v3578, %v3646
        %3648 = vdwg.mxu0
        %3649 = vmatpush.msra.mxu0 0.0
        %3650 = vmatpush.msra.mxu0 0.0
        %3651 = vmatpush.msra.mxu0 0.0
        %3652 = vmatpush.msra.mxu0 0.0
        %3653 = vmatpush.msra.mxu0 0.0
        %3654 = vmatpush.msra.mxu0 0.0
        %3655 = vmatpush.msra.mxu0 0.0
        %3656 = vmatpush.msra.mxu0 0.0
        %3657 = vmatpush.msra.mxu0 0.0
        %3658 = vmatpush.msra.mxu0 0.0
        %3659 = vmatpush.msra.mxu0 0.0
        %3660 = vmatpush.msra.mxu0 0.0
        %v3661 = vand.u32 %v892, 4294901760
        %v3662 = vsub.f32 %v892, %v3661
        %v3663 = vand.u32 %v3662, 4294901760
        %3664 = vmatpush.msra.mxu0 %v3663
        %v3665 = vand.u32 %v888, 4294901760
        %v3666 = vsub.f32 %v888, %v3665
        %v3667 = vand.u32 %v3666, 4294901760
        %3668 = vmatpush.msra.mxu0 %v3667
        %v3669 = vand.u32 %v884, 4294901760
        %v3670 = vsub.f32 %v884, %v3669
        %v3671 = vand.u32 %v3670, 4294901760
        %3672 = vmatpush.msra.mxu0 %v3671
        %v3673 = vand.u32 %v880, 4294901760
        %v3674 = vsub.f32 %v880, %v3673
        %v3675 = vand.u32 %v3674, 4294901760
        %3676 = vmatpush.msra.mxu0 %v3675
        %v3677 = vand.u32 %v3338, 4294901760
        %3678 = vmatmul.f32.gmra.mxu0 %v3677
        %v3679 = vpop.f32.mrf.mxu0
        %v3680 = vadd.f32 %v3605, %v3679
        %v3681 = vand.u32 %v3341, 4294901760
        %3682 = vmatmul.f32.gmra.mxu0 %v3681
        %v3683 = vpop.f32.mrf.mxu0
        %v3684 = vadd.f32 %v3611, %v3683
        %v3685 = vand.u32 %v3344, 4294901760
        %3686 = vmatmul.f32.gmra.mxu0 %v3685
        %v3687 = vpop.f32.mrf.mxu0
        %v3688 = vadd.f32 %v3617, %v3687
        %v3689 = vand.u32 %v3347, 4294901760
        %3690 = vmatmul.f32.gmra.mxu0 %v3689
        %v3691 = vpop.f32.mrf.mxu0
        %v3692 = vadd.f32 %v3623, %v3691
        %v3693 = vand.u32 %v3350, 4294901760
        %3694 = vmatmul.f32.gmra.mxu0 %v3693
        %v3695 = vpop.f32.mrf.mxu0
        %v3696 = vadd.f32 %v3629, %v3695
        %v3697 = vand.u32 %v3353, 4294901760
        %3698 = vmatmul.f32.gmra.mxu0 %v3697
        %v3699 = vpop.f32.mrf.mxu0
        %v3700 = vadd.f32 %v3635, %v3699
        %v3701 = vand.u32 %v3356, 4294901760
        %3702 = vmatmul.f32.gmra.mxu0 %v3701
        %v3703 = vpop.f32.mrf.mxu0
        %v3704 = vadd.f32 %v3641, %v3703
        %v3705 = vand.u32 %v3359, 4294901760
        %3706 = vmatmul.f32.gmra.mxu0 %v3705
        %v3707 = vpop.f32.mrf.mxu0
        %v3708 = vadd.f32 %v3647, %v3707
        %3709 = vdwg.mxu0
        %3710 = vmatpush.msra.mxu0 0.0
        %3711 = vmatpush.msra.mxu0 0.0
        %3712 = vmatpush.msra.mxu0 0.0
        %3713 = vmatpush.msra.mxu0 0.0
        %3714 = vmatpush.msra.mxu0 0.0
        %3715 = vmatpush.msra.mxu0 0.0
        %3716 = vmatpush.msra.mxu0 0.0
        %3717 = vmatpush.msra.mxu0 0.0
        %3718 = vmatpush.msra.mxu0 0.0
        %3719 = vmatpush.msra.mxu0 0.0
        %3720 = vmatpush.msra.mxu0 0.0
        %3721 = vmatpush.msra.mxu0 0.0
        %v3722 = vand.u32 %v892, 4294901760
        %3723 = vmatpush.msra.mxu0 %v3722
        %v3724 = vand.u32 %v888, 4294901760
        %3725 = vmatpush.msra.mxu0 %v3724
        %v3726 = vand.u32 %v884, 4294901760
        %3727 = vmatpush.msra.mxu0 %v3726
        %v3728 = vand.u32 %v880, 4294901760
        %3729 = vmatpush.msra.mxu0 %v3728
        %v3730 = vand.u32 %v3338, 4294901760
        %3731 = vmatmul.f32.gmra.mxu0 %v3730
        %v3732 = vpop.f32.mrf.mxu0
        %v3733 = vadd.f32 %v3680, %v3732
        %v3734 = vand.u32 %v3341, 4294901760
        %3735 = vmatmul.f32.gmra.mxu0 %v3734
        %v3736 = vpop.f32.mrf.mxu0
        %v3737 = vadd.f32 %v3684, %v3736
        %v3738 = vand.u32 %v3344, 4294901760
        %3739 = vmatmul.f32.gmra.mxu0 %v3738
        %v3740 = vpop.f32.mrf.mxu0
        %v3741 = vadd.f32 %v3688, %v3740
        %v3742 = vand.u32 %v3347, 4294901760
        %3743 = vmatmul.f32.gmra.mxu0 %v3742
        %v3744 = vpop.f32.mrf.mxu0
        %v3745 = vadd.f32 %v3692, %v3744
        %v3746 = vand.u32 %v3350, 4294901760
        %3747 = vmatmul.f32.gmra.mxu0 %v3746
        %v3748 = vpop.f32.mrf.mxu0
        %v3749 = vadd.f32 %v3696, %v3748
        %v3750 = vand.u32 %v3353, 4294901760
        %3751 = vmatmul.f32.gmra.mxu0 %v3750
        %v3752 = vpop.f32.mrf.mxu0
        %v3753 = vadd.f32 %v3700, %v3752
        %v3754 = vand.u32 %v3356, 4294901760
        %3755 = vmatmul.f32.gmra.mxu0 %v3754
        %v3756 = vpop.f32.mrf.mxu0
        %v3757 = vadd.f32 %v3704, %v3756
        %v3758 = vand.u32 %v3359, 4294901760
        %3759 = vmatmul.f32.gmra.mxu0 %v3758
        %v3760 = vpop.f32.mrf.mxu0
        %v3761 = vadd.f32 %v3708, %v3760
        %3762 = vdwg.mxu0
        %3763 = vmatpush.msra.mxu0 0.0
        %3764 = vmatpush.msra.mxu0 0.0
        %3765 = vmatpush.msra.mxu0 0.0
        %3766 = vmatpush.msra.mxu0 0.0
        %3767 = vmatpush.msra.mxu0 0.0
        %3768 = vmatpush.msra.mxu0 0.0
        %3769 = vmatpush.msra.mxu0 0.0
        %3770 = vmatpush.msra.mxu0 0.0
        %3771 = vmatpush.msra.mxu0 0.0
        %3772 = vmatpush.msra.mxu0 0.0
        %3773 = vmatpush.msra.mxu0 0.0
        %3774 = vmatpush.msra.mxu0 0.0
        %v3775 = vand.u32 %v1215, 4294901760
        %3776 = vmatpush.msra.mxu0 %v3775
        %v3777 = vand.u32 %v1211, 4294901760
        %3778 = vmatpush.msra.mxu0 %v3777
        %v3779 = vand.u32 %v1207, 4294901760
        %3780 = vmatpush.msra.mxu0 %v3779
        %v3781 = vand.u32 %v1203, 4294901760
        %3782 = vmatpush.msra.mxu0 %v3781
        %v3783 = vand.u32 %v3338, 4294901760
        %v3784 = vsub.f32 %v3338, %v3783
        %v3785 = vand.u32 %v3784, 4294901760
        %v3786 = vsub.f32 %v3784, %v3785
        %v3787 = vand.u32 %v3786, 4294901760
        %3788 = vmatmul.f32.gmra.mxu0 %v3787
        %v3789 = vpop.f32.mrf.mxu0
        %v3790 = vadd.f32 %v3307, %v3789
        %v3791 = vand.u32 %v3341, 4294901760
        %v3792 = vsub.f32 %v3341, %v3791
        %v3793 = vand.u32 %v3792, 4294901760
        %v3794 = vsub.f32 %v3792, %v3793
        %v3795 = vand.u32 %v3794, 4294901760
        %3796 = vmatmul.f32.gmra.mxu0 %v3795
        %v3797 = vpop.f32.mrf.mxu0
        %v3798 = vadd.f32 %v3311, %v3797
        %v3799 = vand.u32 %v3344, 4294901760
        %v3800 = vsub.f32 %v3344, %v3799
        %v3801 = vand.u32 %v3800, 4294901760
        %v3802 = vsub.f32 %v3800, %v3801
        %v3803 = vand.u32 %v3802, 4294901760
        %3804 = vmatmul.f32.gmra.mxu0 %v3803
        %v3805 = vpop.f32.mrf.mxu0
        %v3806 = vadd.f32 %v3315, %v3805
        %v3807 = vand.u32 %v3347, 4294901760
        %v3808 = vsub.f32 %v3347, %v3807
        %v3809 = vand.u32 %v3808, 4294901760
        %v3810 = vsub.f32 %v3808, %v3809
        %v3811 = vand.u32 %v3810, 4294901760
        %3812 = vmatmul.f32.gmra.mxu0 %v3811
        %v3813 = vpop.f32.mrf.mxu0
        %v3814 = vadd.f32 %v3319, %v3813
        %v3815 = vand.u32 %v3350, 4294901760
        %v3816 = vsub.f32 %v3350, %v3815
        %v3817 = vand.u32 %v3816, 4294901760
        %v3818 = vsub.f32 %v3816, %v3817
        %v3819 = vand.u32 %v3818, 4294901760
        %3820 = vmatmul.f32.gmra.mxu0 %v3819
        %v3821 = vpop.f32.mrf.mxu0
        %v3822 = vadd.f32 %v3323, %v3821
        %v3823 = vand.u32 %v3353, 4294901760
        %v3824 = vsub.f32 %v3353, %v3823
        %v3825 = vand.u32 %v3824, 4294901760
        %v3826 = vsub.f32 %v3824, %v3825
        %v3827 = vand.u32 %v3826, 4294901760
        %3828 = vmatmul.f32.gmra.mxu0 %v3827
        %v3829 = vpop.f32.mrf.mxu0
        %v3830 = vadd.f32 %v3327, %v3829
        %v3831 = vand.u32 %v3356, 4294901760
        %v3832 = vsub.f32 %v3356, %v3831
        %v3833 = vand.u32 %v3832, 4294901760
        %v3834 = vsub.f32 %v3832, %v3833
        %v3835 = vand.u32 %v3834, 4294901760
        %3836 = vmatmul.f32.gmra.mxu0 %v3835
        %v3837 = vpop.f32.mrf.mxu0
        %v3838 = vadd.f32 %v3331, %v3837
        %v3839 = vand.u32 %v3359, 4294901760
        %v3840 = vsub.f32 %v3359, %v3839
        %v3841 = vand.u32 %v3840, 4294901760
        %v3842 = vsub.f32 %v3840, %v3841
        %v3843 = vand.u32 %v3842, 4294901760
        %3844 = vmatmul.f32.gmra.mxu0 %v3843
        %v3845 = vpop.f32.mrf.mxu0
        %v3846 = vadd.f32 %v3335, %v3845
        %3847 = vdwg.mxu0
        %3848 = vmatpush.msra.mxu0 0.0
        %3849 = vmatpush.msra.mxu0 0.0
        %3850 = vmatpush.msra.mxu0 0.0
        %3851 = vmatpush.msra.mxu0 0.0
        %3852 = vmatpush.msra.mxu0 0.0
        %3853 = vmatpush.msra.mxu0 0.0
        %3854 = vmatpush.msra.mxu0 0.0
        %3855 = vmatpush.msra.mxu0 0.0
        %3856 = vmatpush.msra.mxu0 0.0
        %3857 = vmatpush.msra.mxu0 0.0
        %3858 = vmatpush.msra.mxu0 0.0
        %3859 = vmatpush.msra.mxu0 0.0
        %v3860 = vand.u32 %v1215, 4294901760
        %v3861 = vsub.f32 %v1215, %v3860
        %v3862 = vand.u32 %v3861, 4294901760
        %v3863 = vsub.f32 %v3861, %v3862
        %v3864 = vand.u32 %v3863, 4294901760
        %3865 = vmatpush.msra.mxu0 %v3864
        %v3866 = vand.u32 %v1211, 4294901760
        %v3867 = vsub.f32 %v1211, %v3866
        %v3868 = vand.u32 %v3867, 4294901760
        %v3869 = vsub.f32 %v3867, %v3868
        %v3870 = vand.u32 %v3869, 4294901760
        %3871 = vmatpush.msra.mxu0 %v3870
        %v3872 = vand.u32 %v1207, 4294901760
        %v3873 = vsub.f32 %v1207, %v3872
        %v3874 = vand.u32 %v3873, 4294901760
        %v3875 = vsub.f32 %v3873, %v3874
        %v3876 = vand.u32 %v3875, 4294901760
        %3877 = vmatpush.msra.mxu0 %v3876
        %v3878 = vand.u32 %v1203, 4294901760
        %v3879 = vsub.f32 %v1203, %v3878
        %v3880 = vand.u32 %v3879, 4294901760
        %v3881 = vsub.f32 %v3879, %v3880
        %v3882 = vand.u32 %v3881, 4294901760
        %3883 = vmatpush.msra.mxu0 %v3882
        %v3884 = vand.u32 %v3338, 4294901760
        %3885 = vmatmul.f32.gmra.mxu0 %v3884
        %v3886 = vpop.f32.mrf.mxu0
        %v3887 = vadd.f32 %v3790, %v3886
        %v3888 = vand.u32 %v3341, 4294901760
        %3889 = vmatmul.f32.gmra.mxu0 %v3888
        %v3890 = vpop.f32.mrf.mxu0
        %v3891 = vadd.f32 %v3798, %v3890
        %v3892 = vand.u32 %v3344, 4294901760
        %3893 = vmatmul.f32.gmra.mxu0 %v3892
        %v3894 = vpop.f32.mrf.mxu0
        %v3895 = vadd.f32 %v3806, %v3894
        %v3896 = vand.u32 %v3347, 4294901760
        %3897 = vmatmul.f32.gmra.mxu0 %v3896
        %v3898 = vpop.f32.mrf.mxu0
        %v3899 = vadd.f32 %v3814, %v3898
        %v3900 = vand.u32 %v3350, 4294901760
        %3901 = vmatmul.f32.gmra.mxu0 %v3900
        %v3902 = vpop.f32.mrf.mxu0
        %v3903 = vadd.f32 %v3822, %v3902
        %v3904 = vand.u32 %v3353, 4294901760
        %3905 = vmatmul.f32.gmra.mxu0 %v3904
        %v3906 = vpop.f32.mrf.mxu0
        %v3907 = vadd.f32 %v3830, %v3906
        %v3908 = vand.u32 %v3356, 4294901760
        %3909 = vmatmul.f32.gmra.mxu0 %v3908
        %v3910 = vpop.f32.mrf.mxu0
        %v3911 = vadd.f32 %v3838, %v3910
        %v3912 = vand.u32 %v3359, 4294901760
        %3913 = vmatmul.f32.gmra.mxu0 %v3912
        %v3914 = vpop.f32.mrf.mxu0
        %v3915 = vadd.f32 %v3846, %v3914
        %3916 = vdwg.mxu0
        %3917 = vmatpush.msra.mxu0 0.0
        %3918 = vmatpush.msra.mxu0 0.0
        %3919 = vmatpush.msra.mxu0 0.0
        %3920 = vmatpush.msra.mxu0 0.0
        %3921 = vmatpush.msra.mxu0 0.0
        %3922 = vmatpush.msra.mxu0 0.0
        %3923 = vmatpush.msra.mxu0 0.0
        %3924 = vmatpush.msra.mxu0 0.0
        %3925 = vmatpush.msra.mxu0 0.0
        %3926 = vmatpush.msra.mxu0 0.0
        %3927 = vmatpush.msra.mxu0 0.0
        %3928 = vmatpush.msra.mxu0 0.0
        %v3929 = vand.u32 %v1215, 4294901760
        %v3930 = vsub.f32 %v1215, %v3929
        %3931 = vmatpush.msra.mxu0 %v3930
        %v3932 = vand.u32 %v1211, 4294901760
        %v3933 = vsub.f32 %v1211, %v3932
        %3934 = vmatpush.msra.mxu0 %v3933
        %v3935 = vand.u32 %v1207, 4294901760
        %v3936 = vsub.f32 %v1207, %v3935
        %3937 = vmatpush.msra.mxu0 %v3936
        %v3938 = vand.u32 %v1203, 4294901760
        %v3939 = vsub.f32 %v1203, %v3938
        %3940 = vmatpush.msra.mxu0 %v3939
        %v3941 = vand.u32 %v3338, 4294901760
        %v3942 = vsub.f32 %v3338, %v3941
        %3943 = vmatmul.f32.gmra.mxu0 %v3942
        %v3944 = vpop.f32.mrf.mxu0
        %v3945 = vadd.f32 %v3887, %v3944
        %v3946 = vand.u32 %v3341, 4294901760
        %v3947 = vsub.f32 %v3341, %v3946
        %3948 = vmatmul.f32.gmra.mxu0 %v3947
        %v3949 = vpop.f32.mrf.mxu0
        %v3950 = vadd.f32 %v3891, %v3949
        %v3951 = vand.u32 %v3344, 4294901760
        %v3952 = vsub.f32 %v3344, %v3951
        %3953 = vmatmul.f32.gmra.mxu0 %v3952
        %v3954 = vpop.f32.mrf.mxu0
        %v3955 = vadd.f32 %v3895, %v3954
        %v3956 = vand.u32 %v3347, 4294901760
        %v3957 = vsub.f32 %v3347, %v3956
        %3958 = vmatmul.f32.gmra.mxu0 %v3957
        %v3959 = vpop.f32.mrf.mxu0
        %v3960 = vadd.f32 %v3899, %v3959
        %v3961 = vand.u32 %v3350, 4294901760
        %v3962 = vsub.f32 %v3350, %v3961
        %3963 = vmatmul.f32.gmra.mxu0 %v3962
        %v3964 = vpop.f32.mrf.mxu0
        %v3965 = vadd.f32 %v3903, %v3964
        %v3966 = vand.u32 %v3353, 4294901760
        %v3967 = vsub.f32 %v3353, %v3966
        %3968 = vmatmul.f32.gmra.mxu0 %v3967
        %v3969 = vpop.f32.mrf.mxu0
        %v3970 = vadd.f32 %v3907, %v3969
        %v3971 = vand.u32 %v3356, 4294901760
        %v3972 = vsub.f32 %v3356, %v3971
        %3973 = vmatmul.f32.gmra.mxu0 %v3972
        %v3974 = vpop.f32.mrf.mxu0
        %v3975 = vadd.f32 %v3911, %v3974
        %v3976 = vand.u32 %v3359, 4294901760
        %v3977 = vsub.f32 %v3359, %v3976
        %3978 = vmatmul.f32.gmra.mxu0 %v3977
        %v3979 = vpop.f32.mrf.mxu0
        %v3980 = vadd.f32 %v3915, %v3979
        %3981 = vdwg.mxu0
        %3982 = vmatpush.msra.mxu0 0.0
        %3983 = vmatpush.msra.mxu0 0.0
        %3984 = vmatpush.msra.mxu0 0.0
        %3985 = vmatpush.msra.mxu0 0.0
        %3986 = vmatpush.msra.mxu0 0.0
        %3987 = vmatpush.msra.mxu0 0.0
        %3988 = vmatpush.msra.mxu0 0.0
        %3989 = vmatpush.msra.mxu0 0.0
        %3990 = vmatpush.msra.mxu0 0.0
        %3991 = vmatpush.msra.mxu0 0.0
        %3992 = vmatpush.msra.mxu0 0.0
        %3993 = vmatpush.msra.mxu0 0.0
        %v3994 = vand.u32 %v1215, 4294901760
        %3995 = vmatpush.msra.mxu0 %v3994
        %v3996 = vand.u32 %v1211, 4294901760
        %3997 = vmatpush.msra.mxu0 %v3996
        %v3998 = vand.u32 %v1207, 4294901760
        %3999 = vmatpush.msra.mxu0 %v3998
        %v4000 = vand.u32 %v1203, 4294901760
        %4001 = vmatpush.msra.mxu0 %v4000
        %v4002 = vand.u32 %v3338, 4294901760
        %v4003 = vsub.f32 %v3338, %v4002
        %v4004 = vand.u32 %v4003, 4294901760
        %4005 = vmatmul.f32.gmra.mxu0 %v4004
        %v4006 = vpop.f32.mrf.mxu0
        %v4007 = vadd.f32 %v3945, %v4006
        %v4008 = vand.u32 %v3341, 4294901760
        %v4009 = vsub.f32 %v3341, %v4008
        %v4010 = vand.u32 %v4009, 4294901760
        %4011 = vmatmul.f32.gmra.mxu0 %v4010
        %v4012 = vpop.f32.mrf.mxu0
        %v4013 = vadd.f32 %v3950, %v4012
        %v4014 = vand.u32 %v3344, 4294901760
        %v4015 = vsub.f32 %v3344, %v4014
        %v4016 = vand.u32 %v4015, 4294901760
        %4017 = vmatmul.f32.gmra.mxu0 %v4016
        %v4018 = vpop.f32.mrf.mxu0
        %v4019 = vadd.f32 %v3955, %v4018
        %v4020 = vand.u32 %v3347, 4294901760
        %v4021 = vsub.f32 %v3347, %v4020
        %v4022 = vand.u32 %v4021, 4294901760
        %4023 = vmatmul.f32.gmra.mxu0 %v4022
        %v4024 = vpop.f32.mrf.mxu0
        %v4025 = vadd.f32 %v3960, %v4024
        %v4026 = vand.u32 %v3350, 4294901760
        %v4027 = vsub.f32 %v3350, %v4026
        %v4028 = vand.u32 %v4027, 4294901760
        %4029 = vmatmul.f32.gmra.mxu0 %v4028
        %v4030 = vpop.f32.mrf.mxu0
        %v4031 = vadd.f32 %v3965, %v4030
        %v4032 = vand.u32 %v3353, 4294901760
        %v4033 = vsub.f32 %v3353, %v4032
        %v4034 = vand.u32 %v4033, 4294901760
        %4035 = vmatmul.f32.gmra.mxu0 %v4034
        %v4036 = vpop.f32.mrf.mxu0
        %v4037 = vadd.f32 %v3970, %v4036
        %v4038 = vand.u32 %v3356, 4294901760
        %v4039 = vsub.f32 %v3356, %v4038
        %v4040 = vand.u32 %v4039, 4294901760
        %4041 = vmatmul.f32.gmra.mxu0 %v4040
        %v4042 = vpop.f32.mrf.mxu0
        %v4043 = vadd.f32 %v3975, %v4042
        %v4044 = vand.u32 %v3359, 4294901760
        %v4045 = vsub.f32 %v3359, %v4044
        %v4046 = vand.u32 %v4045, 4294901760
        %4047 = vmatmul.f32.gmra.mxu0 %v4046
        %v4048 = vpop.f32.mrf.mxu0
        %v4049 = vadd.f32 %v3980, %v4048
        %4050 = vdwg.mxu0
        %4051 = vmatpush.msra.mxu0 0.0
        %4052 = vmatpush.msra.mxu0 0.0
        %4053 = vmatpush.msra.mxu0 0.0
        %4054 = vmatpush.msra.mxu0 0.0
        %4055 = vmatpush.msra.mxu0 0.0
        %4056 = vmatpush.msra.mxu0 0.0
        %4057 = vmatpush.msra.mxu0 0.0
        %4058 = vmatpush.msra.mxu0 0.0
        %4059 = vmatpush.msra.mxu0 0.0
        %4060 = vmatpush.msra.mxu0 0.0
        %4061 = vmatpush.msra.mxu0 0.0
        %4062 = vmatpush.msra.mxu0 0.0
        %v4063 = vand.u32 %v1215, 4294901760
        %v4064 = vsub.f32 %v1215, %v4063
        %v4065 = vand.u32 %v4064, 4294901760
        %4066 = vmatpush.msra.mxu0 %v4065
        %v4067 = vand.u32 %v1211, 4294901760
        %v4068 = vsub.f32 %v1211, %v4067
        %v4069 = vand.u32 %v4068, 4294901760
        %4070 = vmatpush.msra.mxu0 %v4069
        %v4071 = vand.u32 %v1207, 4294901760
        %v4072 = vsub.f32 %v1207, %v4071
        %v4073 = vand.u32 %v4072, 4294901760
        %4074 = vmatpush.msra.mxu0 %v4073
        %v4075 = vand.u32 %v1203, 4294901760
        %v4076 = vsub.f32 %v1203, %v4075
        %v4077 = vand.u32 %v4076, 4294901760
        %4078 = vmatpush.msra.mxu0 %v4077
        %v4079 = vand.u32 %v3338, 4294901760
        %4080 = vmatmul.f32.gmra.mxu0 %v4079
        %v4081 = vpop.f32.mrf.mxu0
        %v4082 = vadd.f32 %v4007, %v4081
        %v4083 = vand.u32 %v3341, 4294901760
        %4084 = vmatmul.f32.gmra.mxu0 %v4083
        %v4085 = vpop.f32.mrf.mxu0
        %v4086 = vadd.f32 %v4013, %v4085
        %v4087 = vand.u32 %v3344, 4294901760
        %4088 = vmatmul.f32.gmra.mxu0 %v4087
        %v4089 = vpop.f32.mrf.mxu0
        %v4090 = vadd.f32 %v4019, %v4089
        %v4091 = vand.u32 %v3347, 4294901760
        %4092 = vmatmul.f32.gmra.mxu0 %v4091
        %v4093 = vpop.f32.mrf.mxu0
        %v4094 = vadd.f32 %v4025, %v4093
        %v4095 = vand.u32 %v3350, 4294901760
        %4096 = vmatmul.f32.gmra.mxu0 %v4095
        %v4097 = vpop.f32.mrf.mxu0
        %v4098 = vadd.f32 %v4031, %v4097
        %v4099 = vand.u32 %v3353, 4294901760
        %4100 = vmatmul.f32.gmra.mxu0 %v4099
        %v4101 = vpop.f32.mrf.mxu0
        %v4102 = vadd.f32 %v4037, %v4101
        %v4103 = vand.u32 %v3356, 4294901760
        %4104 = vmatmul.f32.gmra.mxu0 %v4103
        %v4105 = vpop.f32.mrf.mxu0
        %v4106 = vadd.f32 %v4043, %v4105
        %v4107 = vand.u32 %v3359, 4294901760
        %4108 = vmatmul.f32.gmra.mxu0 %v4107
        %v4109 = vpop.f32.mrf.mxu0
        %v4110 = vadd.f32 %v4049, %v4109
        %4111 = vdwg.mxu0
        %4112 = vmatpush.msra.mxu0 0.0
        %4113 = vmatpush.msra.mxu0 0.0
        %4114 = vmatpush.msra.mxu0 0.0
        %4115 = vmatpush.msra.mxu0 0.0
        %4116 = vmatpush.msra.mxu0 0.0
        %4117 = vmatpush.msra.mxu0 0.0
        %4118 = vmatpush.msra.mxu0 0.0
        %4119 = vmatpush.msra.mxu0 0.0
        %4120 = vmatpush.msra.mxu0 0.0
        %4121 = vmatpush.msra.mxu0 0.0
        %4122 = vmatpush.msra.mxu0 0.0
        %4123 = vmatpush.msra.mxu0 0.0
        %v4124 = vand.u32 %v1215, 4294901760
        %4125 = vmatpush.msra.mxu0 %v4124
        %v4126 = vand.u32 %v1211, 4294901760
        %4127 = vmatpush.msra.mxu0 %v4126
        %v4128 = vand.u32 %v1207, 4294901760
        %4129 = vmatpush.msra.mxu0 %v4128
        %v4130 = vand.u32 %v1203, 4294901760
        %4131 = vmatpush.msra.mxu0 %v4130
        %v4132 = vand.u32 %v3338, 4294901760
        %4133 = vmatmul.f32.gmra.mxu0 %v4132
        %v4134 = vpop.f32.mrf.mxu0
        %v4135 = vadd.f32 %v4082, %v4134
        %v4136 = vand.u32 %v3341, 4294901760
        %4137 = vmatmul.f32.gmra.mxu0 %v4136
        %v4138 = vpop.f32.mrf.mxu0
        %v4139 = vadd.f32 %v4086, %v4138
        %v4140 = vand.u32 %v3344, 4294901760
        %4141 = vmatmul.f32.gmra.mxu0 %v4140
        %v4142 = vpop.f32.mrf.mxu0
        %v4143 = vadd.f32 %v4090, %v4142
        %v4144 = vand.u32 %v3347, 4294901760
        %4145 = vmatmul.f32.gmra.mxu0 %v4144
        %v4146 = vpop.f32.mrf.mxu0
        %v4147 = vadd.f32 %v4094, %v4146
        %v4148 = vand.u32 %v3350, 4294901760
        %4149 = vmatmul.f32.gmra.mxu0 %v4148
        %v4150 = vpop.f32.mrf.mxu0
        %v4151 = vadd.f32 %v4098, %v4150
        %v4152 = vand.u32 %v3353, 4294901760
        %4153 = vmatmul.f32.gmra.mxu0 %v4152
        %v4154 = vpop.f32.mrf.mxu0
        %v4155 = vadd.f32 %v4102, %v4154
        %v4156 = vand.u32 %v3356, 4294901760
        %4157 = vmatmul.f32.gmra.mxu0 %v4156
        %v4158 = vpop.f32.mrf.mxu0
        %v4159 = vadd.f32 %v4106, %v4158
        %v4160 = vand.u32 %v3359, 4294901760
        %4161 = vmatmul.f32.gmra.mxu0 %v4160
        %v4162 = vpop.f32.mrf.mxu0
        %v4163 = vadd.f32 %v4110, %v4162
        %4164 = vdwg.mxu0
        %v4165 = vld [vmem:[%s5] sm:$0xff]
        %v4166 = vld [vmem:[%s5 + $0x8] sm:$0xff]
        %v4167 = vld [vmem:[%s5 + $0x10] sm:$0xff]
        %v4168 = vld [vmem:[%s5 + $0x18] sm:$0xff]
        %v4169 = vld [vmem:[%s5 + $0x20] sm:$0xff]
        %v4170 = vld [vmem:[%s5 + $0x28] sm:$0xff]
        %v4171 = vld [vmem:[%s5 + $0x30] sm:$0xff]
        %v4172 = vld [vmem:[%s5 + $0x38] sm:$0xff]
        %4174 = vset.pattern.permute.xlu0 0
        %4175 = vperm.xlu0 %4174, %v4165
        %v4176 = vpop.permute.xlu0 %4175
        %4179 = vset.pattern.permute.xlu0 0
        %4180 = vperm.xlu0 %4179, %v4166
        %v4181 = vpop.permute.xlu0 %4180
        %4184 = vset.pattern.permute.xlu0 0
        %4185 = vperm.xlu0 %4184, %v4167
        %v4186 = vpop.permute.xlu0 %4185
        %4189 = vset.pattern.permute.xlu0 0
        %4190 = vperm.xlu0 %4189, %v4168
        %v4191 = vpop.permute.xlu0 %4190
        %4194 = vset.pattern.permute.xlu0 0
        %4195 = vperm.xlu0 %4194, %v4169
        %v4196 = vpop.permute.xlu0 %4195
        %4199 = vset.pattern.permute.xlu0 0
        %4200 = vperm.xlu0 %4199, %v4170
        %v4201 = vpop.permute.xlu0 %4200
        %4204 = vset.pattern.permute.xlu0 0
        %4205 = vperm.xlu0 %4204, %v4171
        %v4206 = vpop.permute.xlu0 %4205
        %4209 = vset.pattern.permute.xlu0 0
        %4210 = vperm.xlu0 %4209, %v4172
        %v4211 = vpop.permute.xlu0 %4210
        %v4213 = vadd.f32 %v3733, %v4176
        %v4214 = vadd.f32 %v4135, %v4176
        %v4215 = vadd.f32 %v3737, %v4181
        %v4216 = vadd.f32 %v4139, %v4181
        %v4217 = vadd.f32 %v3741, %v4186
        %v4218 = vadd.f32 %v4143, %v4186
        %v4219 = vadd.f32 %v3745, %v4191
        %v4220 = vadd.f32 %v4147, %v4191
        %v4221 = vadd.f32 %v3749, %v4196
        %v4222 = vadd.f32 %v4151, %v4196
        %v4223 = vadd.f32 %v3753, %v4201
        %v4224 = vadd.f32 %v4155, %v4201
        %v4225 = vadd.f32 %v3757, %v4206
        %v4226 = vadd.f32 %v4159, %v4206
        %v4227 = vadd.f32 %v3761, %v4211
        %v4228 = vadd.f32 %v4163, %v4211
        %v4229 = vmax.f32 %v4213, 0.0
        %v4230 = vmax.f32 %v4214, 0.0
        %v4231 = vmax.f32 %v4215, 0.0
        %v4232 = vmax.f32 %v4216, 0.0
        %v4233 = vmax.f32 %v4217, 0.0
        %v4234 = vmax.f32 %v4218, 0.0
        %v4235 = vmax.f32 %v4219, 0.0
        %v4236 = vmax.f32 %v4220, 0.0
        %v4237 = vmax.f32 %v4221, 0.0
        %v4238 = vmax.f32 %v4222, 0.0
        %v4239 = vmax.f32 %v4223, 0.0
        %v4240 = vmax.f32 %v4224, 0.0
        %v4241 = vmax.f32 %v4225, 0.0
        %v4242 = vmax.f32 %v4226, 0.0
        %v4243 = vmax.f32 %v4227, 0.0
        %v4244 = vmax.f32 %v4228, 0.0
        %v4245 = vld [vmem:[%s6] sm:$0xff]
        %v4246 = vld [vmem:[%s6 + $0x8] sm:$0xff]
        %v4247 = vld [vmem:[%s6 + $0x10] sm:$0xff]
        %v4248 = vld [vmem:[%s6 + $0x18] sm:$0xff]
        %v4249 = vld [vmem:[%s7] sm:$0xff]
        %v4250 = vld [vmem:[%s7 + $0x8] sm:$0xff]
        %v4251 = vld [vmem:[%s7 + $0x10] sm:$0xff]
        %v4252 = vld [vmem:[%s7 + $0x18] sm:$0xff]
        %4254 = vset.pattern.permute.xlu0 0
        %4255 = vperm.xlu0 %4254, %v4249
        %v4256 = vpop.permute.xlu0 %4255
        %4259 = vset.pattern.permute.xlu0 0
        %4260 = vperm.xlu0 %4259, %v4250
        %v4261 = vpop.permute.xlu0 %4260
        %4264 = vset.pattern.permute.xlu0 0
        %4265 = vperm.xlu0 %4264, %v4251
        %v4266 = vpop.permute.xlu0 %4265
        %4269 = vset.pattern.permute.xlu0 0
        %4270 = vperm.xlu0 %4269, %v4252
        %v4271 = vpop.permute.xlu0 %4270
        %vm4273 = vcmask 523264
        %v4275 = vsel %vm4273, %v4245, 0
        %v4278 = vsel %vm4273, %v4246, 0
        %v4281 = vsel %vm4273, %v4247, 0
        %v4284 = vsel %vm4273, %v4248, 0
        %4286 = vmatpush.msra.mxu0 0.0
        %4287 = vmatpush.msra.mxu0 0.0
        %4288 = vmatpush.msra.mxu0 0.0
        %4289 = vmatpush.msra.mxu0 0.0
        %4290 = vmatpush.msra.mxu0 0.0
        %4291 = vmatpush.msra.mxu0 0.0
        %4292 = vmatpush.msra.mxu0 0.0
        %4293 = vmatpush.msra.mxu0 0.0
        %v4294 = vand.u32 %v4243, 4294901760
        %4295 = vmatpush.msra.mxu0 %v4294
        %v4296 = vand.u32 %v4241, 4294901760
        %4297 = vmatpush.msra.mxu0 %v4296
        %v4298 = vand.u32 %v4239, 4294901760
        %4299 = vmatpush.msra.mxu0 %v4298
        %v4300 = vand.u32 %v4237, 4294901760
        %4301 = vmatpush.msra.mxu0 %v4300
        %v4302 = vand.u32 %v4235, 4294901760
        %4303 = vmatpush.msra.mxu0 %v4302
        %v4304 = vand.u32 %v4233, 4294901760
        %4305 = vmatpush.msra.mxu0 %v4304
        %v4306 = vand.u32 %v4231, 4294901760
        %4307 = vmatpush.msra.mxu0 %v4306
        %v4308 = vand.u32 %v4229, 4294901760
        %4309 = vmatpush.msra.mxu0 %v4308
        %v4310 = vand.u32 %v4275, 4294901760
        %v4311 = vsub.f32 %v4275, %v4310
        %v4312 = vand.u32 %v4311, 4294901760
        %v4313 = vsub.f32 %v4311, %v4312
        %v4314 = vand.u32 %v4313, 4294901760
        %4315 = vmatmul.f32.gmra.mxu0 %v4314
        %v4316 = vpop.f32.mrf.mxu0
        %v4317 = vadd.f32 %v4256, %v4316
        %v4318 = vand.u32 %v4278, 4294901760
        %v4319 = vsub.f32 %v4278, %v4318
        %v4320 = vand.u32 %v4319, 4294901760
        %v4321 = vsub.f32 %v4319, %v4320
        %v4322 = vand.u32 %v4321, 4294901760
        %4323 = vmatmul.f32.gmra.mxu0 %v4322
        %v4324 = vpop.f32.mrf.mxu0
        %v4325 = vadd.f32 %v4261, %v4324
        %v4326 = vand.u32 %v4281, 4294901760
        %v4327 = vsub.f32 %v4281, %v4326
        %v4328 = vand.u32 %v4327, 4294901760
        %v4329 = vsub.f32 %v4327, %v4328
        %v4330 = vand.u32 %v4329, 4294901760
        %4331 = vmatmul.f32.gmra.mxu0 %v4330
        %v4332 = vpop.f32.mrf.mxu0
        %v4333 = vadd.f32 %v4266, %v4332
        %v4334 = vand.u32 %v4284, 4294901760
        %v4335 = vsub.f32 %v4284, %v4334
        %v4336 = vand.u32 %v4335, 4294901760
        %v4337 = vsub.f32 %v4335, %v4336
        %v4338 = vand.u32 %v4337, 4294901760
        %4339 = vmatmul.f32.gmra.mxu0 %v4338
        %v4340 = vpop.f32.mrf.mxu0
        %v4341 = vadd.f32 %v4271, %v4340
        %4342 = vdwg.mxu0
        %4343 = vmatpush.msra.mxu0 0.0
        %4344 = vmatpush.msra.mxu0 0.0
        %4345 = vmatpush.msra.mxu0 0.0
        %4346 = vmatpush.msra.mxu0 0.0
        %4347 = vmatpush.msra.mxu0 0.0
        %4348 = vmatpush.msra.mxu0 0.0
        %4349 = vmatpush.msra.mxu0 0.0
        %4350 = vmatpush.msra.mxu0 0.0
        %v4351 = vand.u32 %v4243, 4294901760
        %v4352 = vsub.f32 %v4243, %v4351
        %v4353 = vand.u32 %v4352, 4294901760
        %v4354 = vsub.f32 %v4352, %v4353
        %v4355 = vand.u32 %v4354, 4294901760
        %4356 = vmatpush.msra.mxu0 %v4355
        %v4357 = vand.u32 %v4241, 4294901760
        %v4358 = vsub.f32 %v4241, %v4357
        %v4359 = vand.u32 %v4358, 4294901760
        %v4360 = vsub.f32 %v4358, %v4359
        %v4361 = vand.u32 %v4360, 4294901760
        %4362 = vmatpush.msra.mxu0 %v4361
        %v4363 = vand.u32 %v4239, 4294901760
        %v4364 = vsub.f32 %v4239, %v4363
        %v4365 = vand.u32 %v4364, 4294901760
        %v4366 = vsub.f32 %v4364, %v4365
        %v4367 = vand.u32 %v4366, 4294901760
        %4368 = vmatpush.msra.mxu0 %v4367
        %v4369 = vand.u32 %v4237, 4294901760
        %v4370 = vsub.f32 %v4237, %v4369
        %v4371 = vand.u32 %v4370, 4294901760
        %v4372 = vsub.f32 %v4370, %v4371
        %v4373 = vand.u32 %v4372, 4294901760
        %4374 = vmatpush.msra.mxu0 %v4373
        %v4375 = vand.u32 %v4235, 4294901760
        %v4376 = vsub.f32 %v4235, %v4375
        %v4377 = vand.u32 %v4376, 4294901760
        %v4378 = vsub.f32 %v4376, %v4377
        %v4379 = vand.u32 %v4378, 4294901760
        %4380 = vmatpush.msra.mxu0 %v4379
        %v4381 = vand.u32 %v4233, 4294901760
        %v4382 = vsub.f32 %v4233, %v4381
        %v4383 = vand.u32 %v4382, 4294901760
        %v4384 = vsub.f32 %v4382, %v4383
        %v4385 = vand.u32 %v4384, 4294901760
        %4386 = vmatpush.msra.mxu0 %v4385
        %v4387 = vand.u32 %v4231, 4294901760
        %v4388 = vsub.f32 %v4231, %v4387
        %v4389 = vand.u32 %v4388, 4294901760
        %v4390 = vsub.f32 %v4388, %v4389
        %v4391 = vand.u32 %v4390, 4294901760
        %4392 = vmatpush.msra.mxu0 %v4391
        %v4393 = vand.u32 %v4229, 4294901760
        %v4394 = vsub.f32 %v4229, %v4393
        %v4395 = vand.u32 %v4394, 4294901760
        %v4396 = vsub.f32 %v4394, %v4395
        %v4397 = vand.u32 %v4396, 4294901760
        %4398 = vmatpush.msra.mxu0 %v4397
        %v4399 = vand.u32 %v4275, 4294901760
        %4400 = vmatmul.f32.gmra.mxu0 %v4399
        %v4401 = vpop.f32.mrf.mxu0
        %v4402 = vadd.f32 %v4317, %v4401
        %v4403 = vand.u32 %v4278, 4294901760
        %4404 = vmatmul.f32.gmra.mxu0 %v4403
        %v4405 = vpop.f32.mrf.mxu0
        %v4406 = vadd.f32 %v4325, %v4405
        %v4407 = vand.u32 %v4281, 4294901760
        %4408 = vmatmul.f32.gmra.mxu0 %v4407
        %v4409 = vpop.f32.mrf.mxu0
        %v4410 = vadd.f32 %v4333, %v4409
        %v4411 = vand.u32 %v4284, 4294901760
        %4412 = vmatmul.f32.gmra.mxu0 %v4411
        %v4413 = vpop.f32.mrf.mxu0
        %v4414 = vadd.f32 %v4341, %v4413
        %4415 = vdwg.mxu0
        %4416 = vmatpush.msra.mxu0 0.0
        %4417 = vmatpush.msra.mxu0 0.0
        %4418 = vmatpush.msra.mxu0 0.0
        %4419 = vmatpush.msra.mxu0 0.0
        %4420 = vmatpush.msra.mxu0 0.0
        %4421 = vmatpush.msra.mxu0 0.0
        %4422 = vmatpush.msra.mxu0 0.0
        %4423 = vmatpush.msra.mxu0 0.0
        %v4424 = vand.u32 %v4243, 4294901760
        %v4425 = vsub.f32 %v4243, %v4424
        %4426 = vmatpush.msra.mxu0 %v4425
        %v4427 = vand.u32 %v4241, 4294901760
        %v4428 = vsub.f32 %v4241, %v4427
        %4429 = vmatpush.msra.mxu0 %v4428
        %v4430 = vand.u32 %v4239, 4294901760
        %v4431 = vsub.f32 %v4239, %v4430
        %4432 = vmatpush.msra.mxu0 %v4431
        %v4433 = vand.u32 %v4237, 4294901760
        %v4434 = vsub.f32 %v4237, %v4433
        %4435 = vmatpush.msra.mxu0 %v4434
        %v4436 = vand.u32 %v4235, 4294901760
        %v4437 = vsub.f32 %v4235, %v4436
        %4438 = vmatpush.msra.mxu0 %v4437
        %v4439 = vand.u32 %v4233, 4294901760
        %v4440 = vsub.f32 %v4233, %v4439
        %4441 = vmatpush.msra.mxu0 %v4440
        %v4442 = vand.u32 %v4231, 4294901760
        %v4443 = vsub.f32 %v4231, %v4442
        %4444 = vmatpush.msra.mxu0 %v4443
        %v4445 = vand.u32 %v4229, 4294901760
        %v4446 = vsub.f32 %v4229, %v4445
        %4447 = vmatpush.msra.mxu0 %v4446
        %v4448 = vand.u32 %v4275, 4294901760
        %v4449 = vsub.f32 %v4275, %v4448
        %4450 = vmatmul.f32.gmra.mxu0 %v4449
        %v4451 = vpop.f32.mrf.mxu0
        %v4452 = vadd.f32 %v4402, %v4451
        %v4453 = vand.u32 %v4278, 4294901760
        %v4454 = vsub.f32 %v4278, %v4453
        %4455 = vmatmul.f32.gmra.mxu0 %v4454
        %v4456 = vpop.f32.mrf.mxu0
        %v4457 = vadd.f32 %v4406, %v4456
        %v4458 = vand.u32 %v4281, 4294901760
        %v4459 = vsub.f32 %v4281, %v4458
        %4460 = vmatmul.f32.gmra.mxu0 %v4459
        %v4461 = vpop.f32.mrf.mxu0
        %v4462 = vadd.f32 %v4410, %v4461
        %v4463 = vand.u32 %v4284, 4294901760
        %v4464 = vsub.f32 %v4284, %v4463
        %4465 = vmatmul.f32.gmra.mxu0 %v4464
        %v4466 = vpop.f32.mrf.mxu0
        %v4467 = vadd.f32 %v4414, %v4466
        %4468 = vdwg.mxu0
        %4469 = vmatpush.msra.mxu0 0.0
        %4470 = vmatpush.msra.mxu0 0.0
        %4471 = vmatpush.msra.mxu0 0.0
        %4472 = vmatpush.msra.mxu0 0.0
        %4473 = vmatpush.msra.mxu0 0.0
        %4474 = vmatpush.msra.mxu0 0.0
        %4475 = vmatpush.msra.mxu0 0.0
        %4476 = vmatpush.msra.mxu0 0.0
        %v4477 = vand.u32 %v4243, 4294901760
        %4478 = vmatpush.msra.mxu0 %v4477
        %v4479 = vand.u32 %v4241, 4294901760
        %4480 = vmatpush.msra.mxu0 %v4479
        %v4481 = vand.u32 %v4239, 4294901760
        %4482 = vmatpush.msra.mxu0 %v4481
        %v4483 = vand.u32 %v4237, 4294901760
        %4484 = vmatpush.msra.mxu0 %v4483
        %v4485 = vand.u32 %v4235, 4294901760
        %4486 = vmatpush.msra.mxu0 %v4485
        %v4487 = vand.u32 %v4233, 4294901760
        %4488 = vmatpush.msra.mxu0 %v4487
        %v4489 = vand.u32 %v4231, 4294901760
        %4490 = vmatpush.msra.mxu0 %v4489
        %v4491 = vand.u32 %v4229, 4294901760
        %4492 = vmatpush.msra.mxu0 %v4491
        %v4493 = vand.u32 %v4275, 4294901760
        %v4494 = vsub.f32 %v4275, %v4493
        %v4495 = vand.u32 %v4494, 4294901760
        %4496 = vmatmul.f32.gmra.mxu0 %v4495
        %v4497 = vpop.f32.mrf.mxu0
        %v4498 = vadd.f32 %v4452, %v4497
        %v4499 = vand.u32 %v4278, 4294901760
        %v4500 = vsub.f32 %v4278, %v4499
        %v4501 = vand.u32 %v4500, 4294901760
        %4502 = vmatmul.f32.gmra.mxu0 %v4501
        %v4503 = vpop.f32.mrf.mxu0
        %v4504 = vadd.f32 %v4457, %v4503
        %v4505 = vand.u32 %v4281, 4294901760
        %v4506 = vsub.f32 %v4281, %v4505
        %v4507 = vand.u32 %v4506, 4294901760
        %4508 = vmatmul.f32.gmra.mxu0 %v4507
        %v4509 = vpop.f32.mrf.mxu0
        %v4510 = vadd.f32 %v4462, %v4509
        %v4511 = vand.u32 %v4284, 4294901760
        %v4512 = vsub.f32 %v4284, %v4511
        %v4513 = vand.u32 %v4512, 4294901760
        %4514 = vmatmul.f32.gmra.mxu0 %v4513
        %v4515 = vpop.f32.mrf.mxu0
        %v4516 = vadd.f32 %v4467, %v4515
        %4517 = vdwg.mxu0
        %4518 = vmatpush.msra.mxu0 0.0
        %4519 = vmatpush.msra.mxu0 0.0
        %4520 = vmatpush.msra.mxu0 0.0
        %4521 = vmatpush.msra.mxu0 0.0
        %4522 = vmatpush.msra.mxu0 0.0
        %4523 = vmatpush.msra.mxu0 0.0
        %4524 = vmatpush.msra.mxu0 0.0
        %4525 = vmatpush.msra.mxu0 0.0
        %v4526 = vand.u32 %v4243, 4294901760
        %v4527 = vsub.f32 %v4243, %v4526
        %v4528 = vand.u32 %v4527, 4294901760
        %4529 = vmatpush.msra.mxu0 %v4528
        %v4530 = vand.u32 %v4241, 4294901760
        %v4531 = vsub.f32 %v4241, %v4530
        %v4532 = vand.u32 %v4531, 4294901760
        %4533 = vmatpush.msra.mxu0 %v4532
        %v4534 = vand.u32 %v4239, 4294901760
        %v4535 = vsub.f32 %v4239, %v4534
        %v4536 = vand.u32 %v4535, 4294901760
        %4537 = vmatpush.msra.mxu0 %v4536
        %v4538 = vand.u32 %v4237, 4294901760
        %v4539 = vsub.f32 %v4237, %v4538
        %v4540 = vand.u32 %v4539, 4294901760
        %4541 = vmatpush.msra.mxu0 %v4540
        %v4542 = vand.u32 %v4235, 4294901760
        %v4543 = vsub.f32 %v4235, %v4542
        %v4544 = vand.u32 %v4543, 4294901760
        %4545 = vmatpush.msra.mxu0 %v4544
        %v4546 = vand.u32 %v4233, 4294901760
        %v4547 = vsub.f32 %v4233, %v4546
        %v4548 = vand.u32 %v4547, 4294901760
        %4549 = vmatpush.msra.mxu0 %v4548
        %v4550 = vand.u32 %v4231, 4294901760
        %v4551 = vsub.f32 %v4231, %v4550
        %v4552 = vand.u32 %v4551, 4294901760
        %4553 = vmatpush.msra.mxu0 %v4552
        %v4554 = vand.u32 %v4229, 4294901760
        %v4555 = vsub.f32 %v4229, %v4554
        %v4556 = vand.u32 %v4555, 4294901760
        %4557 = vmatpush.msra.mxu0 %v4556
        %v4558 = vand.u32 %v4275, 4294901760
        %4559 = vmatmul.f32.gmra.mxu0 %v4558
        %v4560 = vpop.f32.mrf.mxu0
        %v4561 = vadd.f32 %v4498, %v4560
        %v4562 = vand.u32 %v4278, 4294901760
        %4563 = vmatmul.f32.gmra.mxu0 %v4562
        %v4564 = vpop.f32.mrf.mxu0
        %v4565 = vadd.f32 %v4504, %v4564
        %v4566 = vand.u32 %v4281, 4294901760
        %4567 = vmatmul.f32.gmra.mxu0 %v4566
        %v4568 = vpop.f32.mrf.mxu0
        %v4569 = vadd.f32 %v4510, %v4568
        %v4570 = vand.u32 %v4284, 4294901760
        %4571 = vmatmul.f32.gmra.mxu0 %v4570
        %v4572 = vpop.f32.mrf.mxu0
        %v4573 = vadd.f32 %v4516, %v4572
        %4574 = vdwg.mxu0
        %4575 = vmatpush.msra.mxu0 0.0
        %4576 = vmatpush.msra.mxu0 0.0
        %4577 = vmatpush.msra.mxu0 0.0
        %4578 = vmatpush.msra.mxu0 0.0
        %4579 = vmatpush.msra.mxu0 0.0
        %4580 = vmatpush.msra.mxu0 0.0
        %4581 = vmatpush.msra.mxu0 0.0
        %4582 = vmatpush.msra.mxu0 0.0
        %v4583 = vand.u32 %v4243, 4294901760
        %4584 = vmatpush.msra.mxu0 %v4583
        %v4585 = vand.u32 %v4241, 4294901760
        %4586 = vmatpush.msra.mxu0 %v4585
        %v4587 = vand.u32 %v4239, 4294901760
        %4588 = vmatpush.msra.mxu0 %v4587
        %v4589 = vand.u32 %v4237, 4294901760
        %4590 = vmatpush.msra.mxu0 %v4589
        %v4591 = vand.u32 %v4235, 4294901760
        %4592 = vmatpush.msra.mxu0 %v4591
        %v4593 = vand.u32 %v4233, 4294901760
        %4594 = vmatpush.msra.mxu0 %v4593
        %v4595 = vand.u32 %v4231, 4294901760
        %4596 = vmatpush.msra.mxu0 %v4595
        %v4597 = vand.u32 %v4229, 4294901760
        %4598 = vmatpush.msra.mxu0 %v4597
        %v4599 = vand.u32 %v4275, 4294901760
        %4600 = vmatmul.f32.gmra.mxu0 %v4599
        %v4601 = vpop.f32.mrf.mxu0
        %v4602 = vadd.f32 %v4561, %v4601
        %v4603 = vand.u32 %v4278, 4294901760
        %4604 = vmatmul.f32.gmra.mxu0 %v4603
        %v4605 = vpop.f32.mrf.mxu0
        %v4606 = vadd.f32 %v4565, %v4605
        %v4607 = vand.u32 %v4281, 4294901760
        %4608 = vmatmul.f32.gmra.mxu0 %v4607
        %v4609 = vpop.f32.mrf.mxu0
        %v4610 = vadd.f32 %v4569, %v4609
        %v4611 = vand.u32 %v4284, 4294901760
        %4612 = vmatmul.f32.gmra.mxu0 %v4611
        %v4613 = vpop.f32.mrf.mxu0
        %v4614 = vadd.f32 %v4573, %v4613
        %4615 = vdwg.mxu0
        %4616 = vmatpush.msra.mxu0 0.0
        %4617 = vmatpush.msra.mxu0 0.0
        %4618 = vmatpush.msra.mxu0 0.0
        %4619 = vmatpush.msra.mxu0 0.0
        %4620 = vmatpush.msra.mxu0 0.0
        %4621 = vmatpush.msra.mxu0 0.0
        %4622 = vmatpush.msra.mxu0 0.0
        %4623 = vmatpush.msra.mxu0 0.0
        %v4624 = vand.u32 %v4244, 4294901760
        %4625 = vmatpush.msra.mxu0 %v4624
        %v4626 = vand.u32 %v4242, 4294901760
        %4627 = vmatpush.msra.mxu0 %v4626
        %v4628 = vand.u32 %v4240, 4294901760
        %4629 = vmatpush.msra.mxu0 %v4628
        %v4630 = vand.u32 %v4238, 4294901760
        %4631 = vmatpush.msra.mxu0 %v4630
        %v4632 = vand.u32 %v4236, 4294901760
        %4633 = vmatpush.msra.mxu0 %v4632
        %v4634 = vand.u32 %v4234, 4294901760
        %4635 = vmatpush.msra.mxu0 %v4634
        %v4636 = vand.u32 %v4232, 4294901760
        %4637 = vmatpush.msra.mxu0 %v4636
        %v4638 = vand.u32 %v4230, 4294901760
        %4639 = vmatpush.msra.mxu0 %v4638
        %v4640 = vand.u32 %v4275, 4294901760
        %v4641 = vsub.f32 %v4275, %v4640
        %v4642 = vand.u32 %v4641, 4294901760
        %v4643 = vsub.f32 %v4641, %v4642
        %v4644 = vand.u32 %v4643, 4294901760
        %4645 = vmatmul.f32.gmra.mxu0 %v4644
        %v4646 = vpop.f32.mrf.mxu0
        %v4647 = vadd.f32 %v4256, %v4646
        %v4648 = vand.u32 %v4278, 4294901760
        %v4649 = vsub.f32 %v4278, %v4648
        %v4650 = vand.u32 %v4649, 4294901760
        %v4651 = vsub.f32 %v4649, %v4650
        %v4652 = vand.u32 %v4651, 4294901760
        %4653 = vmatmul.f32.gmra.mxu0 %v4652
        %v4654 = vpop.f32.mrf.mxu0
        %v4655 = vadd.f32 %v4261, %v4654
        %v4656 = vand.u32 %v4281, 4294901760
        %v4657 = vsub.f32 %v4281, %v4656
        %v4658 = vand.u32 %v4657, 4294901760
        %v4659 = vsub.f32 %v4657, %v4658
        %v4660 = vand.u32 %v4659, 4294901760
        %4661 = vmatmul.f32.gmra.mxu0 %v4660
        %v4662 = vpop.f32.mrf.mxu0
        %v4663 = vadd.f32 %v4266, %v4662
        %v4664 = vand.u32 %v4284, 4294901760
        %v4665 = vsub.f32 %v4284, %v4664
        %v4666 = vand.u32 %v4665, 4294901760
        %v4667 = vsub.f32 %v4665, %v4666
        %v4668 = vand.u32 %v4667, 4294901760
        %4669 = vmatmul.f32.gmra.mxu0 %v4668
        %v4670 = vpop.f32.mrf.mxu0
        %v4671 = vadd.f32 %v4271, %v4670
        %4672 = vdwg.mxu0
        %4673 = vmatpush.msra.mxu0 0.0
        %4674 = vmatpush.msra.mxu0 0.0
        %4675 = vmatpush.msra.mxu0 0.0
        %4676 = vmatpush.msra.mxu0 0.0
        %4677 = vmatpush.msra.mxu0 0.0
        %4678 = vmatpush.msra.mxu0 0.0
        %4679 = vmatpush.msra.mxu0 0.0
        %4680 = vmatpush.msra.mxu0 0.0
        %v4681 = vand.u32 %v4244, 4294901760
        %v4682 = vsub.f32 %v4244, %v4681
        %v4683 = vand.u32 %v4682, 4294901760
        %v4684 = vsub.f32 %v4682, %v4683
        %v4685 = vand.u32 %v4684, 4294901760
        %4686 = vmatpush.msra.mxu0 %v4685
        %v4687 = vand.u32 %v4242, 4294901760
        %v4688 = vsub.f32 %v4242, %v4687
        %v4689 = vand.u32 %v4688, 4294901760
        %v4690 = vsub.f32 %v4688, %v4689
        %v4691 = vand.u32 %v4690, 4294901760
        %4692 = vmatpush.msra.mxu0 %v4691
        %v4693 = vand.u32 %v4240, 4294901760
        %v4694 = vsub.f32 %v4240, %v4693
        %v4695 = vand.u32 %v4694, 4294901760
        %v4696 = vsub.f32 %v4694, %v4695
        %v4697 = vand.u32 %v4696, 4294901760
        %4698 = vmatpush.msra.mxu0 %v4697
        %v4699 = vand.u32 %v4238, 4294901760
        %v4700 = vsub.f32 %v4238, %v4699
        %v4701 = vand.u32 %v4700, 4294901760
        %v4702 = vsub.f32 %v4700, %v4701
        %v4703 = vand.u32 %v4702, 4294901760
        %4704 = vmatpush.msra.mxu0 %v4703
        %v4705 = vand.u32 %v4236, 4294901760
        %v4706 = vsub.f32 %v4236, %v4705
        %v4707 = vand.u32 %v4706, 4294901760
        %v4708 = vsub.f32 %v4706, %v4707
        %v4709 = vand.u32 %v4708, 4294901760
        %4710 = vmatpush.msra.mxu0 %v4709
        %v4711 = vand.u32 %v4234, 4294901760
        %v4712 = vsub.f32 %v4234, %v4711
        %v4713 = vand.u32 %v4712, 4294901760
        %v4714 = vsub.f32 %v4712, %v4713
        %v4715 = vand.u32 %v4714, 4294901760
        %4716 = vmatpush.msra.mxu0 %v4715
        %v4717 = vand.u32 %v4232, 4294901760
        %v4718 = vsub.f32 %v4232, %v4717
        %v4719 = vand.u32 %v4718, 4294901760
        %v4720 = vsub.f32 %v4718, %v4719
        %v4721 = vand.u32 %v4720, 4294901760
        %4722 = vmatpush.msra.mxu0 %v4721
        %v4723 = vand.u32 %v4230, 4294901760
        %v4724 = vsub.f32 %v4230, %v4723
        %v4725 = vand.u32 %v4724, 4294901760
        %v4726 = vsub.f32 %v4724, %v4725
        %v4727 = vand.u32 %v4726, 4294901760
        %4728 = vmatpush.msra.mxu0 %v4727
        %v4729 = vand.u32 %v4275, 4294901760
        %4730 = vmatmul.f32.gmra.mxu0 %v4729
        %v4731 = vpop.f32.mrf.mxu0
        %v4732 = vadd.f32 %v4647, %v4731
        %v4733 = vand.u32 %v4278, 4294901760
        %4734 = vmatmul.f32.gmra.mxu0 %v4733
        %v4735 = vpop.f32.mrf.mxu0
        %v4736 = vadd.f32 %v4655, %v4735
        %v4737 = vand.u32 %v4281, 4294901760
        %4738 = vmatmul.f32.gmra.mxu0 %v4737
        %v4739 = vpop.f32.mrf.mxu0
        %v4740 = vadd.f32 %v4663, %v4739
        %v4741 = vand.u32 %v4284, 4294901760
        %4742 = vmatmul.f32.gmra.mxu0 %v4741
        %v4743 = vpop.f32.mrf.mxu0
        %v4744 = vadd.f32 %v4671, %v4743
        %4745 = vdwg.mxu0
        %4746 = vmatpush.msra.mxu0 0.0
        %4747 = vmatpush.msra.mxu0 0.0
        %4748 = vmatpush.msra.mxu0 0.0
        %4749 = vmatpush.msra.mxu0 0.0
        %4750 = vmatpush.msra.mxu0 0.0
        %4751 = vmatpush.msra.mxu0 0.0
        %4752 = vmatpush.msra.mxu0 0.0
        %4753 = vmatpush.msra.mxu0 0.0
        %v4754 = vand.u32 %v4244, 4294901760
        %v4755 = vsub.f32 %v4244, %v4754
        %4756 = vmatpush.msra.mxu0 %v4755
        %v4757 = vand.u32 %v4242, 4294901760
        %v4758 = vsub.f32 %v4242, %v4757
        %4759 = vmatpush.msra.mxu0 %v4758
        %v4760 = vand.u32 %v4240, 4294901760
        %v4761 = vsub.f32 %v4240, %v4760
        %4762 = vmatpush.msra.mxu0 %v4761
        %v4763 = vand.u32 %v4238, 4294901760
        %v4764 = vsub.f32 %v4238, %v4763
        %4765 = vmatpush.msra.mxu0 %v4764
        %v4766 = vand.u32 %v4236, 4294901760
        %v4767 = vsub.f32 %v4236, %v4766
        %4768 = vmatpush.msra.mxu0 %v4767
        %v4769 = vand.u32 %v4234, 4294901760
        %v4770 = vsub.f32 %v4234, %v4769
        %4771 = vmatpush.msra.mxu0 %v4770
        %v4772 = vand.u32 %v4232, 4294901760
        %v4773 = vsub.f32 %v4232, %v4772
        %4774 = vmatpush.msra.mxu0 %v4773
        %v4775 = vand.u32 %v4230, 4294901760
        %v4776 = vsub.f32 %v4230, %v4775
        %4777 = vmatpush.msra.mxu0 %v4776
        %v4778 = vand.u32 %v4275, 4294901760
        %v4779 = vsub.f32 %v4275, %v4778
        %4780 = vmatmul.f32.gmra.mxu0 %v4779
        %v4781 = vpop.f32.mrf.mxu0
        %v4782 = vadd.f32 %v4732, %v4781
        %v4783 = vand.u32 %v4278, 4294901760
        %v4784 = vsub.f32 %v4278, %v4783
        %4785 = vmatmul.f32.gmra.mxu0 %v4784
        %v4786 = vpop.f32.mrf.mxu0
        %v4787 = vadd.f32 %v4736, %v4786
        %v4788 = vand.u32 %v4281, 4294901760
        %v4789 = vsub.f32 %v4281, %v4788
        %4790 = vmatmul.f32.gmra.mxu0 %v4789
        %v4791 = vpop.f32.mrf.mxu0
        %v4792 = vadd.f32 %v4740, %v4791
        %v4793 = vand.u32 %v4284, 4294901760
        %v4794 = vsub.f32 %v4284, %v4793
        %4795 = vmatmul.f32.gmra.mxu0 %v4794
        %v4796 = vpop.f32.mrf.mxu0
        %v4797 = vadd.f32 %v4744, %v4796
        %4798 = vdwg.mxu0
        %4799 = vmatpush.msra.mxu0 0.0
        %4800 = vmatpush.msra.mxu0 0.0
        %4801 = vmatpush.msra.mxu0 0.0
        %4802 = vmatpush.msra.mxu0 0.0
        %4803 = vmatpush.msra.mxu0 0.0
        %4804 = vmatpush.msra.mxu0 0.0
        %4805 = vmatpush.msra.mxu0 0.0
        %4806 = vmatpush.msra.mxu0 0.0
        %v4807 = vand.u32 %v4244, 4294901760
        %4808 = vmatpush.msra.mxu0 %v4807
        %v4809 = vand.u32 %v4242, 4294901760
        %4810 = vmatpush.msra.mxu0 %v4809
        %v4811 = vand.u32 %v4240, 4294901760
        %4812 = vmatpush.msra.mxu0 %v4811
        %v4813 = vand.u32 %v4238, 4294901760
        %4814 = vmatpush.msra.mxu0 %v4813
        %v4815 = vand.u32 %v4236, 4294901760
        %4816 = vmatpush.msra.mxu0 %v4815
        %v4817 = vand.u32 %v4234, 4294901760
        %4818 = vmatpush.msra.mxu0 %v4817
        %v4819 = vand.u32 %v4232, 4294901760
        %4820 = vmatpush.msra.mxu0 %v4819
        %v4821 = vand.u32 %v4230, 4294901760
        %4822 = vmatpush.msra.mxu0 %v4821
        %v4823 = vand.u32 %v4275, 4294901760
        %v4824 = vsub.f32 %v4275, %v4823
        %v4825 = vand.u32 %v4824, 4294901760
        %4826 = vmatmul.f32.gmra.mxu0 %v4825
        %v4827 = vpop.f32.mrf.mxu0
        %v4828 = vadd.f32 %v4782, %v4827
        %v4829 = vand.u32 %v4278, 4294901760
        %v4830 = vsub.f32 %v4278, %v4829
        %v4831 = vand.u32 %v4830, 4294901760
        %4832 = vmatmul.f32.gmra.mxu0 %v4831
        %v4833 = vpop.f32.mrf.mxu0
        %v4834 = vadd.f32 %v4787, %v4833
        %v4835 = vand.u32 %v4281, 4294901760
        %v4836 = vsub.f32 %v4281, %v4835
        %v4837 = vand.u32 %v4836, 4294901760
        %4838 = vmatmul.f32.gmra.mxu0 %v4837
        %v4839 = vpop.f32.mrf.mxu0
        %v4840 = vadd.f32 %v4792, %v4839
        %v4841 = vand.u32 %v4284, 4294901760
        %v4842 = vsub.f32 %v4284, %v4841
        %v4843 = vand.u32 %v4842, 4294901760
        %4844 = vmatmul.f32.gmra.mxu0 %v4843
        %v4845 = vpop.f32.mrf.mxu0
        %v4846 = vadd.f32 %v4797, %v4845
        %4847 = vdwg.mxu0
        %4848 = vmatpush.msra.mxu0 0.0
        %4849 = vmatpush.msra.mxu0 0.0
        %4850 = vmatpush.msra.mxu0 0.0
        %4851 = vmatpush.msra.mxu0 0.0
        %4852 = vmatpush.msra.mxu0 0.0
        %4853 = vmatpush.msra.mxu0 0.0
        %4854 = vmatpush.msra.mxu0 0.0
        %4855 = vmatpush.msra.mxu0 0.0
        %v4856 = vand.u32 %v4244, 4294901760
        %v4857 = vsub.f32 %v4244, %v4856
        %v4858 = vand.u32 %v4857, 4294901760
        %4859 = vmatpush.msra.mxu0 %v4858
        %v4860 = vand.u32 %v4242, 4294901760
        %v4861 = vsub.f32 %v4242, %v4860
        %v4862 = vand.u32 %v4861, 4294901760
        %4863 = vmatpush.msra.mxu0 %v4862
        %v4864 = vand.u32 %v4240, 4294901760
        %v4865 = vsub.f32 %v4240, %v4864
        %v4866 = vand.u32 %v4865, 4294901760
        %4867 = vmatpush.msra.mxu0 %v4866
        %v4868 = vand.u32 %v4238, 4294901760
        %v4869 = vsub.f32 %v4238, %v4868
        %v4870 = vand.u32 %v4869, 4294901760
        %4871 = vmatpush.msra.mxu0 %v4870
        %v4872 = vand.u32 %v4236, 4294901760
        %v4873 = vsub.f32 %v4236, %v4872
        %v4874 = vand.u32 %v4873, 4294901760
        %4875 = vmatpush.msra.mxu0 %v4874
        %v4876 = vand.u32 %v4234, 4294901760
        %v4877 = vsub.f32 %v4234, %v4876
        %v4878 = vand.u32 %v4877, 4294901760
        %4879 = vmatpush.msra.mxu0 %v4878
        %v4880 = vand.u32 %v4232, 4294901760
        %v4881 = vsub.f32 %v4232, %v4880
        %v4882 = vand.u32 %v4881, 4294901760
        %4883 = vmatpush.msra.mxu0 %v4882
        %v4884 = vand.u32 %v4230, 4294901760
        %v4885 = vsub.f32 %v4230, %v4884
        %v4886 = vand.u32 %v4885, 4294901760
        %4887 = vmatpush.msra.mxu0 %v4886
        %v4888 = vand.u32 %v4275, 4294901760
        %4889 = vmatmul.f32.gmra.mxu0 %v4888
        %v4890 = vpop.f32.mrf.mxu0
        %v4891 = vadd.f32 %v4828, %v4890
        %v4892 = vand.u32 %v4278, 4294901760
        %4893 = vmatmul.f32.gmra.mxu0 %v4892
        %v4894 = vpop.f32.mrf.mxu0
        %v4895 = vadd.f32 %v4834, %v4894
        %v4896 = vand.u32 %v4281, 4294901760
        %4897 = vmatmul.f32.gmra.mxu0 %v4896
        %v4898 = vpop.f32.mrf.mxu0
        %v4899 = vadd.f32 %v4840, %v4898
        %v4900 = vand.u32 %v4284, 4294901760
        %4901 = vmatmul.f32.gmra.mxu0 %v4900
        %v4902 = vpop.f32.mrf.mxu0
        %v4903 = vadd.f32 %v4846, %v4902
        %4904 = vdwg.mxu0
        %4905 = vmatpush.msra.mxu0 0.0
        %4906 = vmatpush.msra.mxu0 0.0
        %4907 = vmatpush.msra.mxu0 0.0
        %4908 = vmatpush.msra.mxu0 0.0
        %4909 = vmatpush.msra.mxu0 0.0
        %4910 = vmatpush.msra.mxu0 0.0
        %4911 = vmatpush.msra.mxu0 0.0
        %4912 = vmatpush.msra.mxu0 0.0
        %v4913 = vand.u32 %v4244, 4294901760
        %4914 = vmatpush.msra.mxu0 %v4913
        %v4915 = vand.u32 %v4242, 4294901760
        %4916 = vmatpush.msra.mxu0 %v4915
        %v4917 = vand.u32 %v4240, 4294901760
        %4918 = vmatpush.msra.mxu0 %v4917
        %v4919 = vand.u32 %v4238, 4294901760
        %4920 = vmatpush.msra.mxu0 %v4919
        %v4921 = vand.u32 %v4236, 4294901760
        %4922 = vmatpush.msra.mxu0 %v4921
        %v4923 = vand.u32 %v4234, 4294901760
        %4924 = vmatpush.msra.mxu0 %v4923
        %v4925 = vand.u32 %v4232, 4294901760
        %4926 = vmatpush.msra.mxu0 %v4925
        %v4927 = vand.u32 %v4230, 4294901760
        %4928 = vmatpush.msra.mxu0 %v4927
        %v4929 = vand.u32 %v4275, 4294901760
        %4930 = vmatmul.f32.gmra.mxu0 %v4929
        %v4931 = vpop.f32.mrf.mxu0
        %v4932 = vadd.f32 %v4891, %v4931
        %v4933 = vand.u32 %v4278, 4294901760
        %4934 = vmatmul.f32.gmra.mxu0 %v4933
        %v4935 = vpop.f32.mrf.mxu0
        %v4936 = vadd.f32 %v4895, %v4935
        %v4937 = vand.u32 %v4281, 4294901760
        %4938 = vmatmul.f32.gmra.mxu0 %v4937
        %v4939 = vpop.f32.mrf.mxu0
        %v4940 = vadd.f32 %v4899, %v4939
        %v4941 = vand.u32 %v4284, 4294901760
        %4942 = vmatmul.f32.gmra.mxu0 %v4941
        %v4943 = vpop.f32.mrf.mxu0
        %v4944 = vadd.f32 %v4903, %v4943
        %4945 = vdwg.mxu0
        %v4946 = vmax.f32 %v4602, 0.0
        %v4947 = vmax.f32 %v4932, 0.0
        %v4948 = vmax.f32 %v4606, 0.0
        %v4949 = vmax.f32 %v4936, 0.0
        %v4950 = vmax.f32 %v4610, 0.0
        %v4951 = vmax.f32 %v4940, 0.0
        %v4952 = vmax.f32 %v4614, 0.0
        %v4953 = vmax.f32 %v4944, 0.0
        %v4954 = vld [vmem:[%s8] sm:$0xff]
        %v4955 = vld [vmem:[%s8 + $0x8] sm:$0xff]
        %v4956 = vld [vmem:[%s8 + $0x10] sm:$0xff]
        %v4957 = vld [vmem:[%s8 + $0x18] sm:$0xff]
        %4959 = vset.pattern.permute.xlu0 0
        %4960 = vperm.xlu0 %4959, %v4954
        %v4961 = vpop.permute.xlu0 %4960
        %4964 = vset.pattern.permute.xlu0 0
        %4965 = vperm.xlu0 %4964, %v4955
        %v4966 = vpop.permute.xlu0 %4965
        %4969 = vset.pattern.permute.xlu0 0
        %4970 = vperm.xlu0 %4969, %v4956
        %v4971 = vpop.permute.xlu0 %4970
        %4974 = vset.pattern.permute.xlu0 0
        %4975 = vperm.xlu0 %4974, %v4957
        %v4976 = vpop.permute.xlu0 %4975
        %v4978 = vmul.f32 %v4946, %v4961
        %v4979 = vmul.f32 %v4947, %v4961
        %v4980 = vmul.f32 %v4948, %v4966
        %v4981 = vmul.f32 %v4949, %v4966
        %v4982 = vmul.f32 %v4950, %v4971
        %v4983 = vmul.f32 %v4951, %v4971
        %v4984 = vmul.f32 %v4952, %v4976
        %v4985 = vmul.f32 %v4953, %v4976
        %v4986 = vadd.f32 %v4978, %v4980
        %v4987 = vadd.f32 %v4986, %v4982
        %v4988 = vadd.f32 %v4987, %v4984
        %v4989 = vrot.slane %v4988, 4
        %v4990 = vadd.f32 %v4988, %v4989
        %v4991 = vrot.slane %v4990, 2
        %v4992 = vadd.f32 %v4990, %v4991
        %v4993 = vrot.slane %v4992, 1
        %v4994 = vadd.f32 %v4992, %v4993
        %v4995 = vadd.f32 %v4979, %v4981
        %v4996 = vadd.f32 %v4995, %v4983
        %v4997 = vadd.f32 %v4996, %v4985
        %v4998 = vrot.slane %v4997, 4
        %v4999 = vadd.f32 %v4997, %v4998
        %v5000 = vrot.slane %v4999, 2
        %v5001 = vadd.f32 %v4999, %v5000
        %v5002 = vrot.slane %v5001, 1
        %v5003 = vadd.f32 %v5001, %v5002
        %s5004 = sld [smem:[#allocation2]]
        %v5005 = vstv %s5004
        %v5006 = vadd.f32 %v4994, %v5005
        %v5007 = vadd.f32 %v5003, %v5005
        %v5010 = vrot.slane %v5007, 7
        %vm5011 = vcmask 1040384
        %v5012 = vsel %vm5011, %v5006, %v5010
        %v5014 = vlaneseq
        %vm5015 = vcmp.ge.s32.totalorder %v5014, 0
        %vm5016 = vcmp.lt.s32.totalorder %v5014, 256
        %vm5017 = vmand %vm5015, %vm5016
        %5018 = vst.msk [vmem:[%s354] sm:$0x3] %vm5017, %v5012
        %s5019 = sand.u32 %s248, 1
        %s5020 = scalar_lea.sflag [#allocation4], %s5019
        %s5021 = sand.u32 %s248, 1
        %s5022 = smul.addr %s5021, 2
        %s5023 = scalar_lea.vmem [#allocation3], %s5022
        // Predicated region
        $region61: #{ncf_forward.1} parent=59 // pred_check
          %p5024 = pneg %p258
        $region62: #{ncf_forward.1} parent=59 // pred_check_branch
          %5026 = sbr.rel (%p5024) target = $region64
        $region63: #{ncf_forward.1} parent=59 // pred_region
          %s5027 = smul.u32 2, %s25
          %5029 = vsyncadd %s5020, 0
          %s5030 = scalar_lea.hbm %s10, %s5027
          %s5032 = sshll.u32 %s5023, 4
          %s5033 = int_to_ptr.vmem [resolvable:$true] %s5032
          %s5034 = sshll.u32 %s5030, 4
          %s5035 = int_to_ptr.hbm [resolvable:$true] %s5034
          %5037 = dma.vmem_to_hbm [thread:$0]  %s5033, 32, %s5035, %s5020
        $region64: #{ncf_forward.1} parent=59 // pred_fallthru
          _
      $region60: #{ncf_forward.1} parent=5 // pred_fallthru
        _
      %p5038 = scmp.le.s32.totalorder 2, %s20
      // Predicated region
      $region65: #{ncf_forward.1} parent=5 // pred_check
        %p5039 = pneg %p5038
      $region66: #{ncf_forward.1} parent=5 // pred_check_branch
        %5041 = sbr.rel (%p5039) target = $region68
      $region67: #{ncf_forward.1} parent=5 // pred_region
        %s5042 = ssub.s32 %s20, 2
        // Predicated region
        $region69: #{ncf_forward.1} parent=67 // pred_check
          %p5043 = pneg %p264
        $region70: #{ncf_forward.1} parent=67 // pred_check_branch
          %5045 = sbr.rel (%p5043) target = $region72
        $region71: #{ncf_forward.1} parent=67 // pred_region
          %s5046 = sand.u32 %s249, 1
          %s5047 = scalar_lea.sflag [#allocation4], %s5046
          %s5048 = sand.u32 %s249, 1
          %s5049 = smul.addr %s5048, 2
          %s5050 = scalar_lea.vmem [#allocation3], %s5049
          %5052 = dma.done %s5047, 32
        $region72: #{ncf_forward.1} parent=67 // pred_fallthru
          _
      $region68: #{ncf_forward.1} parent=5 // pred_fallthru
        _
    $region6: #{ncf_forward.1} parent=1 // loop_footer
      %s24 = sadd.s32 1, %s20
    $region7: #{ncf_forward.1} parent=1 // loop_footer_branch
      %19 = sbr.rel target = $region3
    $region8: #{ncf_forward.1} parent=1 // loop_exit
      _
    %5053 = vsyncpa [#allocation4], 1
    %s5054 = scalar_lea.sflag [#allocation4], 1
    %5055 = vsyncpa %s5054, 1

</llo_original>
